<compile_context>
chip_gen: v5e
topology: v5e:2x2
jax: 0.10.0
libtpu: 0.0.40
codegen_flags: <defaults>
</compile_context>

<pallas_src>
import math
import functools

import jax
import jax.numpy as jnp
from jax import lax
from jax.experimental import pallas as pl
from jax.experimental.pallas import tpu as pltpu

LANE = 128  # TPU lane width


def _round_up(v, m):
    return ((v + m - 1) // m) * m


# ----------------------------- kernel ---------------------------------------

def _synth_kernel(dim_t, n_mlp, use_label, w_offs, w_ks, slope,
                  aux_ref, x_ref, w_ref, b_ref, out_ref):
    """Full MLPSynthesizer forward for one batch tile.

    refs:
      aux_ref [Bt, 2]   f32   col 0 = timestep, col 1 = label (as float)
      x_ref   [Bt, xc]  f32   x zero-padded to xc lanes
      w_ref   [R, W]    bf16  packed weight slab (static row offsets w_offs/w_ks)
      b_ref   [8+, W]   f32   row 0 freq, 1 phase, 2 fused-b1, 3 fused-b2,
                              4..4+n_mlp-1 mlp biases, 4+n_mlp head bias
      out_ref [Bt, W]   bf16
    """
    bf = jnp.bfloat16
    f32 = jnp.float32

    aux = aux_ref[...]
    t = aux[:, 0:1]

    # ---- sinusoidal timestep embedding via a single cos (sin(x) = cos(x - pi/2))
    temb = jnp.cos(t * b_ref[0:1, 0:dim_t] + b_ref[1:2, 0:dim_t])   # [Bt, dim_t] f32

    # ---- stage 1: fused proj.Linear1 + time_embed.Linear1 (block-diagonal weight)
    lhs1 = jnp.concatenate([x_ref[...], temb], axis=-1).astype(bf)  # [Bt, k1]
    o, k = w_offs[0], w_ks[0]
    h = jnp.dot(lhs1, w_ref[o:o + k, :],
                preferred_element_type=f32) + b_ref[2:3, :]
    h = h * jax.nn.sigmoid(h)                                       # SiLU, both halves

    # ---- stage 2: fused proj.Linear2 + time_embed.Linear2 (+ label embedding)
    if use_label:
        classes = lax.broadcasted_iota(jnp.int32, (1, LANE), 1).astype(f32)
        onehot = (aux[:, 1:2] == classes).astype(bf)                # [Bt, 128] exact
        lhs2 = jnp.concatenate([h.astype(bf), onehot], axis=-1)     # [Bt, k2]
    else:
        lhs2 = h.astype(bf)
    o, k = w_offs[1], w_ks[1]
    h = jnp.dot(lhs2, w_ref[o:o + k, :],
                preferred_element_type=f32) + b_ref[3:4, :]

    # ---- base MLP: (Linear -> LeakyReLU(0.4)) per hidden layer
    for li in range(n_mlp):
        o, k = w_offs[2 + li], w_ks[2 + li]
        h = jnp.dot(h.astype(bf), w_ref[o:o + k, :],
                    preferred_element_type=f32) + b_ref[4 + li:5 + li, :]
        h = jnp.where(h > 0, h, slope * h)

    # ---- head (output feature dim zero-padded to 128 lanes; bf16 store)
    o, k = w_offs[2 + n_mlp], w_ks[2 + n_mlp]
    out_ref[...] = (jnp.dot(h.astype(bf), w_ref[o:o + k, :],
                            preferred_element_type=f32)
                    + b_ref[4 + n_mlp:5 + n_mlp, :]).astype(out_ref.dtype)


# ----------------------------- parameters -----------------------------------

def _xavier_uniform(key, fan_in, fan_out):
    limit = math.sqrt(6.0 / (fan_in + fan_out))
    return jax.random.uniform(key, (fan_in, fan_out), jnp.float32, -limit, limit)


def _default_linear(key, fan_in, fan_out):
    # mimics torch.nn.Linear default init (uniform in +-1/sqrt(fan_in)), deterministic
    kw, kb = jax.random.split(key)
    bound = 1.0 / math.sqrt(fan_in)
    w = jax.random.uniform(kw, (fan_in, fan_out), jnp.float32, -bound, bound)
    b = jax.random.uniform(kb, (fan_out,), jnp.float32, -bound, bound)
    return w, b


def init_params(key, d_in, hidden_layers, dim_t, n_classes):
    """Weights stored in bf16 (MXU operands), biases / embedding table in f32."""
    bf = jnp.bfloat16
    n_mlp = len(hidden_layers)
    keys = jax.random.split(key, 8 + n_mlp)
    te_w1, te_b1 = _default_linear(keys[0], dim_t, dim_t)
    te_w2, te_b2 = _default_linear(keys[1], dim_t, dim_t)
    p_w1, p_b1 = _default_linear(keys[2], d_in, dim_t)
    p_w2, p_b2 = _default_linear(keys[3], dim_t, dim_t)
    dims = [dim_t, *hidden_layers]
    mlp = []
    for i in range(n_mlp):
        w = _xavier_uniform(keys[4 + i], dims[i], dims[i + 1]).astype(bf)
        b = jnp.zeros((dims[i + 1],), jnp.float32)   # init_linear_layer zero bias
        mlp.append((w, b))
    head_w, head_b = _default_linear(keys[4 + n_mlp], hidden_layers[-1], d_in)
    label_emb = jax.random.normal(keys[5 + n_mlp], (n_classes, dim_t), jnp.float32)
    return {
        "te_w1": te_w1.astype(bf), "te_b1": te_b1,
        "te_w2": te_w2.astype(bf), "te_b2": te_b2,
        "p_w1": p_w1.astype(bf), "p_b1": p_b1,
        "p_w2": p_w2.astype(bf), "p_b2": p_b2,
        "mlp": mlp,
        "head_w": head_w.astype(bf), "head_b": head_b,
        "label_emb": label_emb,
    }


def _pack_for_kernel(params, d_in, dim_t, use_label):
    """Build the single bf16 weight slab and the single f32 bias/constant slab."""
    bf = jnp.bfloat16
    f32 = jnp.float32
    mlp = params["mlp"]
    n_mlp = len(mlp)
    hidden = [int(w.shape[1]) for (w, _) in mlp]
    hidden_last = hidden[-1]
    n_classes = int(params["label_emb"].shape[0])

    W = _round_up(max(2 * dim_t, d_in, *hidden), LANE)   # common lane width
    xcols = max(64, _round_up(d_in, 64))                 # x lanes in the stage-1 LHS
    k1 = xcols + dim_t
    k2 = W + (LANE if use_label else 0)

    # ---- stage-1 block-diagonal weight: [x | temb] -> [proj_h | te_h]
    w1 = jnp.zeros((k1, W), f32)
    w1 = w1.at[:d_in, :dim_t].set(params["p_w1"].astype(f32))
    w1 = w1.at[xcols:xcols + dim_t, dim_t:2 * dim_t].set(params["te_w1"].astype(f32))

    # ---- stage-2 K-concatenated weight: [silu(h1) | onehot] -> dim_t
    w2 = jnp.zeros((k2, W), f32)
    w2 = w2.at[:dim_t, :dim_t].set(params["p_w2"].astype(f32))
    w2 = w2.at[dim_t:2 * dim_t, :dim_t].set(params["te_w2"].astype(f32))
    if use_label:
        w2 = w2.at[W:W + n_classes, :dim_t].set(params["label_emb"])

    blocks, ks = [w1, w2], [k1, k2]
    prev = dim_t
    for (wm, _) in mlp:
        cur = int(wm.shape[1])
        blk = jnp.zeros((W, W), f32).at[:prev, :cur].set(wm.astype(f32))
        blocks.append(blk); ks.append(W)
        prev = cur
    head = jnp.zeros((W, W), f32).at[:hidden_last, :d_in].set(
        params["head_w"].astype(f32))
    blocks.append(head); ks.append(W)

    # stack into one slab with 16-row-aligned block offsets
    offs, padded, rows = [], [], 0
    for blk in blocks:
        offs.append(rows)
        r16 = _round_up(blk.shape[0], 16)
        if r16 != blk.shape[0]:
            blk = jnp.zeros((r16, W), f32).at[:blk.shape[0]].set(blk)
        padded.append(blk)
        rows += r16
    w_slab = jnp.concatenate(padded, axis=0).astype(bf)

    # ---- bias / constant slab (freq, phase, fused biases, mlp biases, head bias)
    half = dim_t // 2
    freqs = jnp.exp(-math.log(10000.0) * jnp.arange(half, dtype=f32) / half)
    freq_row = jnp.concatenate([freqs, freqs])
    phase_row = jnp.concatenate([jnp.zeros((half,), f32),
                                 jnp.full((half,), -0.5 * math.pi, f32)])
    n_brows = _round_up(5 + n_mlp, 8)
    b_slab = jnp.zeros((n_brows, W), f32)
    b_slab = b_slab.at[0, :dim_t].set(freq_row)
    b_slab = b_slab.at[1, :dim_t].set(phase_row)
    b_slab = b_slab.at[2, :dim_t].set(params["p_b1"])
    b_slab = b_slab.at[2, dim_t:2 * dim_t].set(params["te_b1"])
    b_slab = b_slab.at[3, :dim_t].set(params["p_b2"] + params["te_b2"])
    for li, (_, b) in enumerate(mlp):
        b_slab = b_slab.at[4 + li, :b.shape[0]].set(b)
    b_slab = b_slab.at[4 + n_mlp, :d_in].set(params["head_b"])

    return w_slab, b_slab, W, xcols, tuple(offs), tuple(ks), n_mlp


# ----------------------------- wrapper ---------------------------------------

def mlp_synthesizer_forward(params, x, timesteps, label=None, *, dim_t,
                            batch_tile=None):
    # TODO(synk): odd-dim_t zero-pad branch of timestep_embedding not implemented.
    assert dim_t % 2 == 0
    B, d_in = x.shape
    use_label = label is not None
    assert int(params["label_emb"].shape[0]) <= LANE

    if batch_tile is None:
        # two balanced tiles when the batch is big enough (feeds both TCs on
        # megacore chips; costs one extra tiny grid step on single-TC chips),
        # else a single right-sized tile.
        num_tiles = 2 if B > 128 else 1
        Bt = _round_up(-(-B // num_tiles), 16)
    else:
        Bt = _round_up(batch_tile, 16)
    Bpad = _round_up(B, Bt)

    w_slab, b_slab, W, xcols, w_offs, w_ks, n_mlp = _pack_for_kernel(
        params, d_in, dim_t, use_label)

    # batch-pad + lane-pad the streamed inputs
    xp = jnp.zeros((Bpad, xcols), jnp.float32).at[:B, :d_in].set(
        x.astype(jnp.float32))
    aux = jnp.zeros((Bpad, 2), jnp.float32)
    aux = aux.at[:B, 0].set(timesteps.astype(jnp.float32))
    if use_label:
        aux = aux.at[:B, 1].set(label.astype(jnp.float32))

    row = lambda i: (i, 0)      # batch-tiled arrays
    const = lambda i: (0, 0)    # weight / bias slabs: resident across the grid

    kernel = functools.partial(_synth_kernel, dim_t, n_mlp, use_label,
                               w_offs, w_ks, 0.4)
    out = pl.pallas_call(
        kernel,
        out_shape=jax.ShapeDtypeStruct((Bpad, W), jnp.bfloat16),
        grid=(Bpad // Bt,),
        in_specs=[pl.BlockSpec((Bt, 2), row),
                  pl.BlockSpec((Bt, xcols), row),
                  pl.BlockSpec(w_slab.shape, const),
                  pl.BlockSpec(b_slab.shape, const)],
        out_specs=pl.BlockSpec((Bt, W), row),
        compiler_params=pltpu.CompilerParams(
            dimension_semantics=("parallel",)),
    )(aux, xp, w_slab, b_slab)
    return out[:B, :d_in].astype(jnp.float32)


# ----------------------------- pure-JAX reference ----------------------------

def ref_forward(params, x, timesteps, label, *, dim_t):
    f32 = lambda a: a.astype(jnp.float32)
    half = dim_t // 2
    freqs = jnp.exp(-math.log(10000.0) * jnp.arange(half, dtype=jnp.float32) / half)
    args = timesteps.astype(jnp.float32)[:, None] * freqs[None]
    temb = jnp.concatenate([jnp.cos(args), jnp.sin(args)], axis=-1)

    h = temb @ f32(params["te_w1"]) + params["te_b1"]
    h = h * jax.nn.sigmoid(h)
    emb = h @ f32(params["te_w2"]) + params["te_b2"]
    if label is not None:
        emb = emb + jnp.take(params["label_emb"], label, axis=0)

    h = x @ f32(params["p_w1"]) + params["p_b1"]
    h = h * jax.nn.sigmoid(h)
    h = h @ f32(params["p_w2"]) + params["p_b2"]
    h = h + emb

    for w, b in params["mlp"]:
        h = h @ f32(w) + b
        h = jnp.where(h > 0, h, 0.4 * h)

    return h @ f32(params["head_w"]) + params["head_b"]


# ----------------------------- main ------------------------------------------

if __name__ == "__main__":
    B, d_in, dim_t = 300, 16, 64     # B=300 -> Bpad=320 -> two balanced 160-row tiles
    hidden_layers = [128, 128]
    n_classes = 10

    key = jax.random.PRNGKey(0)
    k_param, k_x, k_t, k_lab = jax.random.split(key, 4)

    params = init_params(k_param, d_in, hidden_layers, dim_t, n_classes)
    x = jax.random.normal(k_x, (B, d_in), jnp.float32)
    timesteps = jax.random.randint(k_t, (B,), 0, 1000).astype(jnp.float32)
    label = jax.random.randint(k_lab, (B,), 0, n_classes)

    out = mlp_synthesizer_forward(params, x, timesteps, label, dim_t=dim_t)
    out = jax.block_until_ready(out)

    ref = ref_forward(params, x, timesteps, label, dim_t=dim_t)
    assert out.shape == (B, d_in)
    max_err = float(jnp.max(jnp.abs(out - ref)))
    assert jnp.allclose(out, ref, atol=5e-2, rtol=5e-2), \
        f"mismatch vs reference (max abs err {max_err})"

    print("KERNEL_OK")
</pallas_src>

<mosaic_0001>
module attributes {stable_mosaic.version = 11 : i64} {
  func.func @_synth_kernel(%arg0: i32, %arg1: memref<160x2xf32, #tpu.memory_space<vmem>>, %arg2: memref<160x64xf32, #tpu.memory_space<vmem>>, %arg3: memref<768x128xbf16, #tpu.memory_space<vmem>>, %arg4: memref<8x128xf32, #tpu.memory_space<vmem>>, %arg5: memref<160x128xbf16, #tpu.memory_space<vmem>>) attributes {dimension_semantics = [#tpu.dimension_semantics<parallel>], iteration_bounds = array<i64: 2>, scalar_prefetch = 0 : i64, scratch_operands = 0 : i64, tpu.core_type = #tpu.core_type<tc>, window_params = [{transform_indices = @transform_0, window_bounds = array<i64: 160, 2>}, {transform_indices = @transform_1, window_bounds = array<i64: 160, 64>}, {pipeline_mode = #tpu.pipeline_mode<synchronous>, transform_indices = @transform_2, window_bounds = array<i64: 768, 128>}, {pipeline_mode = #tpu.pipeline_mode<synchronous>, transform_indices = @transform_3, window_bounds = array<i64: 8, 128>}, {transform_indices = @transform_4, window_bounds = array<i64: 160, 128>}]} {
    %c0 = arith.constant 0 : index
    %c0_0 = arith.constant 0 : index
    %0 = vector.load %arg1[%c0, %c0_0] : memref<160x2xf32, #tpu.memory_space<vmem>>, vector<160x2xf32>
    %1 = vector.extract_strided_slice %0 {offsets = [0, 0], sizes = [160, 1], strides = [1, 1]} : vector<160x2xf32> to vector<160x1xf32>
    %c0_1 = arith.constant 0 : index
    %c0_2 = arith.constant 0 : index
    %2 = vector.load %arg4[%c0_1, %c0_2] : memref<8x128xf32, #tpu.memory_space<vmem>>, vector<1x64xf32>
    %3 = vector.broadcast %1 : vector<160x1xf32> to vector<160x64xf32>
    %4 = vector.broadcast %2 : vector<1x64xf32> to vector<160x64xf32>
    %5 = arith.mulf %3, %4 : vector<160x64xf32>
    %c1 = arith.constant 1 : index
    %c0_3 = arith.constant 0 : index
    %6 = vector.load %arg4[%c1, %c0_3] : memref<8x128xf32, #tpu.memory_space<vmem>>, vector<1x64xf32>
    %7 = vector.broadcast %6 : vector<1x64xf32> to vector<160x64xf32>
    %8 = arith.addf %5, %7 : vector<160x64xf32>
    %9 = math.cos %8 : vector<160x64xf32>
    %c0_4 = arith.constant 0 : index
    %c0_5 = arith.constant 0 : index
    %10 = vector.load %arg2[%c0_4, %c0_5] : memref<160x64xf32, #tpu.memory_space<vmem>>, vector<160x64xf32>
    %11 = tpu.concatenate %10, %9 in 1 : vector<160x64xf32>, vector<160x64xf32> -> vector<160x128xf32>
    %12 = arith.truncf %11 : vector<160x128xf32> to vector<160x128xbf16>
    %c0_6 = arith.constant 0 : index
    %c0_7 = arith.constant 0 : index
    %13 = vector.load %arg3[%c0_6, %c0_7] : memref<768x128xbf16, #tpu.memory_space<vmem>>, vector<128x128xbf16>
    %cst = arith.constant dense<0.000000e+00> : vector<160x128xf32>
    %14 = tpu.matmul %12, %13, %cst {dimension_numbers = #tpu.dot_dimension_numbers<[1], [0], [0], [1], [0, 0, 1, 1], [], []>} : vector<160x128xbf16>, vector<128x128xbf16>, vector<160x128xf32> -> vector<160x128xf32>
    %c2 = arith.constant 2 : index
    %c0_8 = arith.constant 0 : index
    %15 = vector.load %arg4[%c2, %c0_8] : memref<8x128xf32, #tpu.memory_space<vmem>>, vector<1x128xf32>
    %16 = vector.broadcast %15 : vector<1x128xf32> to vector<160x128xf32>
    %17 = arith.addf %14, %16 : vector<160x128xf32>
    %18 = arith.negf %17 : vector<160x128xf32>
    %19 = math.exp %18 : vector<160x128xf32>
    %cst_9 = arith.constant 1.000000e+00 : f32
    %20 = vector.broadcast %cst_9 : f32 to vector<160x128xf32>
    %21 = arith.addf %20, %19 : vector<160x128xf32>
    %22 = arith.divf %20, %21 : vector<160x128xf32>
    %23 = arith.mulf %17, %22 : vector<160x128xf32>
    %24 = tpu.iota {dimensions = array<i32: 1>} : vector<1x128xi32>
    %25 = arith.sitofp %24 : vector<1x128xi32> to vector<1x128xf32>
    %26 = vector.extract_strided_slice %0 {offsets = [0, 1], sizes = [160, 1], strides = [1, 1]} : vector<160x2xf32> to vector<160x1xf32>
    %27 = vector.broadcast %26 : vector<160x1xf32> to vector<160x128xf32>
    %28 = vector.broadcast %25 : vector<1x128xf32> to vector<160x128xf32>
    %29 = arith.cmpf oeq, %27, %28 : vector<160x128xf32>
    %30 = arith.extui %29 : vector<160x128xi1> to vector<160x128xi32>
    %31 = arith.sitofp %30 : vector<160x128xi32> to vector<160x128xf32>
    %32 = arith.truncf %31 : vector<160x128xf32> to vector<160x128xbf16>
    %33 = arith.truncf %23 : vector<160x128xf32> to vector<160x128xbf16>
    %34 = tpu.concatenate %33, %32 in 1 : vector<160x128xbf16>, vector<160x128xbf16> -> vector<160x256xbf16>
    %c128 = arith.constant 128 : index
    %c0_10 = arith.constant 0 : index
    %35 = vector.load %arg3[%c128, %c0_10] : memref<768x128xbf16, #tpu.memory_space<vmem>>, vector<256x128xbf16>
    %cst_11 = arith.constant dense<0.000000e+00> : vector<160x128xf32>
    %36 = tpu.matmul %34, %35, %cst_11 {dimension_numbers = #tpu.dot_dimension_numbers<[1], [0], [0], [1], [0, 0, 1, 1], [], []>} : vector<160x256xbf16>, vector<256x128xbf16>, vector<160x128xf32> -> vector<160x128xf32>
    %c3 = arith.constant 3 : index
    %c0_12 = arith.constant 0 : index
    %37 = vector.load %arg4[%c3, %c0_12] : memref<8x128xf32, #tpu.memory_space<vmem>>, vector<1x128xf32>
    %38 = vector.broadcast %37 : vector<1x128xf32> to vector<160x128xf32>
    %39 = arith.addf %36, %38 : vector<160x128xf32>
    %40 = arith.truncf %39 : vector<160x128xf32> to vector<160x128xbf16>
    %c384 = arith.constant 384 : index
    %c0_13 = arith.constant 0 : index
    %41 = vector.load %arg3[%c384, %c0_13] : memref<768x128xbf16, #tpu.memory_space<vmem>>, vector<128x128xbf16>
    %cst_14 = arith.constant dense<0.000000e+00> : vector<160x128xf32>
    %42 = tpu.matmul %40, %41, %cst_14 {dimension_numbers = #tpu.dot_dimension_numbers<[1], [0], [0], [1], [0, 0, 1, 1], [], []>} : vector<160x128xbf16>, vector<128x128xbf16>, vector<160x128xf32> -> vector<160x128xf32>
    %c4 = arith.constant 4 : index
    %c0_15 = arith.constant 0 : index
    %43 = vector.load %arg4[%c4, %c0_15] : memref<8x128xf32, #tpu.memory_space<vmem>>, vector<1x128xf32>
    %44 = vector.broadcast %43 : vector<1x128xf32> to vector<160x128xf32>
    %45 = arith.addf %42, %44 : vector<160x128xf32>
    %cst_16 = arith.constant 0.000000e+00 : f32
    %46 = vector.broadcast %cst_16 : f32 to vector<160x128xf32>
    %47 = arith.cmpf ogt, %45, %46 : vector<160x128xf32>
    %cst_17 = arith.constant 4.000000e-01 : f32
    %48 = vector.broadcast %cst_17 : f32 to vector<160x128xf32>
    %49 = arith.mulf %48, %45 : vector<160x128xf32>
    %50 = arith.select %47, %45, %49 : vector<160x128xi1>, vector<160x128xf32>
    %51 = arith.truncf %50 : vector<160x128xf32> to vector<160x128xbf16>
    %c512 = arith.constant 512 : index
    %c0_18 = arith.constant 0 : index
    %52 = vector.load %arg3[%c512, %c0_18] : memref<768x128xbf16, #tpu.memory_space<vmem>>, vector<128x128xbf16>
    %cst_19 = arith.constant dense<0.000000e+00> : vector<160x128xf32>
    %53 = tpu.matmul %51, %52, %cst_19 {dimension_numbers = #tpu.dot_dimension_numbers<[1], [0], [0], [1], [0, 0, 1, 1], [], []>} : vector<160x128xbf16>, vector<128x128xbf16>, vector<160x128xf32> -> vector<160x128xf32>
    %c5 = arith.constant 5 : index
    %c0_20 = arith.constant 0 : index
    %54 = vector.load %arg4[%c5, %c0_20] : memref<8x128xf32, #tpu.memory_space<vmem>>, vector<1x128xf32>
    %55 = vector.broadcast %54 : vector<1x128xf32> to vector<160x128xf32>
    %56 = arith.addf %53, %55 : vector<160x128xf32>
    %cst_21 = arith.constant 0.000000e+00 : f32
    %57 = vector.broadcast %cst_21 : f32 to vector<160x128xf32>
    %58 = arith.cmpf ogt, %56, %57 : vector<160x128xf32>
    %cst_22 = arith.constant 4.000000e-01 : f32
    %59 = vector.broadcast %cst_22 : f32 to vector<160x128xf32>
    %60 = arith.mulf %59, %56 : vector<160x128xf32>
    %61 = arith.select %58, %56, %60 : vector<160x128xi1>, vector<160x128xf32>
    %62 = arith.truncf %61 : vector<160x128xf32> to vector<160x128xbf16>
    %c640 = arith.constant 640 : index
    %c0_23 = arith.constant 0 : index
    %63 = vector.load %arg3[%c640, %c0_23] : memref<768x128xbf16, #tpu.memory_space<vmem>>, vector<128x128xbf16>
    %cst_24 = arith.constant dense<0.000000e+00> : vector<160x128xf32>
    %64 = tpu.matmul %62, %63, %cst_24 {dimension_numbers = #tpu.dot_dimension_numbers<[1], [0], [0], [1], [0, 0, 1, 1], [], []>} : vector<160x128xbf16>, vector<128x128xbf16>, vector<160x128xf32> -> vector<160x128xf32>
    %c6 = arith.constant 6 : index
    %c0_25 = arith.constant 0 : index
    %65 = vector.load %arg4[%c6, %c0_25] : memref<8x128xf32, #tpu.memory_space<vmem>>, vector<1x128xf32>
    %66 = vector.broadcast %65 : vector<1x128xf32> to vector<160x128xf32>
    %67 = arith.addf %64, %66 : vector<160x128xf32>
    %68 = arith.truncf %67 : vector<160x128xf32> to vector<160x128xbf16>
    %c0_26 = arith.constant 0 : index
    %c0_27 = arith.constant 0 : index
    %69 = vector.load %arg5[%c0_26, %c0_27] : memref<160x128xbf16, #tpu.memory_space<vmem>>, vector<160x128xbf16>
    tpu.vector_store %arg5[%c0_26, %c0_27], %68 {strides = array<i32>} : memref<160x128xbf16, #tpu.memory_space<vmem>>, vector<160x128xbf16>,
    return
  }
  func.func @transform_0(%arg0: i32) -> (i32, i32) {
    %c0_i32 = arith.constant 0 : i32
    %c0_i32_0 = arith.constant 0 : i32
    return %arg0, %c0_i32 : i32, i32
  }
  func.func @transform_1(%arg0: i32) -> (i32, i32) {
    %c0_i32 = arith.constant 0 : i32
    %c0_i32_0 = arith.constant 0 : i32
    return %arg0, %c0_i32 : i32, i32
  }
  func.func @transform_2(%arg0: i32) -> (i32, i32) {
    %c0_i32 = arith.constant 0 : i32
    %c0_i32_0 = arith.constant 0 : i32
    %c0_i32_1 = arith.constant 0 : i32
    return %c0_i32, %c0_i32_0 : i32, i32
  }
  func.func @transform_3(%arg0: i32) -> (i32, i32) {
    %c0_i32 = arith.constant 0 : i32
    %c0_i32_0 = arith.constant 0 : i32
    %c0_i32_1 = arith.constant 0 : i32
    return %c0_i32, %c0_i32_0 : i32, i32
  }
  func.func @transform_4(%arg0: i32) -> (i32, i32) {
    %c0_i32 = arith.constant 0 : i32
    %c0_i32_0 = arith.constant 0 : i32
    return %arg0, %c0_i32 : i32, i32
  }
}

</mosaic_0001>

<llo_original>
// kernel: tpu_custom_call.1
$region0: #{tpu_custom_call.1}
  #allocation0 [shape = 'u32[]', space=smem, size = 0x4, offset = 0x4, fixed_abs, tag = 'smem constant byte address 0x4 - core index']
  #allocation1 [shape = 'u32[72,128]{1,0:T(1,128)}', space=vmem, size = 0x9000, scoped, tag = 'internal scratch']
  %s0 = inlined_call_operand.vmem [shape: f32[320,2], index: 0, kind: input, shape index: {}]
  %s1 = inlined_call_operand.vmem [shape: f32[320,64], index: 1, kind: input, shape index: {}]
  %s2 = inlined_call_operand.vmem [shape: bf16[768,128], index: 2, kind: input, shape index: {}]
  %s3 = inlined_call_operand.vmem [shape: f32[8,128], index: 3, kind: input, shape index: {}]
  %s4 = inlined_call_operand.hbm [shape: bf16[320,128], index: 4, kind: output, shape index: {}]
  %s5 = sld [smem:[#allocation0]]
  $region49: #{tpu_custom_call.1} parent=0
    _
  %s7 = ssub.s32 1, %s5
  %s8 = scalar_select 0, %s7, %s5
  $region1: #{tpu_custom_call.1} parent=0
    #allocation2 [shape = 'u8[81920]{0}', space=vmem, size = 0x14000, scoped, tag = 'output window, operand 0']
    #allocation3 [shape = 's32[2]{0}', space=sflag, size = 0x8, scoped, tag = 'scoped memory for tpu_custom_call.1']
    %9 = vsyncpa [#allocation3], 0
    %s10 = scalar_lea.sflag [#allocation3], 1
    %11 = vsyncpa %s10, 0
    loop: start=0, step=1, limit=4
    $region2: #{tpu_custom_call.1} parent=1 // loop_pre_header
      _
    $region3: #{tpu_custom_call.1} parent=1 // loop_header
      %s13 = sphi 0, %s17
      %p14 = scmp.ge.s32.totalorder %s13, 4
      %s23 = sphi 0, %s25
      %s26 = sphi 0, %s23
      %s27 = sphi 0, %s26
      %s43 = sphi 0, %s27
      %s49 = sphi 0, %s51
      %s52 = sphi 0, %s49
      %s53 = sphi 0, %s52
      %s69 = sphi 0, %s53
      %s73 = sphi 0, %s73
      %s75 = sphi 0, %s73
      %s76 = sphi 0, %s75
      %s90 = sphi 0, %s76
      %s94 = sphi 0, %s94
      %s96 = sphi 0, %s94
      %s97 = sphi 0, %s96
      %s111 = sphi 0, %s97
      %s117 = sphi 0, %s119
      %s120 = sphi 0, %s117
      %s121 = sphi 0, %s120
      %s137 = sphi 0, %s121
    $region4: #{tpu_custom_call.1} parent=1 // loop_header_branch
      %16 = sbr.rel (%p14) target = $region8
    $region5: #{tpu_custom_call.1} parent=1 // loop_body
      %s18 = ssub.s32 %s13, 1
      %s19 = ssub.s32 %s13, 2
      %s20 = sadd.s32 %s13, 1
      %s21 = ssub.s32 %s13, %s20
      %p22 = scmp.eq.s32.totalorder %s21, 0
      %s24 = sadd.s32 %s23, 1
      %s25 = scalar_select %p22, %s23, %s24
      %p28 = pneg %p22
      %p29 = scmp.eq.s32.totalorder %s13, 1
      %p30 = por %p28, %p29
      %p31 = scmp.ne.s32.totalorder %s23, %s26
      %p32 = scmp.eq.s32.totalorder %s13, 0
      %p33 = por %p31, %p32
      %p34 = scmp.ne.s32.totalorder %s23, %s26
      %p35 = scmp.eq.s32.totalorder %s18, 1
      %p36 = por %p34, %p35
      %p37 = scmp.ne.s32.totalorder %s26, %s27
      %p38 = scmp.eq.s32.totalorder %s18, 0
      %p39 = por %p37, %p38
      %p40 = scmp.ne.s32.totalorder %s26, %s27
      %p41 = scmp.eq.s32.totalorder %s19, 1
      %p42 = por %p40, %p41
      %p44 = scmp.ne.s32.totalorder %s27, %s43
      %p45 = scmp.eq.s32.totalorder %s19, 0
      %p46 = por %p44, %p45
      %s47 = ssub.s32 %s13, %s20
      %p48 = scmp.eq.s32.totalorder %s47, 0
      %s50 = sadd.s32 %s49, 1
      %s51 = scalar_select %p48, %s49, %s50
      %p54 = pneg %p48
      %p55 = scmp.eq.s32.totalorder %s13, 1
      %p56 = por %p54, %p55
      %p57 = scmp.ne.s32.totalorder %s49, %s52
      %p58 = scmp.eq.s32.totalorder %s13, 0
      %p59 = por %p57, %p58
      %p60 = scmp.ne.s32.totalorder %s49, %s52
      %p61 = scmp.eq.s32.totalorder %s18, 1
      %p62 = por %p60, %p61
      %p63 = scmp.ne.s32.totalorder %s52, %s53
      %p64 = scmp.eq.s32.totalorder %s18, 0
      %p65 = por %p63, %p64
      %p66 = scmp.ne.s32.totalorder %s52, %s53
      %p67 = scmp.eq.s32.totalorder %s19, 1
      %p68 = por %p66, %p67
      %p70 = scmp.ne.s32.totalorder %s53, %s69
      %p71 = scmp.eq.s32.totalorder %s19, 0
      %p72 = por %p70, %p71
      %s74 = sadd.s32 %s73, 1
      %p77 = scmp.eq.s32.totalorder %s13, 1
      %p78 = scmp.ne.s32.totalorder %s73, %s75
      %p79 = scmp.eq.s32.totalorder %s13, 0
      %p80 = por %p78, %p79
      %p81 = scmp.ne.s32.totalorder %s73, %s75
      %p82 = scmp.eq.s32.totalorder %s18, 1
      %p83 = por %p81, %p82
      %p84 = scmp.ne.s32.totalorder %s75, %s76
      %p85 = scmp.eq.s32.totalorder %s18, 0
      %p86 = por %p84, %p85
      %p87 = scmp.ne.s32.totalorder %s75, %s76
      %p88 = scmp.eq.s32.totalorder %s19, 1
      %p89 = por %p87, %p88
      %p91 = scmp.ne.s32.totalorder %s76, %s90
      %p92 = scmp.eq.s32.totalorder %s19, 0
      %p93 = por %p91, %p92
      %s95 = sadd.s32 %s94, 1
      %p98 = scmp.eq.s32.totalorder %s13, 1
      %p99 = scmp.ne.s32.totalorder %s94, %s96
      %p100 = scmp.eq.s32.totalorder %s13, 0
      %p101 = por %p99, %p100
      %p102 = scmp.ne.s32.totalorder %s94, %s96
      %p103 = scmp.eq.s32.totalorder %s18, 1
      %p104 = por %p102, %p103
      %p105 = scmp.ne.s32.totalorder %s96, %s97
      %p106 = scmp.eq.s32.totalorder %s18, 0
      %p107 = por %p105, %p106
      %p108 = scmp.ne.s32.totalorder %s96, %s97
      %p109 = scmp.eq.s32.totalorder %s19, 1
      %p110 = por %p108, %p109
      %p112 = scmp.ne.s32.totalorder %s97, %s111
      %p113 = scmp.eq.s32.totalorder %s19, 0
      %p114 = por %p112, %p113
      %s115 = ssub.s32 %s13, %s20
      %p116 = scmp.eq.s32.totalorder %s115, 0
      %s118 = sadd.s32 %s117, 1
      %s119 = scalar_select %p116, %s117, %s118
      %p122 = pneg %p116
      %p123 = scmp.eq.s32.totalorder %s13, 1
      %p124 = por %p122, %p123
      %p125 = scmp.ne.s32.totalorder %s117, %s120
      %p126 = scmp.eq.s32.totalorder %s13, 0
      %p127 = por %p125, %p126
      %p128 = scmp.ne.s32.totalorder %s117, %s120
      %p129 = scmp.eq.s32.totalorder %s18, 1
      %p130 = por %p128, %p129
      %p131 = scmp.ne.s32.totalorder %s120, %s121
      %p132 = scmp.eq.s32.totalorder %s18, 0
      %p133 = por %p131, %p132
      %p134 = scmp.ne.s32.totalorder %s120, %s121
      %p135 = scmp.eq.s32.totalorder %s19, 1
      %p136 = por %p134, %p135
      %p138 = scmp.ne.s32.totalorder %s121, %s137
      %p139 = scmp.eq.s32.totalorder %s19, 0
      %p140 = por %p138, %p139
      %p141 = scmp.le.s32.totalorder 1, %s13
      %p142 = scmp.lt.s32.totalorder %s13, 3
      %p143 = pnand %p141, %p142
      %p144 = pneg %p143
      // Predicated region
      $region9: #{tpu_custom_call.1} parent=5 // pred_check
        _
      $region10: #{tpu_custom_call.1} parent=5 // pred_check_branch
        %146 = sbr.rel (%p143) target = $region12
      $region11: #{tpu_custom_call.1} parent=5 // pred_region
        %s147 = ssub.s32 %s13, 1
        // Predicated region
        $region13: #{tpu_custom_call.1} parent=11 // pred_check
          %p148 = pneg %p86
        $region14: #{tpu_custom_call.1} parent=11 // pred_check_branch
          %150 = sbr.rel (%p148) target = $region16
        $region15: #{tpu_custom_call.1} parent=11 // pred_region
          _
        $region16: #{tpu_custom_call.1} parent=11 // pred_fallthru
          _
        // Predicated region
        $region17: #{tpu_custom_call.1} parent=11 // pred_check
          %p151 = pneg %p107
        $region18: #{tpu_custom_call.1} parent=11 // pred_check_branch
          %153 = sbr.rel (%p151) target = $region20
        $region19: #{tpu_custom_call.1} parent=11 // pred_region
          _
        $region20: #{tpu_custom_call.1} parent=11 // pred_fallthru
          _
      $region12: #{tpu_custom_call.1} parent=5 // pred_fallthru
        _
      %p154 = scmp.lt.s32.totalorder %s13, 2
      // Predicated region
      $region21: #{tpu_custom_call.1} parent=5 // pred_check
        %p155 = pneg %p154
      $region22: #{tpu_custom_call.1} parent=5 // pred_check_branch
        %157 = sbr.rel (%p155) target = $region24
      $region23: #{tpu_custom_call.1} parent=5 // pred_region
        // Predicated region
        $region25: #{tpu_custom_call.1} parent=23 // pred_check
          %p158 = pneg %p33
        $region26: #{tpu_custom_call.1} parent=23 // pred_check_branch
          %160 = sbr.rel (%p158) target = $region28
        $region27: #{tpu_custom_call.1} parent=23 // pred_region
          %s161 = smul.u32 20, %s13
          %p162 = scmp.lt.s32.totalorder %s161, 39
          %s163 = scalar_select %p162, %s161, 39
          %s164 = smul.addr %s163, 8
          %s165 = scalar_lea.vmem %s0, %s164
          %s166 = smul.u32 20, %s13
        $region28: #{tpu_custom_call.1} parent=23 // pred_fallthru
          _
        // Predicated region
        $region29: #{tpu_custom_call.1} parent=23 // pred_check
          %p167 = pneg %p59
        $region30: #{tpu_custom_call.1} parent=23 // pred_check_branch
          %169 = sbr.rel (%p167) target = $region32
        $region31: #{tpu_custom_call.1} parent=23 // pred_region
          %s170 = smul.u32 20, %s13
          %p171 = scmp.lt.s32.totalorder %s170, 39
          %s172 = scalar_select %p171, %s170, 39
          %s173 = smul.addr %s172, 8
          %s174 = scalar_lea.vmem %s1, %s173
          %s175 = smul.u32 20, %s13
        $region32: #{tpu_custom_call.1} parent=23 // pred_fallthru
          _
      $region24: #{tpu_custom_call.1} parent=5 // pred_fallthru
        _
      %p176 = scmp.le.s32.totalorder 1, %s13
      %p177 = scmp.lt.s32.totalorder %s13, 3
      %p178 = pnand %p176, %p177
      %p179 = pneg %p178
      // Predicated region
      $region33: #{tpu_custom_call.1} parent=5 // pred_check
        _
      $region34: #{tpu_custom_call.1} parent=5 // pred_check_branch
        %181 = sbr.rel (%p178) target = $region36
      $region35: #{tpu_custom_call.1} parent=5 // pred_region
        %s182 = ssub.s32 %s13, 1
        %s183 = smul.u32 20, %s18
        %p184 = scmp.lt.s32.totalorder %s183, 39
        %s185 = scalar_select %p184, %s183, 39
        %s186 = smul.addr %s185, 8
        %s187 = scalar_lea.vmem %s0, %s186
        %p188 = pneg %p39
        %p189 = pneg %p36
        %s190 = smul.u32 20, %s18
        %p191 = scmp.lt.s32.totalorder %s190, 39
        %s192 = scalar_select %p191, %s190, 39
        %s193 = smul.addr %s192, 8
        %s194 = scalar_lea.vmem %s1, %s193
        %p195 = pneg %p65
        %p196 = pneg %p62
        %p197 = pneg %p86
        %p198 = pneg %p83
        %p199 = pneg %p107
        %p200 = pneg %p104
        %p201 = pneg %p133
        %p202 = pneg %p130
        %s203 = sand.u32 %s120, 1
        %s204 = scalar_lea.sflag [#allocation3], %s203
        %s205 = sand.u32 %s120, 1
        %s206 = smul.addr %s205, 80
        %s207 = scalar_lea.vmem [#allocation2], %s206
        %s208 = smul.u32 20, %s18
        %p209 = scmp.lt.s32.totalorder %s208, 39
        %s210 = scalar_select %p209, %s208, 39
        %s211 = smul.addr %s210, 8
        %s212 = scalar_lea.vmem %s0, %s211
        %s213 = smul.u32 20, %s18
        %s214 = smul.u32 20, %s18
        %p215 = scmp.lt.s32.totalorder %s214, 39
        %s216 = scalar_select %p215, %s214, 39
        %s217 = smul.addr %s216, 8
        %s218 = scalar_lea.vmem %s1, %s217
        %s219 = smul.u32 20, %s18
        %s220 = smul.u32 20, %s18
        %v221 = vld [vmem:[%s212] sm:$0xff]
        %v222 = vld [vmem:[%s212 + $0x8] sm:$0xff]
        %v223 = vld [vmem:[%s212 + $0x10] sm:$0xff]
        %v224 = vld [vmem:[%s212 + $0x18] sm:$0xff]
        %v225 = vld [vmem:[%s212 + $0x20] sm:$0xff]
        %v226 = vld [vmem:[%s212 + $0x28] sm:$0xff]
        %v227 = vld [vmem:[%s212 + $0x30] sm:$0xff]
        %v228 = vld [vmem:[%s212 + $0x38] sm:$0xff]
        %v229 = vld [vmem:[%s212 + $0x40] sm:$0xff]
        %v230 = vld [vmem:[%s212 + $0x48] sm:$0xff]
        %v231 = vld [vmem:[%s212 + $0x50] sm:$0xff]
        %v232 = vld [vmem:[%s212 + $0x58] sm:$0xff]
        %v233 = vld [vmem:[%s212 + $0x60] sm:$0xff]
        %v234 = vld [vmem:[%s212 + $0x68] sm:$0xff]
        %v235 = vld [vmem:[%s212 + $0x70] sm:$0xff]
        %v236 = vld [vmem:[%s212 + $0x78] sm:$0xff]
        %v237 = vld [vmem:[%s212 + $0x80] sm:$0xff]
        %v238 = vld [vmem:[%s212 + $0x88] sm:$0xff]
        %v239 = vld [vmem:[%s212 + $0x90] sm:$0xff]
        %v240 = vld [vmem:[%s212 + $0x98] sm:$0xff]
        %v241 = vld [vmem:[%s3] sm:$0x1]
        %243 = vset.pattern.permute.xlu0 0
        %244 = vperm.xlu0 %243, %v221
        %v245 = vpop.permute.xlu0 %244
        %248 = vset.pattern.permute.xlu0 0
        %249 = vperm.xlu0 %248, %v222
        %v250 = vpop.permute.xlu0 %249
        %253 = vset.pattern.permute.xlu0 0
        %254 = vperm.xlu0 %253, %v223
        %v255 = vpop.permute.xlu0 %254
        %258 = vset.pattern.permute.xlu0 0
        %259 = vperm.xlu0 %258, %v224
        %v260 = vpop.permute.xlu0 %259
        %263 = vset.pattern.permute.xlu0 0
        %264 = vperm.xlu0 %263, %v225
        %v265 = vpop.permute.xlu0 %264
        %268 = vset.pattern.permute.xlu0 0
        %269 = vperm.xlu0 %268, %v226
        %v270 = vpop.permute.xlu0 %269
        %273 = vset.pattern.permute.xlu0 0
        %274 = vperm.xlu0 %273, %v227
        %v275 = vpop.permute.xlu0 %274
        %278 = vset.pattern.permute.xlu0 0
        %279 = vperm.xlu0 %278, %v228
        %v280 = vpop.permute.xlu0 %279
        %283 = vset.pattern.permute.xlu0 0
        %284 = vperm.xlu0 %283, %v229
        %v285 = vpop.permute.xlu0 %284
        %288 = vset.pattern.permute.xlu0 0
        %289 = vperm.xlu0 %288, %v230
        %v290 = vpop.permute.xlu0 %289
        %293 = vset.pattern.permute.xlu0 0
        %294 = vperm.xlu0 %293, %v231
        %v295 = vpop.permute.xlu0 %294
        %298 = vset.pattern.permute.xlu0 0
        %299 = vperm.xlu0 %298, %v232
        %v300 = vpop.permute.xlu0 %299
        %303 = vset.pattern.permute.xlu0 0
        %304 = vperm.xlu0 %303, %v233
        %v305 = vpop.permute.xlu0 %304
        %308 = vset.pattern.permute.xlu0 0
        %309 = vperm.xlu0 %308, %v234
        %v310 = vpop.permute.xlu0 %309
        %313 = vset.pattern.permute.xlu0 0
        %314 = vperm.xlu0 %313, %v235
        %v315 = vpop.permute.xlu0 %314
        %318 = vset.pattern.permute.xlu0 0
        %319 = vperm.xlu0 %318, %v236
        %v320 = vpop.permute.xlu0 %319
        %323 = vset.pattern.permute.xlu0 0
        %324 = vperm.xlu0 %323, %v237
        %v325 = vpop.permute.xlu0 %324
        %328 = vset.pattern.permute.xlu0 0
        %329 = vperm.xlu0 %328, %v238
        %v330 = vpop.permute.xlu0 %329
        %333 = vset.pattern.permute.xlu0 0
        %334 = vperm.xlu0 %333, %v239
        %v335 = vpop.permute.xlu0 %334
        %338 = vset.pattern.permute.xlu0 0
        %339 = vperm.xlu0 %338, %v240
        %v340 = vpop.permute.xlu0 %339
        %v342 = vperm.slane %v241, 0
        %v343 = vmul.f32 %v245, %v342
        %v344 = vmul.f32 %v250, %v342
        %v345 = vmul.f32 %v255, %v342
        %v346 = vmul.f32 %v260, %v342
        %v347 = vmul.f32 %v265, %v342
        %v348 = vmul.f32 %v270, %v342
        %v349 = vmul.f32 %v275, %v342
        %v350 = vmul.f32 %v280, %v342
        %v351 = vmul.f32 %v285, %v342
        %v352 = vmul.f32 %v290, %v342
        %v353 = vmul.f32 %v295, %v342
        %v354 = vmul.f32 %v300, %v342
        %v355 = vmul.f32 %v305, %v342
        %v356 = vmul.f32 %v310, %v342
        %v357 = vmul.f32 %v315, %v342
        %v358 = vmul.f32 %v320, %v342
        %v359 = vmul.f32 %v325, %v342
        %v360 = vmul.f32 %v330, %v342
        %v361 = vmul.f32 %v335, %v342
        %v362 = vmul.f32 %v340, %v342
        %v363 = vld [vmem:[%s3 + $0x1] sm:$0x1]
        %v364 = vperm.slane %v363, 0
        %v365 = vadd.f32 %v343, %v364
        %v366 = vadd.f32 %v344, %v364
        %v367 = vadd.f32 %v345, %v364
        %v368 = vadd.f32 %v346, %v364
        %v369 = vadd.f32 %v347, %v364
        %v370 = vadd.f32 %v348, %v364
        %v371 = vadd.f32 %v349, %v364
        %v372 = vadd.f32 %v350, %v364
        %v373 = vadd.f32 %v351, %v364
        %v374 = vadd.f32 %v352, %v364
        %v375 = vadd.f32 %v353, %v364
        %v376 = vadd.f32 %v354, %v364
        %v377 = vadd.f32 %v355, %v364
        %v378 = vadd.f32 %v356, %v364
        %v379 = vadd.f32 %v357, %v364
        %v380 = vadd.f32 %v358, %v364
        %v381 = vadd.f32 %v359, %v364
        %v382 = vadd.f32 %v360, %v364
        %v383 = vadd.f32 %v361, %v364
        %v384 = vadd.f32 %v362, %v364
        %v385 = vand.u32 2147483647, %v365
        %vm386 = vcmp.le.f32.partialorder %v385, 0.7853982
        %vm387 = vcmp.lt.s32.totalorder %v365, 0
        %v388 = vand.u32 %v365, 2139095040
        %v389 = vshrl.u32 %v388, 23
        %v390 = vsub.s32 %v389, 127
        %v391 = vand.u32 2147483647, %v365
        %v392 = vand.u32 %v391, 8388607
        %v393 = vor.u32 %v392, 8388608
        %v394 = vsub.s32 0, %v393
        %v395 = vadd.s32 %v390, 1
        %vm396 = vcmp.gt.s32.totalorder %v395, 0
        %v397 = vsel %vm396, %v395, 0
        %v398 = vshrl.u32 %v397, 5
        %v399 = vand.u32 %v397, 31
        %v400 = vsub.s32 32, %v399
        %v401 = vshrl.u32 683565275, %v400
        %v402 = vshll.u32 683565275, %v399
        %v403 = vshrl.u32 2475754826, %v400
        %v404 = vor.u32 %v402, %v403
        %v405 = vshll.u32 2475754826, %v399
        %v406 = vshrl.u32 2131351028, %v400
        %v407 = vor.u32 %v405, %v406
        %v408 = vshll.u32 2131351028, %v399
        %v409 = vshrl.u32 2102212464, %v400
        %v410 = vor.u32 %v408, %v409
        %v411 = vshll.u32 2102212464, %v399
        %v412 = vshrl.u32 920167782, %v400
        %v413 = vor.u32 %v411, %v412
        %v414 = vshll.u32 920167782, %v399
        %v415 = vshrl.u32 1326507024, %v400
        %v416 = vor.u32 %v414, %v415
        %vm417 = vcmp.lt.s32.totalorder %v398, 1
        %vm418 = vcmp.lt.s32.totalorder %v398, 2
        %vm419 = vcmp.lt.s32.totalorder %v398, 3
        %vm420 = vcmp.lt.s32.totalorder %v398, 4
        %v421 = vsel %vm417, %v401, %v404
        %v422 = vsel %vm420, %v410, 2102212464
        %v423 = vsel %vm419, %v407, %v422
        %v424 = vsel %vm418, %v421, %v423
        %v425 = vsel %vm417, %v404, %v407
        %v426 = vsel %vm420, %v413, 920167782
        %v427 = vsel %vm419, %v410, %v426
        %v428 = vsel %vm418, %v425, %v427
        %v429 = vsel %vm417, %v407, %v410
        %v430 = vsel %vm420, %v416, 1326507024
        %v431 = vsel %vm419, %v413, %v430
        %v432 = vsel %vm418, %v429, %v431
        %v433 = vshll.u32 %v393, 8
        %v434 = vand.u32 %v433, 65535
        %v435 = vshrl.u32 %v433, 16
        %v436 = vand.u32 %v432, 65535
        %v437 = vshrl.u32 %v432, 16
        %v438 = vmul.u32 %v434, %v436
        %v439 = vmul.u32 %v434, %v437
        %v440 = vmul.u32 %v435, %v436
        %v441 = vmul.u32 %v435, %v437
        %v442 = vshll.u32 %v439, 16
        %v443 = vshrl.u32 %v439, 16
        %v444 = vshll.u32 %v440, 16
        %v445 = vshrl.u32 %v440, 16
        %vm446 = vc.u32 %v438, %v442
        %v447 = vsel %vm446, 1, 0
        %v448 = vadd.s32 %v438, %v442
        %v449 = vadd.s32 %v441, %v447
        %vm450 = vc.u32 %v448, %v444
        %v451 = vsel %vm450, 1, 0
        %v452 = vadd.s32 %v448, %v444
        %v453 = vadd.s32 %v449, %v451
        %v454 = vadd.s32 %v453, %v443
        %v455 = vadd.s32 %v454, %v445
        %v456 = vand.u32 %v433, 65535
        %v457 = vshrl.u32 %v433, 16
        %v458 = vand.u32 %v428, 65535
        %v459 = vshrl.u32 %v428, 16
        %v460 = vmul.u32 %v456, %v458
        %v461 = vmul.u32 %v456, %v459
        %v462 = vmul.u32 %v457, %v458
        %v463 = vmul.u32 %v457, %v459
        %v464 = vshll.u32 %v461, 16
        %v465 = vshrl.u32 %v461, 16
        %v466 = vshll.u32 %v462, 16
        %v467 = vshrl.u32 %v462, 16
        %vm468 = vc.u32 %v460, %v464
        %v469 = vsel %vm468, 1, 0
        %v470 = vadd.s32 %v460, %v464
        %v471 = vadd.s32 %v463, %v469
        %vm472 = vc.u32 %v470, %v466
        %v473 = vsel %vm472, 1, 0
        %v474 = vadd.s32 %v470, %v466
        %v475 = vadd.s32 %v471, %v473
        %v476 = vadd.s32 %v475, %v465
        %v477 = vadd.s32 %v476, %v467
        %v478 = vmul.u32 %v433, %v424
        %v479 = vadd.s32 %v455, %v474
        %vm480 = vc.u32 %v455, %v474
        %v481 = vadd.s32 %v477, 1
        %v482 = vsel %vm480, %v481, %v477
        %v483 = vadd.s32 %v478, %v482
        %v484 = vadd.s32 %v483, 536870912
        %v485 = vshrl.u32 %v484, 30
        %v486 = vshll.u32 %v485, 30
        %v487 = vsub.s32 %v483, %v486
        %vm488 = vcmp.lt.s32.totalorder %v487, 0
        %v489 = vsub.s32 0, %v487
        %v490 = vsel %vm488, %v489, %v487
        %v491 = vclz %v490
        %v492 = vsub.s32 %v491, 2
        %vm493 = vcmp.gt.s32.totalorder 0, %v492
        %v494 = vsel %vm493, 0, %v492
        %v495 = vsub.s32 32, %v494
        %v496 = vshll.u32 %v487, %v494
        %v497 = vshrl.u32 %v479, %v495
        %v498 = vor.u32 %v496, %v497
        %v499 = vsub.s32 4294967266, %v494
        %v500 = vadd.s32 %v499, 127
        %v501 = vshll.u32 %v500, 23
        %v502 = vor.u32 4788187, %v501
        %v503 = vand.u32 2147483647, %v502
        %v505 = vcvt.s32.f32 %v498
        %v506 = vmul.f32 %v505, %v503
        %v507 = vxor.u32 %v506, 2147483648
        %v508 = vsel %vm387, %v507, %v506
        %v509 = vsub.s32 4, %v485
        %v510 = vsel %vm387, %v509, %v485
        %v511 = vsel %vm386, %v365, %v508
        %v512 = vsel %vm386, 0, %v510
        %v513 = vmul.f32 %v511, %v511
        %v514 = vmul.f32 %v513, -0.001358992
        %v515 = vadd.f32 %v514, 0.041655596
        %v516 = vmul.f32 %v513, %v515
        %v517 = vadd.f32 %v516, -0.4999988
        %v518 = vmul.f32 %v513, %v517
        %v519 = vadd.f32 1.0, %v518
        %v520 = vmul.f32 %v511, %v511
        %v521 = vmul.f32 %v520, -0.00019511016
        %v522 = vadd.f32 %v521, 0.008332121
        %v523 = vmul.f32 %v520, %v522
        %v524 = vadd.f32 %v523, -0.16666654
        %v525 = vmul.f32 %v520, %v524
        %v526 = vadd.f32 %v525, 1.0
        %v527 = vmul.f32 %v526, %v511
        %vm528 = vweird.f32 %v365
        %v529 = vand.u32 %v512, 3
        %vm530 = vcmp.lt.s32.totalorder %v529, 2
        %vm531 = vcmp.eq.s32.totalorder %v529, 0
        %v532 = vxor.u32 %v527, 2147483648
        %v533 = vsel %vm531, %v519, %v532
        %vm534 = vcmp.eq.s32.totalorder %v529, 2
        %v535 = vxor.u32 %v519, 2147483648
        %v536 = vsel %vm534, %v535, %v527
        %v537 = vsel %vm530, %v533, %v536
        %v538 = vsel %vm528, nan, %v537
        %v539 = vand.u32 2147483647, %v366
        %vm540 = vcmp.le.f32.partialorder %v539, 0.7853982
        %vm541 = vcmp.lt.s32.totalorder %v366, 0
        %v542 = vand.u32 %v366, 2139095040
        %v543 = vshrl.u32 %v542, 23
        %v544 = vsub.s32 %v543, 127
        %v545 = vand.u32 2147483647, %v366
        %v546 = vand.u32 %v545, 8388607
        %v547 = vor.u32 %v546, 8388608
        %v548 = vsub.s32 0, %v547
        %v549 = vadd.s32 %v544, 1
        %vm550 = vcmp.gt.s32.totalorder %v549, 0
        %v551 = vsel %vm550, %v549, 0
        %v552 = vshrl.u32 %v551, 5
        %v553 = vand.u32 %v551, 31
        %v554 = vsub.s32 32, %v553
        %v555 = vshrl.u32 683565275, %v554
        %v556 = vshll.u32 683565275, %v553
        %v557 = vshrl.u32 2475754826, %v554
        %v558 = vor.u32 %v556, %v557
        %v559 = vshll.u32 2475754826, %v553
        %v560 = vshrl.u32 2131351028, %v554
        %v561 = vor.u32 %v559, %v560
        %v562 = vshll.u32 2131351028, %v553
        %v563 = vshrl.u32 2102212464, %v554
        %v564 = vor.u32 %v562, %v563
        %v565 = vshll.u32 2102212464, %v553
        %v566 = vshrl.u32 920167782, %v554
        %v567 = vor.u32 %v565, %v566
        %v568 = vshll.u32 920167782, %v553
        %v569 = vshrl.u32 1326507024, %v554
        %v570 = vor.u32 %v568, %v569
        %vm571 = vcmp.lt.s32.totalorder %v552, 1
        %vm572 = vcmp.lt.s32.totalorder %v552, 2
        %vm573 = vcmp.lt.s32.totalorder %v552, 3
        %vm574 = vcmp.lt.s32.totalorder %v552, 4
        %v575 = vsel %vm571, %v555, %v558
        %v576 = vsel %vm574, %v564, 2102212464
        %v577 = vsel %vm573, %v561, %v576
        %v578 = vsel %vm572, %v575, %v577
        %v579 = vsel %vm571, %v558, %v561
        %v580 = vsel %vm574, %v567, 920167782
        %v581 = vsel %vm573, %v564, %v580
        %v582 = vsel %vm572, %v579, %v581
        %v583 = vsel %vm571, %v561, %v564
        %v584 = vsel %vm574, %v570, 1326507024
        %v585 = vsel %vm573, %v567, %v584
        %v586 = vsel %vm572, %v583, %v585
        %v587 = vshll.u32 %v547, 8
        %v588 = vand.u32 %v587, 65535
        %v589 = vshrl.u32 %v587, 16
        %v590 = vand.u32 %v586, 65535
        %v591 = vshrl.u32 %v586, 16
        %v592 = vmul.u32 %v588, %v590
        %v593 = vmul.u32 %v588, %v591
        %v594 = vmul.u32 %v589, %v590
        %v595 = vmul.u32 %v589, %v591
        %v596 = vshll.u32 %v593, 16
        %v597 = vshrl.u32 %v593, 16
        %v598 = vshll.u32 %v594, 16
        %v599 = vshrl.u32 %v594, 16
        %vm600 = vc.u32 %v592, %v596
        %v601 = vsel %vm600, 1, 0
        %v602 = vadd.s32 %v592, %v596
        %v603 = vadd.s32 %v595, %v601
        %vm604 = vc.u32 %v602, %v598
        %v605 = vsel %vm604, 1, 0
        %v606 = vadd.s32 %v602, %v598
        %v607 = vadd.s32 %v603, %v605
        %v608 = vadd.s32 %v607, %v597
        %v609 = vadd.s32 %v608, %v599
        %v610 = vand.u32 %v587, 65535
        %v611 = vshrl.u32 %v587, 16
        %v612 = vand.u32 %v582, 65535
        %v613 = vshrl.u32 %v582, 16
        %v614 = vmul.u32 %v610, %v612
        %v615 = vmul.u32 %v610, %v613
        %v616 = vmul.u32 %v611, %v612
        %v617 = vmul.u32 %v611, %v613
        %v618 = vshll.u32 %v615, 16
        %v619 = vshrl.u32 %v615, 16
        %v620 = vshll.u32 %v616, 16
        %v621 = vshrl.u32 %v616, 16
        %vm622 = vc.u32 %v614, %v618
        %v623 = vsel %vm622, 1, 0
        %v624 = vadd.s32 %v614, %v618
        %v625 = vadd.s32 %v617, %v623
        %vm626 = vc.u32 %v624, %v620
        %v627 = vsel %vm626, 1, 0
        %v628 = vadd.s32 %v624, %v620
        %v629 = vadd.s32 %v625, %v627
        %v630 = vadd.s32 %v629, %v619
        %v631 = vadd.s32 %v630, %v621
        %v632 = vmul.u32 %v587, %v578
        %v633 = vadd.s32 %v609, %v628
        %vm634 = vc.u32 %v609, %v628
        %v635 = vadd.s32 %v631, 1
        %v636 = vsel %vm634, %v635, %v631
        %v637 = vadd.s32 %v632, %v636
        %v638 = vadd.s32 %v637, 536870912
        %v639 = vshrl.u32 %v638, 30
        %v640 = vshll.u32 %v639, 30
        %v641 = vsub.s32 %v637, %v640
        %vm642 = vcmp.lt.s32.totalorder %v641, 0
        %v643 = vsub.s32 0, %v641
        %v644 = vsel %vm642, %v643, %v641
        %v645 = vclz %v644
        %v646 = vsub.s32 %v645, 2
        %vm647 = vcmp.gt.s32.totalorder 0, %v646
        %v648 = vsel %vm647, 0, %v646
        %v649 = vsub.s32 32, %v648
        %v650 = vshll.u32 %v641, %v648
        %v651 = vshrl.u32 %v633, %v649
        %v652 = vor.u32 %v650, %v651
        %v653 = vsub.s32 4294967266, %v648
        %v654 = vadd.s32 %v653, 127
        %v655 = vshll.u32 %v654, 23
        %v656 = vor.u32 4788187, %v655
        %v657 = vand.u32 2147483647, %v656
        %v659 = vcvt.s32.f32 %v652
        %v660 = vmul.f32 %v659, %v657
        %v661 = vxor.u32 %v660, 2147483648
        %v662 = vsel %vm541, %v661, %v660
        %v663 = vsub.s32 4, %v639
        %v664 = vsel %vm541, %v663, %v639
        %v665 = vsel %vm540, %v366, %v662
        %v666 = vsel %vm540, 0, %v664
        %v667 = vmul.f32 %v665, %v665
        %v668 = vmul.f32 %v667, -0.001358992
        %v669 = vadd.f32 %v668, 0.041655596
        %v670 = vmul.f32 %v667, %v669
        %v671 = vadd.f32 %v670, -0.4999988
        %v672 = vmul.f32 %v667, %v671
        %v673 = vadd.f32 1.0, %v672
        %v674 = vmul.f32 %v665, %v665
        %v675 = vmul.f32 %v674, -0.00019511016
        %v676 = vadd.f32 %v675, 0.008332121
        %v677 = vmul.f32 %v674, %v676
        %v678 = vadd.f32 %v677, -0.16666654
        %v679 = vmul.f32 %v674, %v678
        %v680 = vadd.f32 %v679, 1.0
        %v681 = vmul.f32 %v680, %v665
        %vm682 = vweird.f32 %v366
        %v683 = vand.u32 %v666, 3
        %vm684 = vcmp.lt.s32.totalorder %v683, 2
        %vm685 = vcmp.eq.s32.totalorder %v683, 0
        %v686 = vxor.u32 %v681, 2147483648
        %v687 = vsel %vm685, %v673, %v686
        %vm688 = vcmp.eq.s32.totalorder %v683, 2
        %v689 = vxor.u32 %v673, 2147483648
        %v690 = vsel %vm688, %v689, %v681
        %v691 = vsel %vm684, %v687, %v690
        %v692 = vsel %vm682, nan, %v691
        %v693 = vand.u32 2147483647, %v367
        %vm694 = vcmp.le.f32.partialorder %v693, 0.7853982
        %vm695 = vcmp.lt.s32.totalorder %v367, 0
        %v696 = vand.u32 %v367, 2139095040
        %v697 = vshrl.u32 %v696, 23
        %v698 = vsub.s32 %v697, 127
        %v699 = vand.u32 2147483647, %v367
        %v700 = vand.u32 %v699, 8388607
        %v701 = vor.u32 %v700, 8388608
        %v702 = vsub.s32 0, %v701
        %v703 = vadd.s32 %v698, 1
        %vm704 = vcmp.gt.s32.totalorder %v703, 0
        %v705 = vsel %vm704, %v703, 0
        %v706 = vshrl.u32 %v705, 5
        %v707 = vand.u32 %v705, 31
        %v708 = vsub.s32 32, %v707
        %v709 = vshrl.u32 683565275, %v708
        %v710 = vshll.u32 683565275, %v707
        %v711 = vshrl.u32 2475754826, %v708
        %v712 = vor.u32 %v710, %v711
        %v713 = vshll.u32 2475754826, %v707
        %v714 = vshrl.u32 2131351028, %v708
        %v715 = vor.u32 %v713, %v714
        %v716 = vshll.u32 2131351028, %v707
        %v717 = vshrl.u32 2102212464, %v708
        %v718 = vor.u32 %v716, %v717
        %v719 = vshll.u32 2102212464, %v707
        %v720 = vshrl.u32 920167782, %v708
        %v721 = vor.u32 %v719, %v720
        %v722 = vshll.u32 920167782, %v707
        %v723 = vshrl.u32 1326507024, %v708
        %v724 = vor.u32 %v722, %v723
        %vm725 = vcmp.lt.s32.totalorder %v706, 1
        %vm726 = vcmp.lt.s32.totalorder %v706, 2
        %vm727 = vcmp.lt.s32.totalorder %v706, 3
        %vm728 = vcmp.lt.s32.totalorder %v706, 4
        %v729 = vsel %vm725, %v709, %v712
        %v730 = vsel %vm728, %v718, 2102212464
        %v731 = vsel %vm727, %v715, %v730
        %v732 = vsel %vm726, %v729, %v731
        %v733 = vsel %vm725, %v712, %v715
        %v734 = vsel %vm728, %v721, 920167782
        %v735 = vsel %vm727, %v718, %v734
        %v736 = vsel %vm726, %v733, %v735
        %v737 = vsel %vm725, %v715, %v718
        %v738 = vsel %vm728, %v724, 1326507024
        %v739 = vsel %vm727, %v721, %v738
        %v740 = vsel %vm726, %v737, %v739
        %v741 = vshll.u32 %v701, 8
        %v742 = vand.u32 %v741, 65535
        %v743 = vshrl.u32 %v741, 16
        %v744 = vand.u32 %v740, 65535
        %v745 = vshrl.u32 %v740, 16
        %v746 = vmul.u32 %v742, %v744
        %v747 = vmul.u32 %v742, %v745
        %v748 = vmul.u32 %v743, %v744
        %v749 = vmul.u32 %v743, %v745
        %v750 = vshll.u32 %v747, 16
        %v751 = vshrl.u32 %v747, 16
        %v752 = vshll.u32 %v748, 16
        %v753 = vshrl.u32 %v748, 16
        %vm754 = vc.u32 %v746, %v750
        %v755 = vsel %vm754, 1, 0
        %v756 = vadd.s32 %v746, %v750
        %v757 = vadd.s32 %v749, %v755
        %vm758 = vc.u32 %v756, %v752
        %v759 = vsel %vm758, 1, 0
        %v760 = vadd.s32 %v756, %v752
        %v761 = vadd.s32 %v757, %v759
        %v762 = vadd.s32 %v761, %v751
        %v763 = vadd.s32 %v762, %v753
        %v764 = vand.u32 %v741, 65535
        %v765 = vshrl.u32 %v741, 16
        %v766 = vand.u32 %v736, 65535
        %v767 = vshrl.u32 %v736, 16
        %v768 = vmul.u32 %v764, %v766
        %v769 = vmul.u32 %v764, %v767
        %v770 = vmul.u32 %v765, %v766
        %v771 = vmul.u32 %v765, %v767
        %v772 = vshll.u32 %v769, 16
        %v773 = vshrl.u32 %v769, 16
        %v774 = vshll.u32 %v770, 16
        %v775 = vshrl.u32 %v770, 16
        %vm776 = vc.u32 %v768, %v772
        %v777 = vsel %vm776, 1, 0
        %v778 = vadd.s32 %v768, %v772
        %v779 = vadd.s32 %v771, %v777
        %vm780 = vc.u32 %v778, %v774
        %v781 = vsel %vm780, 1, 0
        %v782 = vadd.s32 %v778, %v774
        %v783 = vadd.s32 %v779, %v781
        %v784 = vadd.s32 %v783, %v773
        %v785 = vadd.s32 %v784, %v775
        %v786 = vmul.u32 %v741, %v732
        %v787 = vadd.s32 %v763, %v782
        %vm788 = vc.u32 %v763, %v782
        %v789 = vadd.s32 %v785, 1
        %v790 = vsel %vm788, %v789, %v785
        %v791 = vadd.s32 %v786, %v790
        %v792 = vadd.s32 %v791, 536870912
        %v793 = vshrl.u32 %v792, 30
        %v794 = vshll.u32 %v793, 30
        %v795 = vsub.s32 %v791, %v794
        %vm796 = vcmp.lt.s32.totalorder %v795, 0
        %v797 = vsub.s32 0, %v795
        %v798 = vsel %vm796, %v797, %v795
        %v799 = vclz %v798
        %v800 = vsub.s32 %v799, 2
        %vm801 = vcmp.gt.s32.totalorder 0, %v800
        %v802 = vsel %vm801, 0, %v800
        %v803 = vsub.s32 32, %v802
        %v804 = vshll.u32 %v795, %v802
        %v805 = vshrl.u32 %v787, %v803
        %v806 = vor.u32 %v804, %v805
        %v807 = vsub.s32 4294967266, %v802
        %v808 = vadd.s32 %v807, 127
        %v809 = vshll.u32 %v808, 23
        %v810 = vor.u32 4788187, %v809
        %v811 = vand.u32 2147483647, %v810
        %v813 = vcvt.s32.f32 %v806
        %v814 = vmul.f32 %v813, %v811
        %v815 = vxor.u32 %v814, 2147483648
        %v816 = vsel %vm695, %v815, %v814
        %v817 = vsub.s32 4, %v793
        %v818 = vsel %vm695, %v817, %v793
        %v819 = vsel %vm694, %v367, %v816
        %v820 = vsel %vm694, 0, %v818
        %v821 = vmul.f32 %v819, %v819
        %v822 = vmul.f32 %v821, -0.001358992
        %v823 = vadd.f32 %v822, 0.041655596
        %v824 = vmul.f32 %v821, %v823
        %v825 = vadd.f32 %v824, -0.4999988
        %v826 = vmul.f32 %v821, %v825
        %v827 = vadd.f32 1.0, %v826
        %v828 = vmul.f32 %v819, %v819
        %v829 = vmul.f32 %v828, -0.00019511016
        %v830 = vadd.f32 %v829, 0.008332121
        %v831 = vmul.f32 %v828, %v830
        %v832 = vadd.f32 %v831, -0.16666654
        %v833 = vmul.f32 %v828, %v832
        %v834 = vadd.f32 %v833, 1.0
        %v835 = vmul.f32 %v834, %v819
        %vm836 = vweird.f32 %v367
        %v837 = vand.u32 %v820, 3
        %vm838 = vcmp.lt.s32.totalorder %v837, 2
        %vm839 = vcmp.eq.s32.totalorder %v837, 0
        %v840 = vxor.u32 %v835, 2147483648
        %v841 = vsel %vm839, %v827, %v840
        %vm842 = vcmp.eq.s32.totalorder %v837, 2
        %v843 = vxor.u32 %v827, 2147483648
        %v844 = vsel %vm842, %v843, %v835
        %v845 = vsel %vm838, %v841, %v844
        %v846 = vsel %vm836, nan, %v845
        %v847 = vand.u32 2147483647, %v368
        %vm848 = vcmp.le.f32.partialorder %v847, 0.7853982
        %vm849 = vcmp.lt.s32.totalorder %v368, 0
        %v850 = vand.u32 %v368, 2139095040
        %v851 = vshrl.u32 %v850, 23
        %v852 = vsub.s32 %v851, 127
        %v853 = vand.u32 2147483647, %v368
        %v854 = vand.u32 %v853, 8388607
        %v855 = vor.u32 %v854, 8388608
        %v856 = vsub.s32 0, %v855
        %v857 = vadd.s32 %v852, 1
        %vm858 = vcmp.gt.s32.totalorder %v857, 0
        %v859 = vsel %vm858, %v857, 0
        %v860 = vshrl.u32 %v859, 5
        %v861 = vand.u32 %v859, 31
        %v862 = vsub.s32 32, %v861
        %v863 = vshrl.u32 683565275, %v862
        %v864 = vshll.u32 683565275, %v861
        %v865 = vshrl.u32 2475754826, %v862
        %v866 = vor.u32 %v864, %v865
        %v867 = vshll.u32 2475754826, %v861
        %v868 = vshrl.u32 2131351028, %v862
        %v869 = vor.u32 %v867, %v868
        %v870 = vshll.u32 2131351028, %v861
        %v871 = vshrl.u32 2102212464, %v862
        %v872 = vor.u32 %v870, %v871
        %v873 = vshll.u32 2102212464, %v861
        %v874 = vshrl.u32 920167782, %v862
        %v875 = vor.u32 %v873, %v874
        %v876 = vshll.u32 920167782, %v861
        %v877 = vshrl.u32 1326507024, %v862
        %v878 = vor.u32 %v876, %v877
        %vm879 = vcmp.lt.s32.totalorder %v860, 1
        %vm880 = vcmp.lt.s32.totalorder %v860, 2
        %vm881 = vcmp.lt.s32.totalorder %v860, 3
        %vm882 = vcmp.lt.s32.totalorder %v860, 4
        %v883 = vsel %vm879, %v863, %v866
        %v884 = vsel %vm882, %v872, 2102212464
        %v885 = vsel %vm881, %v869, %v884
        %v886 = vsel %vm880, %v883, %v885
        %v887 = vsel %vm879, %v866, %v869
        %v888 = vsel %vm882, %v875, 920167782
        %v889 = vsel %vm881, %v872, %v888
        %v890 = vsel %vm880, %v887, %v889
        %v891 = vsel %vm879, %v869, %v872
        %v892 = vsel %vm882, %v878, 1326507024
        %v893 = vsel %vm881, %v875, %v892
        %v894 = vsel %vm880, %v891, %v893
        %v895 = vshll.u32 %v855, 8
        %v896 = vand.u32 %v895, 65535
        %v897 = vshrl.u32 %v895, 16
        %v898 = vand.u32 %v894, 65535
        %v899 = vshrl.u32 %v894, 16
        %v900 = vmul.u32 %v896, %v898
        %v901 = vmul.u32 %v896, %v899
        %v902 = vmul.u32 %v897, %v898
        %v903 = vmul.u32 %v897, %v899
        %v904 = vshll.u32 %v901, 16
        %v905 = vshrl.u32 %v901, 16
        %v906 = vshll.u32 %v902, 16
        %v907 = vshrl.u32 %v902, 16
        %vm908 = vc.u32 %v900, %v904
        %v909 = vsel %vm908, 1, 0
        %v910 = vadd.s32 %v900, %v904
        %v911 = vadd.s32 %v903, %v909
        %vm912 = vc.u32 %v910, %v906
        %v913 = vsel %vm912, 1, 0
        %v914 = vadd.s32 %v910, %v906
        %v915 = vadd.s32 %v911, %v913
        %v916 = vadd.s32 %v915, %v905
        %v917 = vadd.s32 %v916, %v907
        %v918 = vand.u32 %v895, 65535
        %v919 = vshrl.u32 %v895, 16
        %v920 = vand.u32 %v890, 65535
        %v921 = vshrl.u32 %v890, 16
        %v922 = vmul.u32 %v918, %v920
        %v923 = vmul.u32 %v918, %v921
        %v924 = vmul.u32 %v919, %v920
        %v925 = vmul.u32 %v919, %v921
        %v926 = vshll.u32 %v923, 16
        %v927 = vshrl.u32 %v923, 16
        %v928 = vshll.u32 %v924, 16
        %v929 = vshrl.u32 %v924, 16
        %vm930 = vc.u32 %v922, %v926
        %v931 = vsel %vm930, 1, 0
        %v932 = vadd.s32 %v922, %v926
        %v933 = vadd.s32 %v925, %v931
        %vm934 = vc.u32 %v932, %v928
        %v935 = vsel %vm934, 1, 0
        %v936 = vadd.s32 %v932, %v928
        %v937 = vadd.s32 %v933, %v935
        %v938 = vadd.s32 %v937, %v927
        %v939 = vadd.s32 %v938, %v929
        %v940 = vmul.u32 %v895, %v886
        %v941 = vadd.s32 %v917, %v936
        %vm942 = vc.u32 %v917, %v936
        %v943 = vadd.s32 %v939, 1
        %v944 = vsel %vm942, %v943, %v939
        %v945 = vadd.s32 %v940, %v944
        %v946 = vadd.s32 %v945, 536870912
        %v947 = vshrl.u32 %v946, 30
        %v948 = vshll.u32 %v947, 30
        %v949 = vsub.s32 %v945, %v948
        %vm950 = vcmp.lt.s32.totalorder %v949, 0
        %v951 = vsub.s32 0, %v949
        %v952 = vsel %vm950, %v951, %v949
        %v953 = vclz %v952
        %v954 = vsub.s32 %v953, 2
        %vm955 = vcmp.gt.s32.totalorder 0, %v954
        %v956 = vsel %vm955, 0, %v954
        %v957 = vsub.s32 32, %v956
        %v958 = vshll.u32 %v949, %v956
        %v959 = vshrl.u32 %v941, %v957
        %v960 = vor.u32 %v958, %v959
        %v961 = vsub.s32 4294967266, %v956
        %v962 = vadd.s32 %v961, 127
        %v963 = vshll.u32 %v962, 23
        %v964 = vor.u32 4788187, %v963
        %v965 = vand.u32 2147483647, %v964
        %v967 = vcvt.s32.f32 %v960
        %v968 = vmul.f32 %v967, %v965
        %v969 = vxor.u32 %v968, 2147483648
        %v970 = vsel %vm849, %v969, %v968
        %v971 = vsub.s32 4, %v947
        %v972 = vsel %vm849, %v971, %v947
        %v973 = vsel %vm848, %v368, %v970
        %v974 = vsel %vm848, 0, %v972
        %v975 = vmul.f32 %v973, %v973
        %v976 = vmul.f32 %v975, -0.001358992
        %v977 = vadd.f32 %v976, 0.041655596
        %v978 = vmul.f32 %v975, %v977
        %v979 = vadd.f32 %v978, -0.4999988
        %v980 = vmul.f32 %v975, %v979
        %v981 = vadd.f32 1.0, %v980
        %v982 = vmul.f32 %v973, %v973
        %v983 = vmul.f32 %v982, -0.00019511016
        %v984 = vadd.f32 %v983, 0.008332121
        %v985 = vmul.f32 %v982, %v984
        %v986 = vadd.f32 %v985, -0.16666654
        %v987 = vmul.f32 %v982, %v986
        %v988 = vadd.f32 %v987, 1.0
        %v989 = vmul.f32 %v988, %v973
        %vm990 = vweird.f32 %v368
        %v991 = vand.u32 %v974, 3
        %vm992 = vcmp.lt.s32.totalorder %v991, 2
        %vm993 = vcmp.eq.s32.totalorder %v991, 0
        %v994 = vxor.u32 %v989, 2147483648
        %v995 = vsel %vm993, %v981, %v994
        %vm996 = vcmp.eq.s32.totalorder %v991, 2
        %v997 = vxor.u32 %v981, 2147483648
        %v998 = vsel %vm996, %v997, %v989
        %v999 = vsel %vm992, %v995, %v998
        %v1000 = vsel %vm990, nan, %v999
        %v1001 = vand.u32 2147483647, %v369
        %vm1002 = vcmp.le.f32.partialorder %v1001, 0.7853982
        %vm1003 = vcmp.lt.s32.totalorder %v369, 0
        %v1004 = vand.u32 %v369, 2139095040
        %v1005 = vshrl.u32 %v1004, 23
        %v1006 = vsub.s32 %v1005, 127
        %v1007 = vand.u32 2147483647, %v369
        %v1008 = vand.u32 %v1007, 8388607
        %v1009 = vor.u32 %v1008, 8388608
        %v1010 = vsub.s32 0, %v1009
        %v1011 = vadd.s32 %v1006, 1
        %vm1012 = vcmp.gt.s32.totalorder %v1011, 0
        %v1013 = vsel %vm1012, %v1011, 0
        %v1014 = vshrl.u32 %v1013, 5
        %v1015 = vand.u32 %v1013, 31
        %v1016 = vsub.s32 32, %v1015
        %v1017 = vshrl.u32 683565275, %v1016
        %v1018 = vshll.u32 683565275, %v1015
        %v1019 = vshrl.u32 2475754826, %v1016
        %v1020 = vor.u32 %v1018, %v1019
        %v1021 = vshll.u32 2475754826, %v1015
        %v1022 = vshrl.u32 2131351028, %v1016
        %v1023 = vor.u32 %v1021, %v1022
        %v1024 = vshll.u32 2131351028, %v1015
        %v1025 = vshrl.u32 2102212464, %v1016
        %v1026 = vor.u32 %v1024, %v1025
        %v1027 = vshll.u32 2102212464, %v1015
        %v1028 = vshrl.u32 920167782, %v1016
        %v1029 = vor.u32 %v1027, %v1028
        %v1030 = vshll.u32 920167782, %v1015
        %v1031 = vshrl.u32 1326507024, %v1016
        %v1032 = vor.u32 %v1030, %v1031
        %vm1033 = vcmp.lt.s32.totalorder %v1014, 1
        %vm1034 = vcmp.lt.s32.totalorder %v1014, 2
        %vm1035 = vcmp.lt.s32.totalorder %v1014, 3
        %vm1036 = vcmp.lt.s32.totalorder %v1014, 4
        %v1037 = vsel %vm1033, %v1017, %v1020
        %v1038 = vsel %vm1036, %v1026, 2102212464
        %v1039 = vsel %vm1035, %v1023, %v1038
        %v1040 = vsel %vm1034, %v1037, %v1039
        %v1041 = vsel %vm1033, %v1020, %v1023
        %v1042 = vsel %vm1036, %v1029, 920167782
        %v1043 = vsel %vm1035, %v1026, %v1042
        %v1044 = vsel %vm1034, %v1041, %v1043
        %v1045 = vsel %vm1033, %v1023, %v1026
        %v1046 = vsel %vm1036, %v1032, 1326507024
        %v1047 = vsel %vm1035, %v1029, %v1046
        %v1048 = vsel %vm1034, %v1045, %v1047
        %v1049 = vshll.u32 %v1009, 8
        %v1050 = vand.u32 %v1049, 65535
        %v1051 = vshrl.u32 %v1049, 16
        %v1052 = vand.u32 %v1048, 65535
        %v1053 = vshrl.u32 %v1048, 16
        %v1054 = vmul.u32 %v1050, %v1052
        %v1055 = vmul.u32 %v1050, %v1053
        %v1056 = vmul.u32 %v1051, %v1052
        %v1057 = vmul.u32 %v1051, %v1053
        %v1058 = vshll.u32 %v1055, 16
        %v1059 = vshrl.u32 %v1055, 16
        %v1060 = vshll.u32 %v1056, 16
        %v1061 = vshrl.u32 %v1056, 16
        %vm1062 = vc.u32 %v1054, %v1058
        %v1063 = vsel %vm1062, 1, 0
        %v1064 = vadd.s32 %v1054, %v1058
        %v1065 = vadd.s32 %v1057, %v1063
        %vm1066 = vc.u32 %v1064, %v1060
        %v1067 = vsel %vm1066, 1, 0
        %v1068 = vadd.s32 %v1064, %v1060
        %v1069 = vadd.s32 %v1065, %v1067
        %v1070 = vadd.s32 %v1069, %v1059
        %v1071 = vadd.s32 %v1070, %v1061
        %v1072 = vand.u32 %v1049, 65535
        %v1073 = vshrl.u32 %v1049, 16
        %v1074 = vand.u32 %v1044, 65535
        %v1075 = vshrl.u32 %v1044, 16
        %v1076 = vmul.u32 %v1072, %v1074
        %v1077 = vmul.u32 %v1072, %v1075
        %v1078 = vmul.u32 %v1073, %v1074
        %v1079 = vmul.u32 %v1073, %v1075
        %v1080 = vshll.u32 %v1077, 16
        %v1081 = vshrl.u32 %v1077, 16
        %v1082 = vshll.u32 %v1078, 16
        %v1083 = vshrl.u32 %v1078, 16
        %vm1084 = vc.u32 %v1076, %v1080
        %v1085 = vsel %vm1084, 1, 0
        %v1086 = vadd.s32 %v1076, %v1080
        %v1087 = vadd.s32 %v1079, %v1085
        %vm1088 = vc.u32 %v1086, %v1082
        %v1089 = vsel %vm1088, 1, 0
        %v1090 = vadd.s32 %v1086, %v1082
        %v1091 = vadd.s32 %v1087, %v1089
        %v1092 = vadd.s32 %v1091, %v1081
        %v1093 = vadd.s32 %v1092, %v1083
        %v1094 = vmul.u32 %v1049, %v1040
        %v1095 = vadd.s32 %v1071, %v1090
        %vm1096 = vc.u32 %v1071, %v1090
        %v1097 = vadd.s32 %v1093, 1
        %v1098 = vsel %vm1096, %v1097, %v1093
        %v1099 = vadd.s32 %v1094, %v1098
        %v1100 = vadd.s32 %v1099, 536870912
        %v1101 = vshrl.u32 %v1100, 30
        %v1102 = vshll.u32 %v1101, 30
        %v1103 = vsub.s32 %v1099, %v1102
        %vm1104 = vcmp.lt.s32.totalorder %v1103, 0
        %v1105 = vsub.s32 0, %v1103
        %v1106 = vsel %vm1104, %v1105, %v1103
        %v1107 = vclz %v1106
        %v1108 = vsub.s32 %v1107, 2
        %vm1109 = vcmp.gt.s32.totalorder 0, %v1108
        %v1110 = vsel %vm1109, 0, %v1108
        %v1111 = vsub.s32 32, %v1110
        %v1112 = vshll.u32 %v1103, %v1110
        %v1113 = vshrl.u32 %v1095, %v1111
        %v1114 = vor.u32 %v1112, %v1113
        %v1115 = vsub.s32 4294967266, %v1110
        %v1116 = vadd.s32 %v1115, 127
        %v1117 = vshll.u32 %v1116, 23
        %v1118 = vor.u32 4788187, %v1117
        %v1119 = vand.u32 2147483647, %v1118
        %v1121 = vcvt.s32.f32 %v1114
        %v1122 = vmul.f32 %v1121, %v1119
        %v1123 = vxor.u32 %v1122, 2147483648
        %v1124 = vsel %vm1003, %v1123, %v1122
        %v1125 = vsub.s32 4, %v1101
        %v1126 = vsel %vm1003, %v1125, %v1101
        %v1127 = vsel %vm1002, %v369, %v1124
        %v1128 = vsel %vm1002, 0, %v1126
        %v1129 = vmul.f32 %v1127, %v1127
        %v1130 = vmul.f32 %v1129, -0.001358992
        %v1131 = vadd.f32 %v1130, 0.041655596
        %v1132 = vmul.f32 %v1129, %v1131
        %v1133 = vadd.f32 %v1132, -0.4999988
        %v1134 = vmul.f32 %v1129, %v1133
        %v1135 = vadd.f32 1.0, %v1134
        %v1136 = vmul.f32 %v1127, %v1127
        %v1137 = vmul.f32 %v1136, -0.00019511016
        %v1138 = vadd.f32 %v1137, 0.008332121
        %v1139 = vmul.f32 %v1136, %v1138
        %v1140 = vadd.f32 %v1139, -0.16666654
        %v1141 = vmul.f32 %v1136, %v1140
        %v1142 = vadd.f32 %v1141, 1.0
        %v1143 = vmul.f32 %v1142, %v1127
        %vm1144 = vweird.f32 %v369
        %v1145 = vand.u32 %v1128, 3
        %vm1146 = vcmp.lt.s32.totalorder %v1145, 2
        %vm1147 = vcmp.eq.s32.totalorder %v1145, 0
        %v1148 = vxor.u32 %v1143, 2147483648
        %v1149 = vsel %vm1147, %v1135, %v1148
        %vm1150 = vcmp.eq.s32.totalorder %v1145, 2
        %v1151 = vxor.u32 %v1135, 2147483648
        %v1152 = vsel %vm1150, %v1151, %v1143
        %v1153 = vsel %vm1146, %v1149, %v1152
        %v1154 = vsel %vm1144, nan, %v1153
        %v1155 = vand.u32 2147483647, %v370
        %vm1156 = vcmp.le.f32.partialorder %v1155, 0.7853982
        %vm1157 = vcmp.lt.s32.totalorder %v370, 0
        %v1158 = vand.u32 %v370, 2139095040
        %v1159 = vshrl.u32 %v1158, 23
        %v1160 = vsub.s32 %v1159, 127
        %v1161 = vand.u32 2147483647, %v370
        %v1162 = vand.u32 %v1161, 8388607
        %v1163 = vor.u32 %v1162, 8388608
        %v1164 = vsub.s32 0, %v1163
        %v1165 = vadd.s32 %v1160, 1
        %vm1166 = vcmp.gt.s32.totalorder %v1165, 0
        %v1167 = vsel %vm1166, %v1165, 0
        %v1168 = vshrl.u32 %v1167, 5
        %v1169 = vand.u32 %v1167, 31
        %v1170 = vsub.s32 32, %v1169
        %v1171 = vshrl.u32 683565275, %v1170
        %v1172 = vshll.u32 683565275, %v1169
        %v1173 = vshrl.u32 2475754826, %v1170
        %v1174 = vor.u32 %v1172, %v1173
        %v1175 = vshll.u32 2475754826, %v1169
        %v1176 = vshrl.u32 2131351028, %v1170
        %v1177 = vor.u32 %v1175, %v1176
        %v1178 = vshll.u32 2131351028, %v1169
        %v1179 = vshrl.u32 2102212464, %v1170
        %v1180 = vor.u32 %v1178, %v1179
        %v1181 = vshll.u32 2102212464, %v1169
        %v1182 = vshrl.u32 920167782, %v1170
        %v1183 = vor.u32 %v1181, %v1182
        %v1184 = vshll.u32 920167782, %v1169
        %v1185 = vshrl.u32 1326507024, %v1170
        %v1186 = vor.u32 %v1184, %v1185
        %vm1187 = vcmp.lt.s32.totalorder %v1168, 1
        %vm1188 = vcmp.lt.s32.totalorder %v1168, 2
        %vm1189 = vcmp.lt.s32.totalorder %v1168, 3
        %vm1190 = vcmp.lt.s32.totalorder %v1168, 4
        %v1191 = vsel %vm1187, %v1171, %v1174
        %v1192 = vsel %vm1190, %v1180, 2102212464
        %v1193 = vsel %vm1189, %v1177, %v1192
        %v1194 = vsel %vm1188, %v1191, %v1193
        %v1195 = vsel %vm1187, %v1174, %v1177
        %v1196 = vsel %vm1190, %v1183, 920167782
        %v1197 = vsel %vm1189, %v1180, %v1196
        %v1198 = vsel %vm1188, %v1195, %v1197
        %v1199 = vsel %vm1187, %v1177, %v1180
        %v1200 = vsel %vm1190, %v1186, 1326507024
        %v1201 = vsel %vm1189, %v1183, %v1200
        %v1202 = vsel %vm1188, %v1199, %v1201
        %v1203 = vshll.u32 %v1163, 8
        %v1204 = vand.u32 %v1203, 65535
        %v1205 = vshrl.u32 %v1203, 16
        %v1206 = vand.u32 %v1202, 65535
        %v1207 = vshrl.u32 %v1202, 16
        %v1208 = vmul.u32 %v1204, %v1206
        %v1209 = vmul.u32 %v1204, %v1207
        %v1210 = vmul.u32 %v1205, %v1206
        %v1211 = vmul.u32 %v1205, %v1207
        %v1212 = vshll.u32 %v1209, 16
        %v1213 = vshrl.u32 %v1209, 16
        %v1214 = vshll.u32 %v1210, 16
        %v1215 = vshrl.u32 %v1210, 16
        %vm1216 = vc.u32 %v1208, %v1212
        %v1217 = vsel %vm1216, 1, 0
        %v1218 = vadd.s32 %v1208, %v1212
        %v1219 = vadd.s32 %v1211, %v1217
        %vm1220 = vc.u32 %v1218, %v1214
        %v1221 = vsel %vm1220, 1, 0
        %v1222 = vadd.s32 %v1218, %v1214
        %v1223 = vadd.s32 %v1219, %v1221
        %v1224 = vadd.s32 %v1223, %v1213
        %v1225 = vadd.s32 %v1224, %v1215
        %v1226 = vand.u32 %v1203, 65535
        %v1227 = vshrl.u32 %v1203, 16
        %v1228 = vand.u32 %v1198, 65535
        %v1229 = vshrl.u32 %v1198, 16
        %v1230 = vmul.u32 %v1226, %v1228
        %v1231 = vmul.u32 %v1226, %v1229
        %v1232 = vmul.u32 %v1227, %v1228
        %v1233 = vmul.u32 %v1227, %v1229
        %v1234 = vshll.u32 %v1231, 16
        %v1235 = vshrl.u32 %v1231, 16
        %v1236 = vshll.u32 %v1232, 16
        %v1237 = vshrl.u32 %v1232, 16
        %vm1238 = vc.u32 %v1230, %v1234
        %v1239 = vsel %vm1238, 1, 0
        %v1240 = vadd.s32 %v1230, %v1234
        %v1241 = vadd.s32 %v1233, %v1239
        %vm1242 = vc.u32 %v1240, %v1236
        %v1243 = vsel %vm1242, 1, 0
        %v1244 = vadd.s32 %v1240, %v1236
        %v1245 = vadd.s32 %v1241, %v1243
        %v1246 = vadd.s32 %v1245, %v1235
        %v1247 = vadd.s32 %v1246, %v1237
        %v1248 = vmul.u32 %v1203, %v1194
        %v1249 = vadd.s32 %v1225, %v1244
        %vm1250 = vc.u32 %v1225, %v1244
        %v1251 = vadd.s32 %v1247, 1
        %v1252 = vsel %vm1250, %v1251, %v1247
        %v1253 = vadd.s32 %v1248, %v1252
        %v1254 = vadd.s32 %v1253, 536870912
        %v1255 = vshrl.u32 %v1254, 30
        %v1256 = vshll.u32 %v1255, 30
        %v1257 = vsub.s32 %v1253, %v1256
        %vm1258 = vcmp.lt.s32.totalorder %v1257, 0
        %v1259 = vsub.s32 0, %v1257
        %v1260 = vsel %vm1258, %v1259, %v1257
        %v1261 = vclz %v1260
        %v1262 = vsub.s32 %v1261, 2
        %vm1263 = vcmp.gt.s32.totalorder 0, %v1262
        %v1264 = vsel %vm1263, 0, %v1262
        %v1265 = vsub.s32 32, %v1264
        %v1266 = vshll.u32 %v1257, %v1264
        %v1267 = vshrl.u32 %v1249, %v1265
        %v1268 = vor.u32 %v1266, %v1267
        %v1269 = vsub.s32 4294967266, %v1264
        %v1270 = vadd.s32 %v1269, 127
        %v1271 = vshll.u32 %v1270, 23
        %v1272 = vor.u32 4788187, %v1271
        %v1273 = vand.u32 2147483647, %v1272
        %v1275 = vcvt.s32.f32 %v1268
        %v1276 = vmul.f32 %v1275, %v1273
        %v1277 = vxor.u32 %v1276, 2147483648
        %v1278 = vsel %vm1157, %v1277, %v1276
        %v1279 = vsub.s32 4, %v1255
        %v1280 = vsel %vm1157, %v1279, %v1255
        %v1281 = vsel %vm1156, %v370, %v1278
        %v1282 = vsel %vm1156, 0, %v1280
        %v1283 = vmul.f32 %v1281, %v1281
        %v1284 = vmul.f32 %v1283, -0.001358992
        %v1285 = vadd.f32 %v1284, 0.041655596
        %v1286 = vmul.f32 %v1283, %v1285
        %v1287 = vadd.f32 %v1286, -0.4999988
        %v1288 = vmul.f32 %v1283, %v1287
        %v1289 = vadd.f32 1.0, %v1288
        %v1290 = vmul.f32 %v1281, %v1281
        %v1291 = vmul.f32 %v1290, -0.00019511016
        %v1292 = vadd.f32 %v1291, 0.008332121
        %v1293 = vmul.f32 %v1290, %v1292
        %v1294 = vadd.f32 %v1293, -0.16666654
        %v1295 = vmul.f32 %v1290, %v1294
        %v1296 = vadd.f32 %v1295, 1.0
        %v1297 = vmul.f32 %v1296, %v1281
        %vm1298 = vweird.f32 %v370
        %v1299 = vand.u32 %v1282, 3
        %vm1300 = vcmp.lt.s32.totalorder %v1299, 2
        %vm1301 = vcmp.eq.s32.totalorder %v1299, 0
        %v1302 = vxor.u32 %v1297, 2147483648
        %v1303 = vsel %vm1301, %v1289, %v1302
        %vm1304 = vcmp.eq.s32.totalorder %v1299, 2
        %v1305 = vxor.u32 %v1289, 2147483648
        %v1306 = vsel %vm1304, %v1305, %v1297
        %v1307 = vsel %vm1300, %v1303, %v1306
        %v1308 = vsel %vm1298, nan, %v1307
        %v1309 = vand.u32 2147483647, %v371
        %vm1310 = vcmp.le.f32.partialorder %v1309, 0.7853982
        %vm1311 = vcmp.lt.s32.totalorder %v371, 0
        %v1312 = vand.u32 %v371, 2139095040
        %v1313 = vshrl.u32 %v1312, 23
        %v1314 = vsub.s32 %v1313, 127
        %v1315 = vand.u32 2147483647, %v371
        %v1316 = vand.u32 %v1315, 8388607
        %v1317 = vor.u32 %v1316, 8388608
        %v1318 = vsub.s32 0, %v1317
        %v1319 = vadd.s32 %v1314, 1
        %vm1320 = vcmp.gt.s32.totalorder %v1319, 0
        %v1321 = vsel %vm1320, %v1319, 0
        %v1322 = vshrl.u32 %v1321, 5
        %v1323 = vand.u32 %v1321, 31
        %v1324 = vsub.s32 32, %v1323
        %v1325 = vshrl.u32 683565275, %v1324
        %v1326 = vshll.u32 683565275, %v1323
        %v1327 = vshrl.u32 2475754826, %v1324
        %v1328 = vor.u32 %v1326, %v1327
        %v1329 = vshll.u32 2475754826, %v1323
        %v1330 = vshrl.u32 2131351028, %v1324
        %v1331 = vor.u32 %v1329, %v1330
        %v1332 = vshll.u32 2131351028, %v1323
        %v1333 = vshrl.u32 2102212464, %v1324
        %v1334 = vor.u32 %v1332, %v1333
        %v1335 = vshll.u32 2102212464, %v1323
        %v1336 = vshrl.u32 920167782, %v1324
        %v1337 = vor.u32 %v1335, %v1336
        %v1338 = vshll.u32 920167782, %v1323
        %v1339 = vshrl.u32 1326507024, %v1324
        %v1340 = vor.u32 %v1338, %v1339
        %vm1341 = vcmp.lt.s32.totalorder %v1322, 1
        %vm1342 = vcmp.lt.s32.totalorder %v1322, 2
        %vm1343 = vcmp.lt.s32.totalorder %v1322, 3
        %vm1344 = vcmp.lt.s32.totalorder %v1322, 4
        %v1345 = vsel %vm1341, %v1325, %v1328
        %v1346 = vsel %vm1344, %v1334, 2102212464
        %v1347 = vsel %vm1343, %v1331, %v1346
        %v1348 = vsel %vm1342, %v1345, %v1347
        %v1349 = vsel %vm1341, %v1328, %v1331
        %v1350 = vsel %vm1344, %v1337, 920167782
        %v1351 = vsel %vm1343, %v1334, %v1350
        %v1352 = vsel %vm1342, %v1349, %v1351
        %v1353 = vsel %vm1341, %v1331, %v1334
        %v1354 = vsel %vm1344, %v1340, 1326507024
        %v1355 = vsel %vm1343, %v1337, %v1354
        %v1356 = vsel %vm1342, %v1353, %v1355
        %v1357 = vshll.u32 %v1317, 8
        %v1358 = vand.u32 %v1357, 65535
        %v1359 = vshrl.u32 %v1357, 16
        %v1360 = vand.u32 %v1356, 65535
        %v1361 = vshrl.u32 %v1356, 16
        %v1362 = vmul.u32 %v1358, %v1360
        %v1363 = vmul.u32 %v1358, %v1361
        %v1364 = vmul.u32 %v1359, %v1360
        %v1365 = vmul.u32 %v1359, %v1361
        %v1366 = vshll.u32 %v1363, 16
        %v1367 = vshrl.u32 %v1363, 16
        %v1368 = vshll.u32 %v1364, 16
        %v1369 = vshrl.u32 %v1364, 16
        %vm1370 = vc.u32 %v1362, %v1366
        %v1371 = vsel %vm1370, 1, 0
        %v1372 = vadd.s32 %v1362, %v1366
        %v1373 = vadd.s32 %v1365, %v1371
        %vm1374 = vc.u32 %v1372, %v1368
        %v1375 = vsel %vm1374, 1, 0
        %v1376 = vadd.s32 %v1372, %v1368
        %v1377 = vadd.s32 %v1373, %v1375
        %v1378 = vadd.s32 %v1377, %v1367
        %v1379 = vadd.s32 %v1378, %v1369
        %v1380 = vand.u32 %v1357, 65535
        %v1381 = vshrl.u32 %v1357, 16
        %v1382 = vand.u32 %v1352, 65535
        %v1383 = vshrl.u32 %v1352, 16
        %v1384 = vmul.u32 %v1380, %v1382
        %v1385 = vmul.u32 %v1380, %v1383
        %v1386 = vmul.u32 %v1381, %v1382
        %v1387 = vmul.u32 %v1381, %v1383
        %v1388 = vshll.u32 %v1385, 16
        %v1389 = vshrl.u32 %v1385, 16
        %v1390 = vshll.u32 %v1386, 16
        %v1391 = vshrl.u32 %v1386, 16
        %vm1392 = vc.u32 %v1384, %v1388
        %v1393 = vsel %vm1392, 1, 0
        %v1394 = vadd.s32 %v1384, %v1388
        %v1395 = vadd.s32 %v1387, %v1393
        %vm1396 = vc.u32 %v1394, %v1390
        %v1397 = vsel %vm1396, 1, 0
        %v1398 = vadd.s32 %v1394, %v1390
        %v1399 = vadd.s32 %v1395, %v1397
        %v1400 = vadd.s32 %v1399, %v1389
        %v1401 = vadd.s32 %v1400, %v1391
        %v1402 = vmul.u32 %v1357, %v1348
        %v1403 = vadd.s32 %v1379, %v1398
        %vm1404 = vc.u32 %v1379, %v1398
        %v1405 = vadd.s32 %v1401, 1
        %v1406 = vsel %vm1404, %v1405, %v1401
        %v1407 = vadd.s32 %v1402, %v1406
        %v1408 = vadd.s32 %v1407, 536870912
        %v1409 = vshrl.u32 %v1408, 30
        %v1410 = vshll.u32 %v1409, 30
        %v1411 = vsub.s32 %v1407, %v1410
        %vm1412 = vcmp.lt.s32.totalorder %v1411, 0
        %v1413 = vsub.s32 0, %v1411
        %v1414 = vsel %vm1412, %v1413, %v1411
        %v1415 = vclz %v1414
        %v1416 = vsub.s32 %v1415, 2
        %vm1417 = vcmp.gt.s32.totalorder 0, %v1416
        %v1418 = vsel %vm1417, 0, %v1416
        %v1419 = vsub.s32 32, %v1418
        %v1420 = vshll.u32 %v1411, %v1418
        %v1421 = vshrl.u32 %v1403, %v1419
        %v1422 = vor.u32 %v1420, %v1421
        %v1423 = vsub.s32 4294967266, %v1418
        %v1424 = vadd.s32 %v1423, 127
        %v1425 = vshll.u32 %v1424, 23
        %v1426 = vor.u32 4788187, %v1425
        %v1427 = vand.u32 2147483647, %v1426
        %v1429 = vcvt.s32.f32 %v1422
        %v1430 = vmul.f32 %v1429, %v1427
        %v1431 = vxor.u32 %v1430, 2147483648
        %v1432 = vsel %vm1311, %v1431, %v1430
        %v1433 = vsub.s32 4, %v1409
        %v1434 = vsel %vm1311, %v1433, %v1409
        %v1435 = vsel %vm1310, %v371, %v1432
        %v1436 = vsel %vm1310, 0, %v1434
        %v1437 = vmul.f32 %v1435, %v1435
        %v1438 = vmul.f32 %v1437, -0.001358992
        %v1439 = vadd.f32 %v1438, 0.041655596
        %v1440 = vmul.f32 %v1437, %v1439
        %v1441 = vadd.f32 %v1440, -0.4999988
        %v1442 = vmul.f32 %v1437, %v1441
        %v1443 = vadd.f32 1.0, %v1442
        %v1444 = vmul.f32 %v1435, %v1435
        %v1445 = vmul.f32 %v1444, -0.00019511016
        %v1446 = vadd.f32 %v1445, 0.008332121
        %v1447 = vmul.f32 %v1444, %v1446
        %v1448 = vadd.f32 %v1447, -0.16666654
        %v1449 = vmul.f32 %v1444, %v1448
        %v1450 = vadd.f32 %v1449, 1.0
        %v1451 = vmul.f32 %v1450, %v1435
        %vm1452 = vweird.f32 %v371
        %v1453 = vand.u32 %v1436, 3
        %vm1454 = vcmp.lt.s32.totalorder %v1453, 2
        %vm1455 = vcmp.eq.s32.totalorder %v1453, 0
        %v1456 = vxor.u32 %v1451, 2147483648
        %v1457 = vsel %vm1455, %v1443, %v1456
        %vm1458 = vcmp.eq.s32.totalorder %v1453, 2
        %v1459 = vxor.u32 %v1443, 2147483648
        %v1460 = vsel %vm1458, %v1459, %v1451
        %v1461 = vsel %vm1454, %v1457, %v1460
        %v1462 = vsel %vm1452, nan, %v1461
        %v1463 = vand.u32 2147483647, %v372
        %vm1464 = vcmp.le.f32.partialorder %v1463, 0.7853982
        %vm1465 = vcmp.lt.s32.totalorder %v372, 0
        %v1466 = vand.u32 %v372, 2139095040
        %v1467 = vshrl.u32 %v1466, 23
        %v1468 = vsub.s32 %v1467, 127
        %v1469 = vand.u32 2147483647, %v372
        %v1470 = vand.u32 %v1469, 8388607
        %v1471 = vor.u32 %v1470, 8388608
        %v1472 = vsub.s32 0, %v1471
        %v1473 = vadd.s32 %v1468, 1
        %vm1474 = vcmp.gt.s32.totalorder %v1473, 0
        %v1475 = vsel %vm1474, %v1473, 0
        %v1476 = vshrl.u32 %v1475, 5
        %v1477 = vand.u32 %v1475, 31
        %v1478 = vsub.s32 32, %v1477
        %v1479 = vshrl.u32 683565275, %v1478
        %v1480 = vshll.u32 683565275, %v1477
        %v1481 = vshrl.u32 2475754826, %v1478
        %v1482 = vor.u32 %v1480, %v1481
        %v1483 = vshll.u32 2475754826, %v1477
        %v1484 = vshrl.u32 2131351028, %v1478
        %v1485 = vor.u32 %v1483, %v1484
        %v1486 = vshll.u32 2131351028, %v1477
        %v1487 = vshrl.u32 2102212464, %v1478
        %v1488 = vor.u32 %v1486, %v1487
        %v1489 = vshll.u32 2102212464, %v1477
        %v1490 = vshrl.u32 920167782, %v1478
        %v1491 = vor.u32 %v1489, %v1490
        %v1492 = vshll.u32 920167782, %v1477
        %v1493 = vshrl.u32 1326507024, %v1478
        %v1494 = vor.u32 %v1492, %v1493
        %vm1495 = vcmp.lt.s32.totalorder %v1476, 1
        %vm1496 = vcmp.lt.s32.totalorder %v1476, 2
        %vm1497 = vcmp.lt.s32.totalorder %v1476, 3
        %vm1498 = vcmp.lt.s32.totalorder %v1476, 4
        %v1499 = vsel %vm1495, %v1479, %v1482
        %v1500 = vsel %vm1498, %v1488, 2102212464
        %v1501 = vsel %vm1497, %v1485, %v1500
        %v1502 = vsel %vm1496, %v1499, %v1501
        %v1503 = vsel %vm1495, %v1482, %v1485
        %v1504 = vsel %vm1498, %v1491, 920167782
        %v1505 = vsel %vm1497, %v1488, %v1504
        %v1506 = vsel %vm1496, %v1503, %v1505
        %v1507 = vsel %vm1495, %v1485, %v1488
        %v1508 = vsel %vm1498, %v1494, 1326507024
        %v1509 = vsel %vm1497, %v1491, %v1508
        %v1510 = vsel %vm1496, %v1507, %v1509
        %v1511 = vshll.u32 %v1471, 8
        %v1512 = vand.u32 %v1511, 65535
        %v1513 = vshrl.u32 %v1511, 16
        %v1514 = vand.u32 %v1510, 65535
        %v1515 = vshrl.u32 %v1510, 16
        %v1516 = vmul.u32 %v1512, %v1514
        %v1517 = vmul.u32 %v1512, %v1515
        %v1518 = vmul.u32 %v1513, %v1514
        %v1519 = vmul.u32 %v1513, %v1515
        %v1520 = vshll.u32 %v1517, 16
        %v1521 = vshrl.u32 %v1517, 16
        %v1522 = vshll.u32 %v1518, 16
        %v1523 = vshrl.u32 %v1518, 16
        %vm1524 = vc.u32 %v1516, %v1520
        %v1525 = vsel %vm1524, 1, 0
        %v1526 = vadd.s32 %v1516, %v1520
        %v1527 = vadd.s32 %v1519, %v1525
        %vm1528 = vc.u32 %v1526, %v1522
        %v1529 = vsel %vm1528, 1, 0
        %v1530 = vadd.s32 %v1526, %v1522
        %v1531 = vadd.s32 %v1527, %v1529
        %v1532 = vadd.s32 %v1531, %v1521
        %v1533 = vadd.s32 %v1532, %v1523
        %v1534 = vand.u32 %v1511, 65535
        %v1535 = vshrl.u32 %v1511, 16
        %v1536 = vand.u32 %v1506, 65535
        %v1537 = vshrl.u32 %v1506, 16
        %v1538 = vmul.u32 %v1534, %v1536
        %v1539 = vmul.u32 %v1534, %v1537
        %v1540 = vmul.u32 %v1535, %v1536
        %v1541 = vmul.u32 %v1535, %v1537
        %v1542 = vshll.u32 %v1539, 16
        %v1543 = vshrl.u32 %v1539, 16
        %v1544 = vshll.u32 %v1540, 16
        %v1545 = vshrl.u32 %v1540, 16
        %vm1546 = vc.u32 %v1538, %v1542
        %v1547 = vsel %vm1546, 1, 0
        %v1548 = vadd.s32 %v1538, %v1542
        %v1549 = vadd.s32 %v1541, %v1547
        %vm1550 = vc.u32 %v1548, %v1544
        %v1551 = vsel %vm1550, 1, 0
        %v1552 = vadd.s32 %v1548, %v1544
        %v1553 = vadd.s32 %v1549, %v1551
        %v1554 = vadd.s32 %v1553, %v1543
        %v1555 = vadd.s32 %v1554, %v1545
        %v1556 = vmul.u32 %v1511, %v1502
        %v1557 = vadd.s32 %v1533, %v1552
        %vm1558 = vc.u32 %v1533, %v1552
        %v1559 = vadd.s32 %v1555, 1
        %v1560 = vsel %vm1558, %v1559, %v1555
        %v1561 = vadd.s32 %v1556, %v1560
        %v1562 = vadd.s32 %v1561, 536870912
        %v1563 = vshrl.u32 %v1562, 30
        %v1564 = vshll.u32 %v1563, 30
        %v1565 = vsub.s32 %v1561, %v1564
        %vm1566 = vcmp.lt.s32.totalorder %v1565, 0
        %v1567 = vsub.s32 0, %v1565
        %v1568 = vsel %vm1566, %v1567, %v1565
        %v1569 = vclz %v1568
        %v1570 = vsub.s32 %v1569, 2
        %vm1571 = vcmp.gt.s32.totalorder 0, %v1570
        %v1572 = vsel %vm1571, 0, %v1570
        %v1573 = vsub.s32 32, %v1572
        %v1574 = vshll.u32 %v1565, %v1572
        %v1575 = vshrl.u32 %v1557, %v1573
        %v1576 = vor.u32 %v1574, %v1575
        %v1577 = vsub.s32 4294967266, %v1572
        %v1578 = vadd.s32 %v1577, 127
        %v1579 = vshll.u32 %v1578, 23
        %v1580 = vor.u32 4788187, %v1579
        %v1581 = vand.u32 2147483647, %v1580
        %v1583 = vcvt.s32.f32 %v1576
        %v1584 = vmul.f32 %v1583, %v1581
        %v1585 = vxor.u32 %v1584, 2147483648
        %v1586 = vsel %vm1465, %v1585, %v1584
        %v1587 = vsub.s32 4, %v1563
        %v1588 = vsel %vm1465, %v1587, %v1563
        %v1589 = vsel %vm1464, %v372, %v1586
        %v1590 = vsel %vm1464, 0, %v1588
        %v1591 = vmul.f32 %v1589, %v1589
        %v1592 = vmul.f32 %v1591, -0.001358992
        %v1593 = vadd.f32 %v1592, 0.041655596
        %v1594 = vmul.f32 %v1591, %v1593
        %v1595 = vadd.f32 %v1594, -0.4999988
        %v1596 = vmul.f32 %v1591, %v1595
        %v1597 = vadd.f32 1.0, %v1596
        %v1598 = vmul.f32 %v1589, %v1589
        %v1599 = vmul.f32 %v1598, -0.00019511016
        %v1600 = vadd.f32 %v1599, 0.008332121
        %v1601 = vmul.f32 %v1598, %v1600
        %v1602 = vadd.f32 %v1601, -0.16666654
        %v1603 = vmul.f32 %v1598, %v1602
        %v1604 = vadd.f32 %v1603, 1.0
        %v1605 = vmul.f32 %v1604, %v1589
        %vm1606 = vweird.f32 %v372
        %v1607 = vand.u32 %v1590, 3
        %vm1608 = vcmp.lt.s32.totalorder %v1607, 2
        %vm1609 = vcmp.eq.s32.totalorder %v1607, 0
        %v1610 = vxor.u32 %v1605, 2147483648
        %v1611 = vsel %vm1609, %v1597, %v1610
        %vm1612 = vcmp.eq.s32.totalorder %v1607, 2
        %v1613 = vxor.u32 %v1597, 2147483648
        %v1614 = vsel %vm1612, %v1613, %v1605
        %v1615 = vsel %vm1608, %v1611, %v1614
        %v1616 = vsel %vm1606, nan, %v1615
        %v1617 = vand.u32 2147483647, %v373
        %vm1618 = vcmp.le.f32.partialorder %v1617, 0.7853982
        %vm1619 = vcmp.lt.s32.totalorder %v373, 0
        %v1620 = vand.u32 %v373, 2139095040
        %v1621 = vshrl.u32 %v1620, 23
        %v1622 = vsub.s32 %v1621, 127
        %v1623 = vand.u32 2147483647, %v373
        %v1624 = vand.u32 %v1623, 8388607
        %v1625 = vor.u32 %v1624, 8388608
        %v1626 = vsub.s32 0, %v1625
        %v1627 = vadd.s32 %v1622, 1
        %vm1628 = vcmp.gt.s32.totalorder %v1627, 0
        %v1629 = vsel %vm1628, %v1627, 0
        %v1630 = vshrl.u32 %v1629, 5
        %v1631 = vand.u32 %v1629, 31
        %v1632 = vsub.s32 32, %v1631
        %v1633 = vshrl.u32 683565275, %v1632
        %v1634 = vshll.u32 683565275, %v1631
        %v1635 = vshrl.u32 2475754826, %v1632
        %v1636 = vor.u32 %v1634, %v1635
        %v1637 = vshll.u32 2475754826, %v1631
        %v1638 = vshrl.u32 2131351028, %v1632
        %v1639 = vor.u32 %v1637, %v1638
        %v1640 = vshll.u32 2131351028, %v1631
        %v1641 = vshrl.u32 2102212464, %v1632
        %v1642 = vor.u32 %v1640, %v1641
        %v1643 = vshll.u32 2102212464, %v1631
        %v1644 = vshrl.u32 920167782, %v1632
        %v1645 = vor.u32 %v1643, %v1644
        %v1646 = vshll.u32 920167782, %v1631
        %v1647 = vshrl.u32 1326507024, %v1632
        %v1648 = vor.u32 %v1646, %v1647
        %vm1649 = vcmp.lt.s32.totalorder %v1630, 1
        %vm1650 = vcmp.lt.s32.totalorder %v1630, 2
        %vm1651 = vcmp.lt.s32.totalorder %v1630, 3
        %vm1652 = vcmp.lt.s32.totalorder %v1630, 4
        %v1653 = vsel %vm1649, %v1633, %v1636
        %v1654 = vsel %vm1652, %v1642, 2102212464
        %v1655 = vsel %vm1651, %v1639, %v1654
        %v1656 = vsel %vm1650, %v1653, %v1655
        %v1657 = vsel %vm1649, %v1636, %v1639
        %v1658 = vsel %vm1652, %v1645, 920167782
        %v1659 = vsel %vm1651, %v1642, %v1658
        %v1660 = vsel %vm1650, %v1657, %v1659
        %v1661 = vsel %vm1649, %v1639, %v1642
        %v1662 = vsel %vm1652, %v1648, 1326507024
        %v1663 = vsel %vm1651, %v1645, %v1662
        %v1664 = vsel %vm1650, %v1661, %v1663
        %v1665 = vshll.u32 %v1625, 8
        %v1666 = vand.u32 %v1665, 65535
        %v1667 = vshrl.u32 %v1665, 16
        %v1668 = vand.u32 %v1664, 65535
        %v1669 = vshrl.u32 %v1664, 16
        %v1670 = vmul.u32 %v1666, %v1668
        %v1671 = vmul.u32 %v1666, %v1669
        %v1672 = vmul.u32 %v1667, %v1668
        %v1673 = vmul.u32 %v1667, %v1669
        %v1674 = vshll.u32 %v1671, 16
        %v1675 = vshrl.u32 %v1671, 16
        %v1676 = vshll.u32 %v1672, 16
        %v1677 = vshrl.u32 %v1672, 16
        %vm1678 = vc.u32 %v1670, %v1674
        %v1679 = vsel %vm1678, 1, 0
        %v1680 = vadd.s32 %v1670, %v1674
        %v1681 = vadd.s32 %v1673, %v1679
        %vm1682 = vc.u32 %v1680, %v1676
        %v1683 = vsel %vm1682, 1, 0
        %v1684 = vadd.s32 %v1680, %v1676
        %v1685 = vadd.s32 %v1681, %v1683
        %v1686 = vadd.s32 %v1685, %v1675
        %v1687 = vadd.s32 %v1686, %v1677
        %v1688 = vand.u32 %v1665, 65535
        %v1689 = vshrl.u32 %v1665, 16
        %v1690 = vand.u32 %v1660, 65535
        %v1691 = vshrl.u32 %v1660, 16
        %v1692 = vmul.u32 %v1688, %v1690
        %v1693 = vmul.u32 %v1688, %v1691
        %v1694 = vmul.u32 %v1689, %v1690
        %v1695 = vmul.u32 %v1689, %v1691
        %v1696 = vshll.u32 %v1693, 16
        %v1697 = vshrl.u32 %v1693, 16
        %v1698 = vshll.u32 %v1694, 16
        %v1699 = vshrl.u32 %v1694, 16
        %vm1700 = vc.u32 %v1692, %v1696
        %v1701 = vsel %vm1700, 1, 0
        %v1702 = vadd.s32 %v1692, %v1696
        %v1703 = vadd.s32 %v1695, %v1701
        %vm1704 = vc.u32 %v1702, %v1698
        %v1705 = vsel %vm1704, 1, 0
        %v1706 = vadd.s32 %v1702, %v1698
        %v1707 = vadd.s32 %v1703, %v1705
        %v1708 = vadd.s32 %v1707, %v1697
        %v1709 = vadd.s32 %v1708, %v1699
        %v1710 = vmul.u32 %v1665, %v1656
        %v1711 = vadd.s32 %v1687, %v1706
        %vm1712 = vc.u32 %v1687, %v1706
        %v1713 = vadd.s32 %v1709, 1
        %v1714 = vsel %vm1712, %v1713, %v1709
        %v1715 = vadd.s32 %v1710, %v1714
        %v1716 = vadd.s32 %v1715, 536870912
        %v1717 = vshrl.u32 %v1716, 30
        %v1718 = vshll.u32 %v1717, 30
        %v1719 = vsub.s32 %v1715, %v1718
        %vm1720 = vcmp.lt.s32.totalorder %v1719, 0
        %v1721 = vsub.s32 0, %v1719
        %v1722 = vsel %vm1720, %v1721, %v1719
        %v1723 = vclz %v1722
        %v1724 = vsub.s32 %v1723, 2
        %vm1725 = vcmp.gt.s32.totalorder 0, %v1724
        %v1726 = vsel %vm1725, 0, %v1724
        %v1727 = vsub.s32 32, %v1726
        %v1728 = vshll.u32 %v1719, %v1726
        %v1729 = vshrl.u32 %v1711, %v1727
        %v1730 = vor.u32 %v1728, %v1729
        %v1731 = vsub.s32 4294967266, %v1726
        %v1732 = vadd.s32 %v1731, 127
        %v1733 = vshll.u32 %v1732, 23
        %v1734 = vor.u32 4788187, %v1733
        %v1735 = vand.u32 2147483647, %v1734
        %v1737 = vcvt.s32.f32 %v1730
        %v1738 = vmul.f32 %v1737, %v1735
        %v1739 = vxor.u32 %v1738, 2147483648
        %v1740 = vsel %vm1619, %v1739, %v1738
        %v1741 = vsub.s32 4, %v1717
        %v1742 = vsel %vm1619, %v1741, %v1717
        %v1743 = vsel %vm1618, %v373, %v1740
        %v1744 = vsel %vm1618, 0, %v1742
        %v1745 = vmul.f32 %v1743, %v1743
        %v1746 = vmul.f32 %v1745, -0.001358992
        %v1747 = vadd.f32 %v1746, 0.041655596
        %v1748 = vmul.f32 %v1745, %v1747
        %v1749 = vadd.f32 %v1748, -0.4999988
        %v1750 = vmul.f32 %v1745, %v1749
        %v1751 = vadd.f32 1.0, %v1750
        %v1752 = vmul.f32 %v1743, %v1743
        %v1753 = vmul.f32 %v1752, -0.00019511016
        %v1754 = vadd.f32 %v1753, 0.008332121
        %v1755 = vmul.f32 %v1752, %v1754
        %v1756 = vadd.f32 %v1755, -0.16666654
        %v1757 = vmul.f32 %v1752, %v1756
        %v1758 = vadd.f32 %v1757, 1.0
        %v1759 = vmul.f32 %v1758, %v1743
        %vm1760 = vweird.f32 %v373
        %v1761 = vand.u32 %v1744, 3
        %vm1762 = vcmp.lt.s32.totalorder %v1761, 2
        %vm1763 = vcmp.eq.s32.totalorder %v1761, 0
        %v1764 = vxor.u32 %v1759, 2147483648
        %v1765 = vsel %vm1763, %v1751, %v1764
        %vm1766 = vcmp.eq.s32.totalorder %v1761, 2
        %v1767 = vxor.u32 %v1751, 2147483648
        %v1768 = vsel %vm1766, %v1767, %v1759
        %v1769 = vsel %vm1762, %v1765, %v1768
        %v1770 = vsel %vm1760, nan, %v1769
        %v1771 = vand.u32 2147483647, %v374
        %vm1772 = vcmp.le.f32.partialorder %v1771, 0.7853982
        %vm1773 = vcmp.lt.s32.totalorder %v374, 0
        %v1774 = vand.u32 %v374, 2139095040
        %v1775 = vshrl.u32 %v1774, 23
        %v1776 = vsub.s32 %v1775, 127
        %v1777 = vand.u32 2147483647, %v374
        %v1778 = vand.u32 %v1777, 8388607
        %v1779 = vor.u32 %v1778, 8388608
        %v1780 = vsub.s32 0, %v1779
        %v1781 = vadd.s32 %v1776, 1
        %vm1782 = vcmp.gt.s32.totalorder %v1781, 0
        %v1783 = vsel %vm1782, %v1781, 0
        %v1784 = vshrl.u32 %v1783, 5
        %v1785 = vand.u32 %v1783, 31
        %v1786 = vsub.s32 32, %v1785
        %v1787 = vshrl.u32 683565275, %v1786
        %v1788 = vshll.u32 683565275, %v1785
        %v1789 = vshrl.u32 2475754826, %v1786
        %v1790 = vor.u32 %v1788, %v1789
        %v1791 = vshll.u32 2475754826, %v1785
        %v1792 = vshrl.u32 2131351028, %v1786
        %v1793 = vor.u32 %v1791, %v1792
        %v1794 = vshll.u32 2131351028, %v1785
        %v1795 = vshrl.u32 2102212464, %v1786
        %v1796 = vor.u32 %v1794, %v1795
        %v1797 = vshll.u32 2102212464, %v1785
        %v1798 = vshrl.u32 920167782, %v1786
        %v1799 = vor.u32 %v1797, %v1798
        %v1800 = vshll.u32 920167782, %v1785
        %v1801 = vshrl.u32 1326507024, %v1786
        %v1802 = vor.u32 %v1800, %v1801
        %vm1803 = vcmp.lt.s32.totalorder %v1784, 1
        %vm1804 = vcmp.lt.s32.totalorder %v1784, 2
        %vm1805 = vcmp.lt.s32.totalorder %v1784, 3
        %vm1806 = vcmp.lt.s32.totalorder %v1784, 4
        %v1807 = vsel %vm1803, %v1787, %v1790
        %v1808 = vsel %vm1806, %v1796, 2102212464
        %v1809 = vsel %vm1805, %v1793, %v1808
        %v1810 = vsel %vm1804, %v1807, %v1809
        %v1811 = vsel %vm1803, %v1790, %v1793
        %v1812 = vsel %vm1806, %v1799, 920167782
        %v1813 = vsel %vm1805, %v1796, %v1812
        %v1814 = vsel %vm1804, %v1811, %v1813
        %v1815 = vsel %vm1803, %v1793, %v1796
        %v1816 = vsel %vm1806, %v1802, 1326507024
        %v1817 = vsel %vm1805, %v1799, %v1816
        %v1818 = vsel %vm1804, %v1815, %v1817
        %v1819 = vshll.u32 %v1779, 8
        %v1820 = vand.u32 %v1819, 65535
        %v1821 = vshrl.u32 %v1819, 16
        %v1822 = vand.u32 %v1818, 65535
        %v1823 = vshrl.u32 %v1818, 16
        %v1824 = vmul.u32 %v1820, %v1822
        %v1825 = vmul.u32 %v1820, %v1823
        %v1826 = vmul.u32 %v1821, %v1822
        %v1827 = vmul.u32 %v1821, %v1823
        %v1828 = vshll.u32 %v1825, 16
        %v1829 = vshrl.u32 %v1825, 16
        %v1830 = vshll.u32 %v1826, 16
        %v1831 = vshrl.u32 %v1826, 16
        %vm1832 = vc.u32 %v1824, %v1828
        %v1833 = vsel %vm1832, 1, 0
        %v1834 = vadd.s32 %v1824, %v1828
        %v1835 = vadd.s32 %v1827, %v1833
        %vm1836 = vc.u32 %v1834, %v1830
        %v1837 = vsel %vm1836, 1, 0
        %v1838 = vadd.s32 %v1834, %v1830
        %v1839 = vadd.s32 %v1835, %v1837
        %v1840 = vadd.s32 %v1839, %v1829
        %v1841 = vadd.s32 %v1840, %v1831
        %v1842 = vand.u32 %v1819, 65535
        %v1843 = vshrl.u32 %v1819, 16
        %v1844 = vand.u32 %v1814, 65535
        %v1845 = vshrl.u32 %v1814, 16
        %v1846 = vmul.u32 %v1842, %v1844
        %v1847 = vmul.u32 %v1842, %v1845
        %v1848 = vmul.u32 %v1843, %v1844
        %v1849 = vmul.u32 %v1843, %v1845
        %v1850 = vshll.u32 %v1847, 16
        %v1851 = vshrl.u32 %v1847, 16
        %v1852 = vshll.u32 %v1848, 16
        %v1853 = vshrl.u32 %v1848, 16
        %vm1854 = vc.u32 %v1846, %v1850
        %v1855 = vsel %vm1854, 1, 0
        %v1856 = vadd.s32 %v1846, %v1850
        %v1857 = vadd.s32 %v1849, %v1855
        %vm1858 = vc.u32 %v1856, %v1852
        %v1859 = vsel %vm1858, 1, 0
        %v1860 = vadd.s32 %v1856, %v1852
        %v1861 = vadd.s32 %v1857, %v1859
        %v1862 = vadd.s32 %v1861, %v1851
        %v1863 = vadd.s32 %v1862, %v1853
        %v1864 = vmul.u32 %v1819, %v1810
        %v1865 = vadd.s32 %v1841, %v1860
        %vm1866 = vc.u32 %v1841, %v1860
        %v1867 = vadd.s32 %v1863, 1
        %v1868 = vsel %vm1866, %v1867, %v1863
        %v1869 = vadd.s32 %v1864, %v1868
        %v1870 = vadd.s32 %v1869, 536870912
        %v1871 = vshrl.u32 %v1870, 30
        %v1872 = vshll.u32 %v1871, 30
        %v1873 = vsub.s32 %v1869, %v1872
        %vm1874 = vcmp.lt.s32.totalorder %v1873, 0
        %v1875 = vsub.s32 0, %v1873
        %v1876 = vsel %vm1874, %v1875, %v1873
        %v1877 = vclz %v1876
        %v1878 = vsub.s32 %v1877, 2
        %vm1879 = vcmp.gt.s32.totalorder 0, %v1878
        %v1880 = vsel %vm1879, 0, %v1878
        %v1881 = vsub.s32 32, %v1880
        %v1882 = vshll.u32 %v1873, %v1880
        %v1883 = vshrl.u32 %v1865, %v1881
        %v1884 = vor.u32 %v1882, %v1883
        %v1885 = vsub.s32 4294967266, %v1880
        %v1886 = vadd.s32 %v1885, 127
        %v1887 = vshll.u32 %v1886, 23
        %v1888 = vor.u32 4788187, %v1887
        %v1889 = vand.u32 2147483647, %v1888
        %v1891 = vcvt.s32.f32 %v1884
        %v1892 = vmul.f32 %v1891, %v1889
        %v1893 = vxor.u32 %v1892, 2147483648
        %v1894 = vsel %vm1773, %v1893, %v1892
        %v1895 = vsub.s32 4, %v1871
        %v1896 = vsel %vm1773, %v1895, %v1871
        %v1897 = vsel %vm1772, %v374, %v1894
        %v1898 = vsel %vm1772, 0, %v1896
        %v1899 = vmul.f32 %v1897, %v1897
        %v1900 = vmul.f32 %v1899, -0.001358992
        %v1901 = vadd.f32 %v1900, 0.041655596
        %v1902 = vmul.f32 %v1899, %v1901
        %v1903 = vadd.f32 %v1902, -0.4999988
        %v1904 = vmul.f32 %v1899, %v1903
        %v1905 = vadd.f32 1.0, %v1904
        %v1906 = vmul.f32 %v1897, %v1897
        %v1907 = vmul.f32 %v1906, -0.00019511016
        %v1908 = vadd.f32 %v1907, 0.008332121
        %v1909 = vmul.f32 %v1906, %v1908
        %v1910 = vadd.f32 %v1909, -0.16666654
        %v1911 = vmul.f32 %v1906, %v1910
        %v1912 = vadd.f32 %v1911, 1.0
        %v1913 = vmul.f32 %v1912, %v1897
        %vm1914 = vweird.f32 %v374
        %v1915 = vand.u32 %v1898, 3
        %vm1916 = vcmp.lt.s32.totalorder %v1915, 2
        %vm1917 = vcmp.eq.s32.totalorder %v1915, 0
        %v1918 = vxor.u32 %v1913, 2147483648
        %v1919 = vsel %vm1917, %v1905, %v1918
        %vm1920 = vcmp.eq.s32.totalorder %v1915, 2
        %v1921 = vxor.u32 %v1905, 2147483648
        %v1922 = vsel %vm1920, %v1921, %v1913
        %v1923 = vsel %vm1916, %v1919, %v1922
        %v1924 = vsel %vm1914, nan, %v1923
        %v1925 = vand.u32 2147483647, %v375
        %vm1926 = vcmp.le.f32.partialorder %v1925, 0.7853982
        %vm1927 = vcmp.lt.s32.totalorder %v375, 0
        %v1928 = vand.u32 %v375, 2139095040
        %v1929 = vshrl.u32 %v1928, 23
        %v1930 = vsub.s32 %v1929, 127
        %v1931 = vand.u32 2147483647, %v375
        %v1932 = vand.u32 %v1931, 8388607
        %v1933 = vor.u32 %v1932, 8388608
        %v1934 = vsub.s32 0, %v1933
        %v1935 = vadd.s32 %v1930, 1
        %vm1936 = vcmp.gt.s32.totalorder %v1935, 0
        %v1937 = vsel %vm1936, %v1935, 0
        %v1938 = vshrl.u32 %v1937, 5
        %v1939 = vand.u32 %v1937, 31
        %v1940 = vsub.s32 32, %v1939
        %v1941 = vshrl.u32 683565275, %v1940
        %v1942 = vshll.u32 683565275, %v1939
        %v1943 = vshrl.u32 2475754826, %v1940
        %v1944 = vor.u32 %v1942, %v1943
        %v1945 = vshll.u32 2475754826, %v1939
        %v1946 = vshrl.u32 2131351028, %v1940
        %v1947 = vor.u32 %v1945, %v1946
        %v1948 = vshll.u32 2131351028, %v1939
        %v1949 = vshrl.u32 2102212464, %v1940
        %v1950 = vor.u32 %v1948, %v1949
        %v1951 = vshll.u32 2102212464, %v1939
        %v1952 = vshrl.u32 920167782, %v1940
        %v1953 = vor.u32 %v1951, %v1952
        %v1954 = vshll.u32 920167782, %v1939
        %v1955 = vshrl.u32 1326507024, %v1940
        %v1956 = vor.u32 %v1954, %v1955
        %vm1957 = vcmp.lt.s32.totalorder %v1938, 1
        %vm1958 = vcmp.lt.s32.totalorder %v1938, 2
        %vm1959 = vcmp.lt.s32.totalorder %v1938, 3
        %vm1960 = vcmp.lt.s32.totalorder %v1938, 4
        %v1961 = vsel %vm1957, %v1941, %v1944
        %v1962 = vsel %vm1960, %v1950, 2102212464
        %v1963 = vsel %vm1959, %v1947, %v1962
        %v1964 = vsel %vm1958, %v1961, %v1963
        %v1965 = vsel %vm1957, %v1944, %v1947
        %v1966 = vsel %vm1960, %v1953, 920167782
        %v1967 = vsel %vm1959, %v1950, %v1966
        %v1968 = vsel %vm1958, %v1965, %v1967
        %v1969 = vsel %vm1957, %v1947, %v1950
        %v1970 = vsel %vm1960, %v1956, 1326507024
        %v1971 = vsel %vm1959, %v1953, %v1970
        %v1972 = vsel %vm1958, %v1969, %v1971
        %v1973 = vshll.u32 %v1933, 8
        %v1974 = vand.u32 %v1973, 65535
        %v1975 = vshrl.u32 %v1973, 16
        %v1976 = vand.u32 %v1972, 65535
        %v1977 = vshrl.u32 %v1972, 16
        %v1978 = vmul.u32 %v1974, %v1976
        %v1979 = vmul.u32 %v1974, %v1977
        %v1980 = vmul.u32 %v1975, %v1976
        %v1981 = vmul.u32 %v1975, %v1977
        %v1982 = vshll.u32 %v1979, 16
        %v1983 = vshrl.u32 %v1979, 16
        %v1984 = vshll.u32 %v1980, 16
        %v1985 = vshrl.u32 %v1980, 16
        %vm1986 = vc.u32 %v1978, %v1982
        %v1987 = vsel %vm1986, 1, 0
        %v1988 = vadd.s32 %v1978, %v1982
        %v1989 = vadd.s32 %v1981, %v1987
        %vm1990 = vc.u32 %v1988, %v1984
        %v1991 = vsel %vm1990, 1, 0
        %v1992 = vadd.s32 %v1988, %v1984
        %v1993 = vadd.s32 %v1989, %v1991
        %v1994 = vadd.s32 %v1993, %v1983
        %v1995 = vadd.s32 %v1994, %v1985
        %v1996 = vand.u32 %v1973, 65535
        %v1997 = vshrl.u32 %v1973, 16
        %v1998 = vand.u32 %v1968, 65535
        %v1999 = vshrl.u32 %v1968, 16
        %v2000 = vmul.u32 %v1996, %v1998
        %v2001 = vmul.u32 %v1996, %v1999
        %v2002 = vmul.u32 %v1997, %v1998
        %v2003 = vmul.u32 %v1997, %v1999
        %v2004 = vshll.u32 %v2001, 16
        %v2005 = vshrl.u32 %v2001, 16
        %v2006 = vshll.u32 %v2002, 16
        %v2007 = vshrl.u32 %v2002, 16
        %vm2008 = vc.u32 %v2000, %v2004
        %v2009 = vsel %vm2008, 1, 0
        %v2010 = vadd.s32 %v2000, %v2004
        %v2011 = vadd.s32 %v2003, %v2009
        %vm2012 = vc.u32 %v2010, %v2006
        %v2013 = vsel %vm2012, 1, 0
        %v2014 = vadd.s32 %v2010, %v2006
        %v2015 = vadd.s32 %v2011, %v2013
        %v2016 = vadd.s32 %v2015, %v2005
        %v2017 = vadd.s32 %v2016, %v2007
        %v2018 = vmul.u32 %v1973, %v1964
        %v2019 = vadd.s32 %v1995, %v2014
        %vm2020 = vc.u32 %v1995, %v2014
        %v2021 = vadd.s32 %v2017, 1
        %v2022 = vsel %vm2020, %v2021, %v2017
        %v2023 = vadd.s32 %v2018, %v2022
        %v2024 = vadd.s32 %v2023, 536870912
        %v2025 = vshrl.u32 %v2024, 30
        %v2026 = vshll.u32 %v2025, 30
        %v2027 = vsub.s32 %v2023, %v2026
        %vm2028 = vcmp.lt.s32.totalorder %v2027, 0
        %v2029 = vsub.s32 0, %v2027
        %v2030 = vsel %vm2028, %v2029, %v2027
        %v2031 = vclz %v2030
        %v2032 = vsub.s32 %v2031, 2
        %vm2033 = vcmp.gt.s32.totalorder 0, %v2032
        %v2034 = vsel %vm2033, 0, %v2032
        %v2035 = vsub.s32 32, %v2034
        %v2036 = vshll.u32 %v2027, %v2034
        %v2037 = vshrl.u32 %v2019, %v2035
        %v2038 = vor.u32 %v2036, %v2037
        %v2039 = vsub.s32 4294967266, %v2034
        %v2040 = vadd.s32 %v2039, 127
        %v2041 = vshll.u32 %v2040, 23
        %v2042 = vor.u32 4788187, %v2041
        %v2043 = vand.u32 2147483647, %v2042
        %v2045 = vcvt.s32.f32 %v2038
        %v2046 = vmul.f32 %v2045, %v2043
        %v2047 = vxor.u32 %v2046, 2147483648
        %v2048 = vsel %vm1927, %v2047, %v2046
        %v2049 = vsub.s32 4, %v2025
        %v2050 = vsel %vm1927, %v2049, %v2025
        %v2051 = vsel %vm1926, %v375, %v2048
        %v2052 = vsel %vm1926, 0, %v2050
        %v2053 = vmul.f32 %v2051, %v2051
        %v2054 = vmul.f32 %v2053, -0.001358992
        %v2055 = vadd.f32 %v2054, 0.041655596
        %v2056 = vmul.f32 %v2053, %v2055
        %v2057 = vadd.f32 %v2056, -0.4999988
        %v2058 = vmul.f32 %v2053, %v2057
        %v2059 = vadd.f32 1.0, %v2058
        %v2060 = vmul.f32 %v2051, %v2051
        %v2061 = vmul.f32 %v2060, -0.00019511016
        %v2062 = vadd.f32 %v2061, 0.008332121
        %v2063 = vmul.f32 %v2060, %v2062
        %v2064 = vadd.f32 %v2063, -0.16666654
        %v2065 = vmul.f32 %v2060, %v2064
        %v2066 = vadd.f32 %v2065, 1.0
        %v2067 = vmul.f32 %v2066, %v2051
        %vm2068 = vweird.f32 %v375
        %v2069 = vand.u32 %v2052, 3
        %vm2070 = vcmp.lt.s32.totalorder %v2069, 2
        %vm2071 = vcmp.eq.s32.totalorder %v2069, 0
        %v2072 = vxor.u32 %v2067, 2147483648
        %v2073 = vsel %vm2071, %v2059, %v2072
        %vm2074 = vcmp.eq.s32.totalorder %v2069, 2
        %v2075 = vxor.u32 %v2059, 2147483648
        %v2076 = vsel %vm2074, %v2075, %v2067
        %v2077 = vsel %vm2070, %v2073, %v2076
        %v2078 = vsel %vm2068, nan, %v2077
        %v2079 = vand.u32 2147483647, %v376
        %vm2080 = vcmp.le.f32.partialorder %v2079, 0.7853982
        %vm2081 = vcmp.lt.s32.totalorder %v376, 0
        %v2082 = vand.u32 %v376, 2139095040
        %v2083 = vshrl.u32 %v2082, 23
        %v2084 = vsub.s32 %v2083, 127
        %v2085 = vand.u32 2147483647, %v376
        %v2086 = vand.u32 %v2085, 8388607
        %v2087 = vor.u32 %v2086, 8388608
        %v2088 = vsub.s32 0, %v2087
        %v2089 = vadd.s32 %v2084, 1
        %vm2090 = vcmp.gt.s32.totalorder %v2089, 0
        %v2091 = vsel %vm2090, %v2089, 0
        %v2092 = vshrl.u32 %v2091, 5
        %v2093 = vand.u32 %v2091, 31
        %v2094 = vsub.s32 32, %v2093
        %v2095 = vshrl.u32 683565275, %v2094
        %v2096 = vshll.u32 683565275, %v2093
        %v2097 = vshrl.u32 2475754826, %v2094
        %v2098 = vor.u32 %v2096, %v2097
        %v2099 = vshll.u32 2475754826, %v2093
        %v2100 = vshrl.u32 2131351028, %v2094
        %v2101 = vor.u32 %v2099, %v2100
        %v2102 = vshll.u32 2131351028, %v2093
        %v2103 = vshrl.u32 2102212464, %v2094
        %v2104 = vor.u32 %v2102, %v2103
        %v2105 = vshll.u32 2102212464, %v2093
        %v2106 = vshrl.u32 920167782, %v2094
        %v2107 = vor.u32 %v2105, %v2106
        %v2108 = vshll.u32 920167782, %v2093
        %v2109 = vshrl.u32 1326507024, %v2094
        %v2110 = vor.u32 %v2108, %v2109
        %vm2111 = vcmp.lt.s32.totalorder %v2092, 1
        %vm2112 = vcmp.lt.s32.totalorder %v2092, 2
        %vm2113 = vcmp.lt.s32.totalorder %v2092, 3
        %vm2114 = vcmp.lt.s32.totalorder %v2092, 4
        %v2115 = vsel %vm2111, %v2095, %v2098
        %v2116 = vsel %vm2114, %v2104, 2102212464
        %v2117 = vsel %vm2113, %v2101, %v2116
        %v2118 = vsel %vm2112, %v2115, %v2117
        %v2119 = vsel %vm2111, %v2098, %v2101
        %v2120 = vsel %vm2114, %v2107, 920167782
        %v2121 = vsel %vm2113, %v2104, %v2120
        %v2122 = vsel %vm2112, %v2119, %v2121
        %v2123 = vsel %vm2111, %v2101, %v2104
        %v2124 = vsel %vm2114, %v2110, 1326507024
        %v2125 = vsel %vm2113, %v2107, %v2124
        %v2126 = vsel %vm2112, %v2123, %v2125
        %v2127 = vshll.u32 %v2087, 8
        %v2128 = vand.u32 %v2127, 65535
        %v2129 = vshrl.u32 %v2127, 16
        %v2130 = vand.u32 %v2126, 65535
        %v2131 = vshrl.u32 %v2126, 16
        %v2132 = vmul.u32 %v2128, %v2130
        %v2133 = vmul.u32 %v2128, %v2131
        %v2134 = vmul.u32 %v2129, %v2130
        %v2135 = vmul.u32 %v2129, %v2131
        %v2136 = vshll.u32 %v2133, 16
        %v2137 = vshrl.u32 %v2133, 16
        %v2138 = vshll.u32 %v2134, 16
        %v2139 = vshrl.u32 %v2134, 16
        %vm2140 = vc.u32 %v2132, %v2136
        %v2141 = vsel %vm2140, 1, 0
        %v2142 = vadd.s32 %v2132, %v2136
        %v2143 = vadd.s32 %v2135, %v2141
        %vm2144 = vc.u32 %v2142, %v2138
        %v2145 = vsel %vm2144, 1, 0
        %v2146 = vadd.s32 %v2142, %v2138
        %v2147 = vadd.s32 %v2143, %v2145
        %v2148 = vadd.s32 %v2147, %v2137
        %v2149 = vadd.s32 %v2148, %v2139
        %v2150 = vand.u32 %v2127, 65535
        %v2151 = vshrl.u32 %v2127, 16
        %v2152 = vand.u32 %v2122, 65535
        %v2153 = vshrl.u32 %v2122, 16
        %v2154 = vmul.u32 %v2150, %v2152
        %v2155 = vmul.u32 %v2150, %v2153
        %v2156 = vmul.u32 %v2151, %v2152
        %v2157 = vmul.u32 %v2151, %v2153
        %v2158 = vshll.u32 %v2155, 16
        %v2159 = vshrl.u32 %v2155, 16
        %v2160 = vshll.u32 %v2156, 16
        %v2161 = vshrl.u32 %v2156, 16
        %vm2162 = vc.u32 %v2154, %v2158
        %v2163 = vsel %vm2162, 1, 0
        %v2164 = vadd.s32 %v2154, %v2158
        %v2165 = vadd.s32 %v2157, %v2163
        %vm2166 = vc.u32 %v2164, %v2160
        %v2167 = vsel %vm2166, 1, 0
        %v2168 = vadd.s32 %v2164, %v2160
        %v2169 = vadd.s32 %v2165, %v2167
        %v2170 = vadd.s32 %v2169, %v2159
        %v2171 = vadd.s32 %v2170, %v2161
        %v2172 = vmul.u32 %v2127, %v2118
        %v2173 = vadd.s32 %v2149, %v2168
        %vm2174 = vc.u32 %v2149, %v2168
        %v2175 = vadd.s32 %v2171, 1
        %v2176 = vsel %vm2174, %v2175, %v2171
        %v2177 = vadd.s32 %v2172, %v2176
        %v2178 = vadd.s32 %v2177, 536870912
        %v2179 = vshrl.u32 %v2178, 30
        %v2180 = vshll.u32 %v2179, 30
        %v2181 = vsub.s32 %v2177, %v2180
        %vm2182 = vcmp.lt.s32.totalorder %v2181, 0
        %v2183 = vsub.s32 0, %v2181
        %v2184 = vsel %vm2182, %v2183, %v2181
        %v2185 = vclz %v2184
        %v2186 = vsub.s32 %v2185, 2
        %vm2187 = vcmp.gt.s32.totalorder 0, %v2186
        %v2188 = vsel %vm2187, 0, %v2186
        %v2189 = vsub.s32 32, %v2188
        %v2190 = vshll.u32 %v2181, %v2188
        %v2191 = vshrl.u32 %v2173, %v2189
        %v2192 = vor.u32 %v2190, %v2191
        %v2193 = vsub.s32 4294967266, %v2188
        %v2194 = vadd.s32 %v2193, 127
        %v2195 = vshll.u32 %v2194, 23
        %v2196 = vor.u32 4788187, %v2195
        %v2197 = vand.u32 2147483647, %v2196
        %v2199 = vcvt.s32.f32 %v2192
        %v2200 = vmul.f32 %v2199, %v2197
        %v2201 = vxor.u32 %v2200, 2147483648
        %v2202 = vsel %vm2081, %v2201, %v2200
        %v2203 = vsub.s32 4, %v2179
        %v2204 = vsel %vm2081, %v2203, %v2179
        %v2205 = vsel %vm2080, %v376, %v2202
        %v2206 = vsel %vm2080, 0, %v2204
        %v2207 = vmul.f32 %v2205, %v2205
        %v2208 = vmul.f32 %v2207, -0.001358992
        %v2209 = vadd.f32 %v2208, 0.041655596
        %v2210 = vmul.f32 %v2207, %v2209
        %v2211 = vadd.f32 %v2210, -0.4999988
        %v2212 = vmul.f32 %v2207, %v2211
        %v2213 = vadd.f32 1.0, %v2212
        %v2214 = vmul.f32 %v2205, %v2205
        %v2215 = vmul.f32 %v2214, -0.00019511016
        %v2216 = vadd.f32 %v2215, 0.008332121
        %v2217 = vmul.f32 %v2214, %v2216
        %v2218 = vadd.f32 %v2217, -0.16666654
        %v2219 = vmul.f32 %v2214, %v2218
        %v2220 = vadd.f32 %v2219, 1.0
        %v2221 = vmul.f32 %v2220, %v2205
        %vm2222 = vweird.f32 %v376
        %v2223 = vand.u32 %v2206, 3
        %vm2224 = vcmp.lt.s32.totalorder %v2223, 2
        %vm2225 = vcmp.eq.s32.totalorder %v2223, 0
        %v2226 = vxor.u32 %v2221, 2147483648
        %v2227 = vsel %vm2225, %v2213, %v2226
        %vm2228 = vcmp.eq.s32.totalorder %v2223, 2
        %v2229 = vxor.u32 %v2213, 2147483648
        %v2230 = vsel %vm2228, %v2229, %v2221
        %v2231 = vsel %vm2224, %v2227, %v2230
        %v2232 = vsel %vm2222, nan, %v2231
        %v2233 = vand.u32 2147483647, %v377
        %vm2234 = vcmp.le.f32.partialorder %v2233, 0.7853982
        %vm2235 = vcmp.lt.s32.totalorder %v377, 0
        %v2236 = vand.u32 %v377, 2139095040
        %v2237 = vshrl.u32 %v2236, 23
        %v2238 = vsub.s32 %v2237, 127
        %v2239 = vand.u32 2147483647, %v377
        %v2240 = vand.u32 %v2239, 8388607
        %v2241 = vor.u32 %v2240, 8388608
        %v2242 = vsub.s32 0, %v2241
        %v2243 = vadd.s32 %v2238, 1
        %vm2244 = vcmp.gt.s32.totalorder %v2243, 0
        %v2245 = vsel %vm2244, %v2243, 0
        %v2246 = vshrl.u32 %v2245, 5
        %v2247 = vand.u32 %v2245, 31
        %v2248 = vsub.s32 32, %v2247
        %v2249 = vshrl.u32 683565275, %v2248
        %v2250 = vshll.u32 683565275, %v2247
        %v2251 = vshrl.u32 2475754826, %v2248
        %v2252 = vor.u32 %v2250, %v2251
        %v2253 = vshll.u32 2475754826, %v2247
        %v2254 = vshrl.u32 2131351028, %v2248
        %v2255 = vor.u32 %v2253, %v2254
        %v2256 = vshll.u32 2131351028, %v2247
        %v2257 = vshrl.u32 2102212464, %v2248
        %v2258 = vor.u32 %v2256, %v2257
        %v2259 = vshll.u32 2102212464, %v2247
        %v2260 = vshrl.u32 920167782, %v2248
        %v2261 = vor.u32 %v2259, %v2260
        %v2262 = vshll.u32 920167782, %v2247
        %v2263 = vshrl.u32 1326507024, %v2248
        %v2264 = vor.u32 %v2262, %v2263
        %vm2265 = vcmp.lt.s32.totalorder %v2246, 1
        %vm2266 = vcmp.lt.s32.totalorder %v2246, 2
        %vm2267 = vcmp.lt.s32.totalorder %v2246, 3
        %vm2268 = vcmp.lt.s32.totalorder %v2246, 4
        %v2269 = vsel %vm2265, %v2249, %v2252
        %v2270 = vsel %vm2268, %v2258, 2102212464
        %v2271 = vsel %vm2267, %v2255, %v2270
        %v2272 = vsel %vm2266, %v2269, %v2271
        %v2273 = vsel %vm2265, %v2252, %v2255
        %v2274 = vsel %vm2268, %v2261, 920167782
        %v2275 = vsel %vm2267, %v2258, %v2274
        %v2276 = vsel %vm2266, %v2273, %v2275
        %v2277 = vsel %vm2265, %v2255, %v2258
        %v2278 = vsel %vm2268, %v2264, 1326507024
        %v2279 = vsel %vm2267, %v2261, %v2278
        %v2280 = vsel %vm2266, %v2277, %v2279
        %v2281 = vshll.u32 %v2241, 8
        %v2282 = vand.u32 %v2281, 65535
        %v2283 = vshrl.u32 %v2281, 16
        %v2284 = vand.u32 %v2280, 65535
        %v2285 = vshrl.u32 %v2280, 16
        %v2286 = vmul.u32 %v2282, %v2284
        %v2287 = vmul.u32 %v2282, %v2285
        %v2288 = vmul.u32 %v2283, %v2284
        %v2289 = vmul.u32 %v2283, %v2285
        %v2290 = vshll.u32 %v2287, 16
        %v2291 = vshrl.u32 %v2287, 16
        %v2292 = vshll.u32 %v2288, 16
        %v2293 = vshrl.u32 %v2288, 16
        %vm2294 = vc.u32 %v2286, %v2290
        %v2295 = vsel %vm2294, 1, 0
        %v2296 = vadd.s32 %v2286, %v2290
        %v2297 = vadd.s32 %v2289, %v2295
        %vm2298 = vc.u32 %v2296, %v2292
        %v2299 = vsel %vm2298, 1, 0
        %v2300 = vadd.s32 %v2296, %v2292
        %v2301 = vadd.s32 %v2297, %v2299
        %v2302 = vadd.s32 %v2301, %v2291
        %v2303 = vadd.s32 %v2302, %v2293
        %v2304 = vand.u32 %v2281, 65535
        %v2305 = vshrl.u32 %v2281, 16
        %v2306 = vand.u32 %v2276, 65535
        %v2307 = vshrl.u32 %v2276, 16
        %v2308 = vmul.u32 %v2304, %v2306
        %v2309 = vmul.u32 %v2304, %v2307
        %v2310 = vmul.u32 %v2305, %v2306
        %v2311 = vmul.u32 %v2305, %v2307
        %v2312 = vshll.u32 %v2309, 16
        %v2313 = vshrl.u32 %v2309, 16
        %v2314 = vshll.u32 %v2310, 16
        %v2315 = vshrl.u32 %v2310, 16
        %vm2316 = vc.u32 %v2308, %v2312
        %v2317 = vsel %vm2316, 1, 0
        %v2318 = vadd.s32 %v2308, %v2312
        %v2319 = vadd.s32 %v2311, %v2317
        %vm2320 = vc.u32 %v2318, %v2314
        %v2321 = vsel %vm2320, 1, 0
        %v2322 = vadd.s32 %v2318, %v2314
        %v2323 = vadd.s32 %v2319, %v2321
        %v2324 = vadd.s32 %v2323, %v2313
        %v2325 = vadd.s32 %v2324, %v2315
        %v2326 = vmul.u32 %v2281, %v2272
        %v2327 = vadd.s32 %v2303, %v2322
        %vm2328 = vc.u32 %v2303, %v2322
        %v2329 = vadd.s32 %v2325, 1
        %v2330 = vsel %vm2328, %v2329, %v2325
        %v2331 = vadd.s32 %v2326, %v2330
        %v2332 = vadd.s32 %v2331, 536870912
        %v2333 = vshrl.u32 %v2332, 30
        %v2334 = vshll.u32 %v2333, 30
        %v2335 = vsub.s32 %v2331, %v2334
        %vm2336 = vcmp.lt.s32.totalorder %v2335, 0
        %v2337 = vsub.s32 0, %v2335
        %v2338 = vsel %vm2336, %v2337, %v2335
        %v2339 = vclz %v2338
        %v2340 = vsub.s32 %v2339, 2
        %vm2341 = vcmp.gt.s32.totalorder 0, %v2340
        %v2342 = vsel %vm2341, 0, %v2340
        %v2343 = vsub.s32 32, %v2342
        %v2344 = vshll.u32 %v2335, %v2342
        %v2345 = vshrl.u32 %v2327, %v2343
        %v2346 = vor.u32 %v2344, %v2345
        %v2347 = vsub.s32 4294967266, %v2342
        %v2348 = vadd.s32 %v2347, 127
        %v2349 = vshll.u32 %v2348, 23
        %v2350 = vor.u32 4788187, %v2349
        %v2351 = vand.u32 2147483647, %v2350
        %v2353 = vcvt.s32.f32 %v2346
        %v2354 = vmul.f32 %v2353, %v2351
        %v2355 = vxor.u32 %v2354, 2147483648
        %v2356 = vsel %vm2235, %v2355, %v2354
        %v2357 = vsub.s32 4, %v2333
        %v2358 = vsel %vm2235, %v2357, %v2333
        %v2359 = vsel %vm2234, %v377, %v2356
        %v2360 = vsel %vm2234, 0, %v2358
        %v2361 = vmul.f32 %v2359, %v2359
        %v2362 = vmul.f32 %v2361, -0.001358992
        %v2363 = vadd.f32 %v2362, 0.041655596
        %v2364 = vmul.f32 %v2361, %v2363
        %v2365 = vadd.f32 %v2364, -0.4999988
        %v2366 = vmul.f32 %v2361, %v2365
        %v2367 = vadd.f32 1.0, %v2366
        %v2368 = vmul.f32 %v2359, %v2359
        %v2369 = vmul.f32 %v2368, -0.00019511016
        %v2370 = vadd.f32 %v2369, 0.008332121
        %v2371 = vmul.f32 %v2368, %v2370
        %v2372 = vadd.f32 %v2371, -0.16666654
        %v2373 = vmul.f32 %v2368, %v2372
        %v2374 = vadd.f32 %v2373, 1.0
        %v2375 = vmul.f32 %v2374, %v2359
        %vm2376 = vweird.f32 %v377
        %v2377 = vand.u32 %v2360, 3
        %vm2378 = vcmp.lt.s32.totalorder %v2377, 2
        %vm2379 = vcmp.eq.s32.totalorder %v2377, 0
        %v2380 = vxor.u32 %v2375, 2147483648
        %v2381 = vsel %vm2379, %v2367, %v2380
        %vm2382 = vcmp.eq.s32.totalorder %v2377, 2
        %v2383 = vxor.u32 %v2367, 2147483648
        %v2384 = vsel %vm2382, %v2383, %v2375
        %v2385 = vsel %vm2378, %v2381, %v2384
        %v2386 = vsel %vm2376, nan, %v2385
        %v2387 = vand.u32 2147483647, %v378
        %vm2388 = vcmp.le.f32.partialorder %v2387, 0.7853982
        %vm2389 = vcmp.lt.s32.totalorder %v378, 0
        %v2390 = vand.u32 %v378, 2139095040
        %v2391 = vshrl.u32 %v2390, 23
        %v2392 = vsub.s32 %v2391, 127
        %v2393 = vand.u32 2147483647, %v378
        %v2394 = vand.u32 %v2393, 8388607
        %v2395 = vor.u32 %v2394, 8388608
        %v2396 = vsub.s32 0, %v2395
        %v2397 = vadd.s32 %v2392, 1
        %vm2398 = vcmp.gt.s32.totalorder %v2397, 0
        %v2399 = vsel %vm2398, %v2397, 0
        %v2400 = vshrl.u32 %v2399, 5
        %v2401 = vand.u32 %v2399, 31
        %v2402 = vsub.s32 32, %v2401
        %v2403 = vshrl.u32 683565275, %v2402
        %v2404 = vshll.u32 683565275, %v2401
        %v2405 = vshrl.u32 2475754826, %v2402
        %v2406 = vor.u32 %v2404, %v2405
        %v2407 = vshll.u32 2475754826, %v2401
        %v2408 = vshrl.u32 2131351028, %v2402
        %v2409 = vor.u32 %v2407, %v2408
        %v2410 = vshll.u32 2131351028, %v2401
        %v2411 = vshrl.u32 2102212464, %v2402
        %v2412 = vor.u32 %v2410, %v2411
        %v2413 = vshll.u32 2102212464, %v2401
        %v2414 = vshrl.u32 920167782, %v2402
        %v2415 = vor.u32 %v2413, %v2414
        %v2416 = vshll.u32 920167782, %v2401
        %v2417 = vshrl.u32 1326507024, %v2402
        %v2418 = vor.u32 %v2416, %v2417
        %vm2419 = vcmp.lt.s32.totalorder %v2400, 1
        %vm2420 = vcmp.lt.s32.totalorder %v2400, 2
        %vm2421 = vcmp.lt.s32.totalorder %v2400, 3
        %vm2422 = vcmp.lt.s32.totalorder %v2400, 4
        %v2423 = vsel %vm2419, %v2403, %v2406
        %v2424 = vsel %vm2422, %v2412, 2102212464
        %v2425 = vsel %vm2421, %v2409, %v2424
        %v2426 = vsel %vm2420, %v2423, %v2425
        %v2427 = vsel %vm2419, %v2406, %v2409
        %v2428 = vsel %vm2422, %v2415, 920167782
        %v2429 = vsel %vm2421, %v2412, %v2428
        %v2430 = vsel %vm2420, %v2427, %v2429
        %v2431 = vsel %vm2419, %v2409, %v2412
        %v2432 = vsel %vm2422, %v2418, 1326507024
        %v2433 = vsel %vm2421, %v2415, %v2432
        %v2434 = vsel %vm2420, %v2431, %v2433
        %v2435 = vshll.u32 %v2395, 8
        %v2436 = vand.u32 %v2435, 65535
        %v2437 = vshrl.u32 %v2435, 16
        %v2438 = vand.u32 %v2434, 65535
        %v2439 = vshrl.u32 %v2434, 16
        %v2440 = vmul.u32 %v2436, %v2438
        %v2441 = vmul.u32 %v2436, %v2439
        %v2442 = vmul.u32 %v2437, %v2438
        %v2443 = vmul.u32 %v2437, %v2439
        %v2444 = vshll.u32 %v2441, 16
        %v2445 = vshrl.u32 %v2441, 16
        %v2446 = vshll.u32 %v2442, 16
        %v2447 = vshrl.u32 %v2442, 16
        %vm2448 = vc.u32 %v2440, %v2444
        %v2449 = vsel %vm2448, 1, 0
        %v2450 = vadd.s32 %v2440, %v2444
        %v2451 = vadd.s32 %v2443, %v2449
        %vm2452 = vc.u32 %v2450, %v2446
        %v2453 = vsel %vm2452, 1, 0
        %v2454 = vadd.s32 %v2450, %v2446
        %v2455 = vadd.s32 %v2451, %v2453
        %v2456 = vadd.s32 %v2455, %v2445
        %v2457 = vadd.s32 %v2456, %v2447
        %v2458 = vand.u32 %v2435, 65535
        %v2459 = vshrl.u32 %v2435, 16
        %v2460 = vand.u32 %v2430, 65535
        %v2461 = vshrl.u32 %v2430, 16
        %v2462 = vmul.u32 %v2458, %v2460
        %v2463 = vmul.u32 %v2458, %v2461
        %v2464 = vmul.u32 %v2459, %v2460
        %v2465 = vmul.u32 %v2459, %v2461
        %v2466 = vshll.u32 %v2463, 16
        %v2467 = vshrl.u32 %v2463, 16
        %v2468 = vshll.u32 %v2464, 16
        %v2469 = vshrl.u32 %v2464, 16
        %vm2470 = vc.u32 %v2462, %v2466
        %v2471 = vsel %vm2470, 1, 0
        %v2472 = vadd.s32 %v2462, %v2466
        %v2473 = vadd.s32 %v2465, %v2471
        %vm2474 = vc.u32 %v2472, %v2468
        %v2475 = vsel %vm2474, 1, 0
        %v2476 = vadd.s32 %v2472, %v2468
        %v2477 = vadd.s32 %v2473, %v2475
        %v2478 = vadd.s32 %v2477, %v2467
        %v2479 = vadd.s32 %v2478, %v2469
        %v2480 = vmul.u32 %v2435, %v2426
        %v2481 = vadd.s32 %v2457, %v2476
        %vm2482 = vc.u32 %v2457, %v2476
        %v2483 = vadd.s32 %v2479, 1
        %v2484 = vsel %vm2482, %v2483, %v2479
        %v2485 = vadd.s32 %v2480, %v2484
        %v2486 = vadd.s32 %v2485, 536870912
        %v2487 = vshrl.u32 %v2486, 30
        %v2488 = vshll.u32 %v2487, 30
        %v2489 = vsub.s32 %v2485, %v2488
        %vm2490 = vcmp.lt.s32.totalorder %v2489, 0
        %v2491 = vsub.s32 0, %v2489
        %v2492 = vsel %vm2490, %v2491, %v2489
        %v2493 = vclz %v2492
        %v2494 = vsub.s32 %v2493, 2
        %vm2495 = vcmp.gt.s32.totalorder 0, %v2494
        %v2496 = vsel %vm2495, 0, %v2494
        %v2497 = vsub.s32 32, %v2496
        %v2498 = vshll.u32 %v2489, %v2496
        %v2499 = vshrl.u32 %v2481, %v2497
        %v2500 = vor.u32 %v2498, %v2499
        %v2501 = vsub.s32 4294967266, %v2496
        %v2502 = vadd.s32 %v2501, 127
        %v2503 = vshll.u32 %v2502, 23
        %v2504 = vor.u32 4788187, %v2503
        %v2505 = vand.u32 2147483647, %v2504
        %v2507 = vcvt.s32.f32 %v2500
        %v2508 = vmul.f32 %v2507, %v2505
        %v2509 = vxor.u32 %v2508, 2147483648
        %v2510 = vsel %vm2389, %v2509, %v2508
        %v2511 = vsub.s32 4, %v2487
        %v2512 = vsel %vm2389, %v2511, %v2487
        %v2513 = vsel %vm2388, %v378, %v2510
        %v2514 = vsel %vm2388, 0, %v2512
        %v2515 = vmul.f32 %v2513, %v2513
        %v2516 = vmul.f32 %v2515, -0.001358992
        %v2517 = vadd.f32 %v2516, 0.041655596
        %v2518 = vmul.f32 %v2515, %v2517
        %v2519 = vadd.f32 %v2518, -0.4999988
        %v2520 = vmul.f32 %v2515, %v2519
        %v2521 = vadd.f32 1.0, %v2520
        %v2522 = vmul.f32 %v2513, %v2513
        %v2523 = vmul.f32 %v2522, -0.00019511016
        %v2524 = vadd.f32 %v2523, 0.008332121
        %v2525 = vmul.f32 %v2522, %v2524
        %v2526 = vadd.f32 %v2525, -0.16666654
        %v2527 = vmul.f32 %v2522, %v2526
        %v2528 = vadd.f32 %v2527, 1.0
        %v2529 = vmul.f32 %v2528, %v2513
        %vm2530 = vweird.f32 %v378
        %v2531 = vand.u32 %v2514, 3
        %vm2532 = vcmp.lt.s32.totalorder %v2531, 2
        %vm2533 = vcmp.eq.s32.totalorder %v2531, 0
        %v2534 = vxor.u32 %v2529, 2147483648
        %v2535 = vsel %vm2533, %v2521, %v2534
        %vm2536 = vcmp.eq.s32.totalorder %v2531, 2
        %v2537 = vxor.u32 %v2521, 2147483648
        %v2538 = vsel %vm2536, %v2537, %v2529
        %v2539 = vsel %vm2532, %v2535, %v2538
        %v2540 = vsel %vm2530, nan, %v2539
        %v2541 = vand.u32 2147483647, %v379
        %vm2542 = vcmp.le.f32.partialorder %v2541, 0.7853982
        %vm2543 = vcmp.lt.s32.totalorder %v379, 0
        %v2544 = vand.u32 %v379, 2139095040
        %v2545 = vshrl.u32 %v2544, 23
        %v2546 = vsub.s32 %v2545, 127
        %v2547 = vand.u32 2147483647, %v379
        %v2548 = vand.u32 %v2547, 8388607
        %v2549 = vor.u32 %v2548, 8388608
        %v2550 = vsub.s32 0, %v2549
        %v2551 = vadd.s32 %v2546, 1
        %vm2552 = vcmp.gt.s32.totalorder %v2551, 0
        %v2553 = vsel %vm2552, %v2551, 0
        %v2554 = vshrl.u32 %v2553, 5
        %v2555 = vand.u32 %v2553, 31
        %v2556 = vsub.s32 32, %v2555
        %v2557 = vshrl.u32 683565275, %v2556
        %v2558 = vshll.u32 683565275, %v2555
        %v2559 = vshrl.u32 2475754826, %v2556
        %v2560 = vor.u32 %v2558, %v2559
        %v2561 = vshll.u32 2475754826, %v2555
        %v2562 = vshrl.u32 2131351028, %v2556
        %v2563 = vor.u32 %v2561, %v2562
        %v2564 = vshll.u32 2131351028, %v2555
        %v2565 = vshrl.u32 2102212464, %v2556
        %v2566 = vor.u32 %v2564, %v2565
        %v2567 = vshll.u32 2102212464, %v2555
        %v2568 = vshrl.u32 920167782, %v2556
        %v2569 = vor.u32 %v2567, %v2568
        %v2570 = vshll.u32 920167782, %v2555
        %v2571 = vshrl.u32 1326507024, %v2556
        %v2572 = vor.u32 %v2570, %v2571
        %vm2573 = vcmp.lt.s32.totalorder %v2554, 1
        %vm2574 = vcmp.lt.s32.totalorder %v2554, 2
        %vm2575 = vcmp.lt.s32.totalorder %v2554, 3
        %vm2576 = vcmp.lt.s32.totalorder %v2554, 4
        %v2577 = vsel %vm2573, %v2557, %v2560
        %v2578 = vsel %vm2576, %v2566, 2102212464
        %v2579 = vsel %vm2575, %v2563, %v2578
        %v2580 = vsel %vm2574, %v2577, %v2579
        %v2581 = vsel %vm2573, %v2560, %v2563
        %v2582 = vsel %vm2576, %v2569, 920167782
        %v2583 = vsel %vm2575, %v2566, %v2582
        %v2584 = vsel %vm2574, %v2581, %v2583
        %v2585 = vsel %vm2573, %v2563, %v2566
        %v2586 = vsel %vm2576, %v2572, 1326507024
        %v2587 = vsel %vm2575, %v2569, %v2586
        %v2588 = vsel %vm2574, %v2585, %v2587
        %v2589 = vshll.u32 %v2549, 8
        %v2590 = vand.u32 %v2589, 65535
        %v2591 = vshrl.u32 %v2589, 16
        %v2592 = vand.u32 %v2588, 65535
        %v2593 = vshrl.u32 %v2588, 16
        %v2594 = vmul.u32 %v2590, %v2592
        %v2595 = vmul.u32 %v2590, %v2593
        %v2596 = vmul.u32 %v2591, %v2592
        %v2597 = vmul.u32 %v2591, %v2593
        %v2598 = vshll.u32 %v2595, 16
        %v2599 = vshrl.u32 %v2595, 16
        %v2600 = vshll.u32 %v2596, 16
        %v2601 = vshrl.u32 %v2596, 16
        %vm2602 = vc.u32 %v2594, %v2598
        %v2603 = vsel %vm2602, 1, 0
        %v2604 = vadd.s32 %v2594, %v2598
        %v2605 = vadd.s32 %v2597, %v2603
        %vm2606 = vc.u32 %v2604, %v2600
        %v2607 = vsel %vm2606, 1, 0
        %v2608 = vadd.s32 %v2604, %v2600
        %v2609 = vadd.s32 %v2605, %v2607
        %v2610 = vadd.s32 %v2609, %v2599
        %v2611 = vadd.s32 %v2610, %v2601
        %v2612 = vand.u32 %v2589, 65535
        %v2613 = vshrl.u32 %v2589, 16
        %v2614 = vand.u32 %v2584, 65535
        %v2615 = vshrl.u32 %v2584, 16
        %v2616 = vmul.u32 %v2612, %v2614
        %v2617 = vmul.u32 %v2612, %v2615
        %v2618 = vmul.u32 %v2613, %v2614
        %v2619 = vmul.u32 %v2613, %v2615
        %v2620 = vshll.u32 %v2617, 16
        %v2621 = vshrl.u32 %v2617, 16
        %v2622 = vshll.u32 %v2618, 16
        %v2623 = vshrl.u32 %v2618, 16
        %vm2624 = vc.u32 %v2616, %v2620
        %v2625 = vsel %vm2624, 1, 0
        %v2626 = vadd.s32 %v2616, %v2620
        %v2627 = vadd.s32 %v2619, %v2625
        %vm2628 = vc.u32 %v2626, %v2622
        %v2629 = vsel %vm2628, 1, 0
        %v2630 = vadd.s32 %v2626, %v2622
        %v2631 = vadd.s32 %v2627, %v2629
        %v2632 = vadd.s32 %v2631, %v2621
        %v2633 = vadd.s32 %v2632, %v2623
        %v2634 = vmul.u32 %v2589, %v2580
        %v2635 = vadd.s32 %v2611, %v2630
        %vm2636 = vc.u32 %v2611, %v2630
        %v2637 = vadd.s32 %v2633, 1
        %v2638 = vsel %vm2636, %v2637, %v2633
        %v2639 = vadd.s32 %v2634, %v2638
        %v2640 = vadd.s32 %v2639, 536870912
        %v2641 = vshrl.u32 %v2640, 30
        %v2642 = vshll.u32 %v2641, 30
        %v2643 = vsub.s32 %v2639, %v2642
        %vm2644 = vcmp.lt.s32.totalorder %v2643, 0
        %v2645 = vsub.s32 0, %v2643
        %v2646 = vsel %vm2644, %v2645, %v2643
        %v2647 = vclz %v2646
        %v2648 = vsub.s32 %v2647, 2
        %vm2649 = vcmp.gt.s32.totalorder 0, %v2648
        %v2650 = vsel %vm2649, 0, %v2648
        %v2651 = vsub.s32 32, %v2650
        %v2652 = vshll.u32 %v2643, %v2650
        %v2653 = vshrl.u32 %v2635, %v2651
        %v2654 = vor.u32 %v2652, %v2653
        %v2655 = vsub.s32 4294967266, %v2650
        %v2656 = vadd.s32 %v2655, 127
        %v2657 = vshll.u32 %v2656, 23
        %v2658 = vor.u32 4788187, %v2657
        %v2659 = vand.u32 2147483647, %v2658
        %v2661 = vcvt.s32.f32 %v2654
        %v2662 = vmul.f32 %v2661, %v2659
        %v2663 = vxor.u32 %v2662, 2147483648
        %v2664 = vsel %vm2543, %v2663, %v2662
        %v2665 = vsub.s32 4, %v2641
        %v2666 = vsel %vm2543, %v2665, %v2641
        %v2667 = vsel %vm2542, %v379, %v2664
        %v2668 = vsel %vm2542, 0, %v2666
        %v2669 = vmul.f32 %v2667, %v2667
        %v2670 = vmul.f32 %v2669, -0.001358992
        %v2671 = vadd.f32 %v2670, 0.041655596
        %v2672 = vmul.f32 %v2669, %v2671
        %v2673 = vadd.f32 %v2672, -0.4999988
        %v2674 = vmul.f32 %v2669, %v2673
        %v2675 = vadd.f32 1.0, %v2674
        %v2676 = vmul.f32 %v2667, %v2667
        %v2677 = vmul.f32 %v2676, -0.00019511016
        %v2678 = vadd.f32 %v2677, 0.008332121
        %v2679 = vmul.f32 %v2676, %v2678
        %v2680 = vadd.f32 %v2679, -0.16666654
        %v2681 = vmul.f32 %v2676, %v2680
        %v2682 = vadd.f32 %v2681, 1.0
        %v2683 = vmul.f32 %v2682, %v2667
        %vm2684 = vweird.f32 %v379
        %v2685 = vand.u32 %v2668, 3
        %vm2686 = vcmp.lt.s32.totalorder %v2685, 2
        %vm2687 = vcmp.eq.s32.totalorder %v2685, 0
        %v2688 = vxor.u32 %v2683, 2147483648
        %v2689 = vsel %vm2687, %v2675, %v2688
        %vm2690 = vcmp.eq.s32.totalorder %v2685, 2
        %v2691 = vxor.u32 %v2675, 2147483648
        %v2692 = vsel %vm2690, %v2691, %v2683
        %v2693 = vsel %vm2686, %v2689, %v2692
        %v2694 = vsel %vm2684, nan, %v2693
        %v2695 = vand.u32 2147483647, %v380
        %vm2696 = vcmp.le.f32.partialorder %v2695, 0.7853982
        %vm2697 = vcmp.lt.s32.totalorder %v380, 0
        %v2698 = vand.u32 %v380, 2139095040
        %v2699 = vshrl.u32 %v2698, 23
        %v2700 = vsub.s32 %v2699, 127
        %v2701 = vand.u32 2147483647, %v380
        %v2702 = vand.u32 %v2701, 8388607
        %v2703 = vor.u32 %v2702, 8388608
        %v2704 = vsub.s32 0, %v2703
        %v2705 = vadd.s32 %v2700, 1
        %vm2706 = vcmp.gt.s32.totalorder %v2705, 0
        %v2707 = vsel %vm2706, %v2705, 0
        %v2708 = vshrl.u32 %v2707, 5
        %v2709 = vand.u32 %v2707, 31
        %v2710 = vsub.s32 32, %v2709
        %v2711 = vshrl.u32 683565275, %v2710
        %v2712 = vshll.u32 683565275, %v2709
        %v2713 = vshrl.u32 2475754826, %v2710
        %v2714 = vor.u32 %v2712, %v2713
        %v2715 = vshll.u32 2475754826, %v2709
        %v2716 = vshrl.u32 2131351028, %v2710
        %v2717 = vor.u32 %v2715, %v2716
        %v2718 = vshll.u32 2131351028, %v2709
        %v2719 = vshrl.u32 2102212464, %v2710
        %v2720 = vor.u32 %v2718, %v2719
        %v2721 = vshll.u32 2102212464, %v2709
        %v2722 = vshrl.u32 920167782, %v2710
        %v2723 = vor.u32 %v2721, %v2722
        %v2724 = vshll.u32 920167782, %v2709
        %v2725 = vshrl.u32 1326507024, %v2710
        %v2726 = vor.u32 %v2724, %v2725
        %vm2727 = vcmp.lt.s32.totalorder %v2708, 1
        %vm2728 = vcmp.lt.s32.totalorder %v2708, 2
        %vm2729 = vcmp.lt.s32.totalorder %v2708, 3
        %vm2730 = vcmp.lt.s32.totalorder %v2708, 4
        %v2731 = vsel %vm2727, %v2711, %v2714
        %v2732 = vsel %vm2730, %v2720, 2102212464
        %v2733 = vsel %vm2729, %v2717, %v2732
        %v2734 = vsel %vm2728, %v2731, %v2733
        %v2735 = vsel %vm2727, %v2714, %v2717
        %v2736 = vsel %vm2730, %v2723, 920167782
        %v2737 = vsel %vm2729, %v2720, %v2736
        %v2738 = vsel %vm2728, %v2735, %v2737
        %v2739 = vsel %vm2727, %v2717, %v2720
        %v2740 = vsel %vm2730, %v2726, 1326507024
        %v2741 = vsel %vm2729, %v2723, %v2740
        %v2742 = vsel %vm2728, %v2739, %v2741
        %v2743 = vshll.u32 %v2703, 8
        %v2744 = vand.u32 %v2743, 65535
        %v2745 = vshrl.u32 %v2743, 16
        %v2746 = vand.u32 %v2742, 65535
        %v2747 = vshrl.u32 %v2742, 16
        %v2748 = vmul.u32 %v2744, %v2746
        %v2749 = vmul.u32 %v2744, %v2747
        %v2750 = vmul.u32 %v2745, %v2746
        %v2751 = vmul.u32 %v2745, %v2747
        %v2752 = vshll.u32 %v2749, 16
        %v2753 = vshrl.u32 %v2749, 16
        %v2754 = vshll.u32 %v2750, 16
        %v2755 = vshrl.u32 %v2750, 16
        %vm2756 = vc.u32 %v2748, %v2752
        %v2757 = vsel %vm2756, 1, 0
        %v2758 = vadd.s32 %v2748, %v2752
        %v2759 = vadd.s32 %v2751, %v2757
        %vm2760 = vc.u32 %v2758, %v2754
        %v2761 = vsel %vm2760, 1, 0
        %v2762 = vadd.s32 %v2758, %v2754
        %v2763 = vadd.s32 %v2759, %v2761
        %v2764 = vadd.s32 %v2763, %v2753
        %v2765 = vadd.s32 %v2764, %v2755
        %v2766 = vand.u32 %v2743, 65535
        %v2767 = vshrl.u32 %v2743, 16
        %v2768 = vand.u32 %v2738, 65535
        %v2769 = vshrl.u32 %v2738, 16
        %v2770 = vmul.u32 %v2766, %v2768
        %v2771 = vmul.u32 %v2766, %v2769
        %v2772 = vmul.u32 %v2767, %v2768
        %v2773 = vmul.u32 %v2767, %v2769
        %v2774 = vshll.u32 %v2771, 16
        %v2775 = vshrl.u32 %v2771, 16
        %v2776 = vshll.u32 %v2772, 16
        %v2777 = vshrl.u32 %v2772, 16
        %vm2778 = vc.u32 %v2770, %v2774
        %v2779 = vsel %vm2778, 1, 0
        %v2780 = vadd.s32 %v2770, %v2774
        %v2781 = vadd.s32 %v2773, %v2779
        %vm2782 = vc.u32 %v2780, %v2776
        %v2783 = vsel %vm2782, 1, 0
        %v2784 = vadd.s32 %v2780, %v2776
        %v2785 = vadd.s32 %v2781, %v2783
        %v2786 = vadd.s32 %v2785, %v2775
        %v2787 = vadd.s32 %v2786, %v2777
        %v2788 = vmul.u32 %v2743, %v2734
        %v2789 = vadd.s32 %v2765, %v2784
        %vm2790 = vc.u32 %v2765, %v2784
        %v2791 = vadd.s32 %v2787, 1
        %v2792 = vsel %vm2790, %v2791, %v2787
        %v2793 = vadd.s32 %v2788, %v2792
        %v2794 = vadd.s32 %v2793, 536870912
        %v2795 = vshrl.u32 %v2794, 30
        %v2796 = vshll.u32 %v2795, 30
        %v2797 = vsub.s32 %v2793, %v2796
        %vm2798 = vcmp.lt.s32.totalorder %v2797, 0
        %v2799 = vsub.s32 0, %v2797
        %v2800 = vsel %vm2798, %v2799, %v2797
        %v2801 = vclz %v2800
        %v2802 = vsub.s32 %v2801, 2
        %vm2803 = vcmp.gt.s32.totalorder 0, %v2802
        %v2804 = vsel %vm2803, 0, %v2802
        %v2805 = vsub.s32 32, %v2804
        %v2806 = vshll.u32 %v2797, %v2804
        %v2807 = vshrl.u32 %v2789, %v2805
        %v2808 = vor.u32 %v2806, %v2807
        %v2809 = vsub.s32 4294967266, %v2804
        %v2810 = vadd.s32 %v2809, 127
        %v2811 = vshll.u32 %v2810, 23
        %v2812 = vor.u32 4788187, %v2811
        %v2813 = vand.u32 2147483647, %v2812
        %v2815 = vcvt.s32.f32 %v2808
        %v2816 = vmul.f32 %v2815, %v2813
        %v2817 = vxor.u32 %v2816, 2147483648
        %v2818 = vsel %vm2697, %v2817, %v2816
        %v2819 = vsub.s32 4, %v2795
        %v2820 = vsel %vm2697, %v2819, %v2795
        %v2821 = vsel %vm2696, %v380, %v2818
        %v2822 = vsel %vm2696, 0, %v2820
        %v2823 = vmul.f32 %v2821, %v2821
        %v2824 = vmul.f32 %v2823, -0.001358992
        %v2825 = vadd.f32 %v2824, 0.041655596
        %v2826 = vmul.f32 %v2823, %v2825
        %v2827 = vadd.f32 %v2826, -0.4999988
        %v2828 = vmul.f32 %v2823, %v2827
        %v2829 = vadd.f32 1.0, %v2828
        %v2830 = vmul.f32 %v2821, %v2821
        %v2831 = vmul.f32 %v2830, -0.00019511016
        %v2832 = vadd.f32 %v2831, 0.008332121
        %v2833 = vmul.f32 %v2830, %v2832
        %v2834 = vadd.f32 %v2833, -0.16666654
        %v2835 = vmul.f32 %v2830, %v2834
        %v2836 = vadd.f32 %v2835, 1.0
        %v2837 = vmul.f32 %v2836, %v2821
        %vm2838 = vweird.f32 %v380
        %v2839 = vand.u32 %v2822, 3
        %vm2840 = vcmp.lt.s32.totalorder %v2839, 2
        %vm2841 = vcmp.eq.s32.totalorder %v2839, 0
        %v2842 = vxor.u32 %v2837, 2147483648
        %v2843 = vsel %vm2841, %v2829, %v2842
        %vm2844 = vcmp.eq.s32.totalorder %v2839, 2
        %v2845 = vxor.u32 %v2829, 2147483648
        %v2846 = vsel %vm2844, %v2845, %v2837
        %v2847 = vsel %vm2840, %v2843, %v2846
        %v2848 = vsel %vm2838, nan, %v2847
        %v2849 = vand.u32 2147483647, %v381
        %vm2850 = vcmp.le.f32.partialorder %v2849, 0.7853982
        %vm2851 = vcmp.lt.s32.totalorder %v381, 0
        %v2852 = vand.u32 %v381, 2139095040
        %v2853 = vshrl.u32 %v2852, 23
        %v2854 = vsub.s32 %v2853, 127
        %v2855 = vand.u32 2147483647, %v381
        %v2856 = vand.u32 %v2855, 8388607
        %v2857 = vor.u32 %v2856, 8388608
        %v2858 = vsub.s32 0, %v2857
        %v2859 = vadd.s32 %v2854, 1
        %vm2860 = vcmp.gt.s32.totalorder %v2859, 0
        %v2861 = vsel %vm2860, %v2859, 0
        %v2862 = vshrl.u32 %v2861, 5
        %v2863 = vand.u32 %v2861, 31
        %v2864 = vsub.s32 32, %v2863
        %v2865 = vshrl.u32 683565275, %v2864
        %v2866 = vshll.u32 683565275, %v2863
        %v2867 = vshrl.u32 2475754826, %v2864
        %v2868 = vor.u32 %v2866, %v2867
        %v2869 = vshll.u32 2475754826, %v2863
        %v2870 = vshrl.u32 2131351028, %v2864
        %v2871 = vor.u32 %v2869, %v2870
        %v2872 = vshll.u32 2131351028, %v2863
        %v2873 = vshrl.u32 2102212464, %v2864
        %v2874 = vor.u32 %v2872, %v2873
        %v2875 = vshll.u32 2102212464, %v2863
        %v2876 = vshrl.u32 920167782, %v2864
        %v2877 = vor.u32 %v2875, %v2876
        %v2878 = vshll.u32 920167782, %v2863
        %v2879 = vshrl.u32 1326507024, %v2864
        %v2880 = vor.u32 %v2878, %v2879
        %vm2881 = vcmp.lt.s32.totalorder %v2862, 1
        %vm2882 = vcmp.lt.s32.totalorder %v2862, 2
        %vm2883 = vcmp.lt.s32.totalorder %v2862, 3
        %vm2884 = vcmp.lt.s32.totalorder %v2862, 4
        %v2885 = vsel %vm2881, %v2865, %v2868
        %v2886 = vsel %vm2884, %v2874, 2102212464
        %v2887 = vsel %vm2883, %v2871, %v2886
        %v2888 = vsel %vm2882, %v2885, %v2887
        %v2889 = vsel %vm2881, %v2868, %v2871
        %v2890 = vsel %vm2884, %v2877, 920167782
        %v2891 = vsel %vm2883, %v2874, %v2890
        %v2892 = vsel %vm2882, %v2889, %v2891
        %v2893 = vsel %vm2881, %v2871, %v2874
        %v2894 = vsel %vm2884, %v2880, 1326507024
        %v2895 = vsel %vm2883, %v2877, %v2894
        %v2896 = vsel %vm2882, %v2893, %v2895
        %v2897 = vshll.u32 %v2857, 8
        %v2898 = vand.u32 %v2897, 65535
        %v2899 = vshrl.u32 %v2897, 16
        %v2900 = vand.u32 %v2896, 65535
        %v2901 = vshrl.u32 %v2896, 16
        %v2902 = vmul.u32 %v2898, %v2900
        %v2903 = vmul.u32 %v2898, %v2901
        %v2904 = vmul.u32 %v2899, %v2900
        %v2905 = vmul.u32 %v2899, %v2901
        %v2906 = vshll.u32 %v2903, 16
        %v2907 = vshrl.u32 %v2903, 16
        %v2908 = vshll.u32 %v2904, 16
        %v2909 = vshrl.u32 %v2904, 16
        %vm2910 = vc.u32 %v2902, %v2906
        %v2911 = vsel %vm2910, 1, 0
        %v2912 = vadd.s32 %v2902, %v2906
        %v2913 = vadd.s32 %v2905, %v2911
        %vm2914 = vc.u32 %v2912, %v2908
        %v2915 = vsel %vm2914, 1, 0
        %v2916 = vadd.s32 %v2912, %v2908
        %v2917 = vadd.s32 %v2913, %v2915
        %v2918 = vadd.s32 %v2917, %v2907
        %v2919 = vadd.s32 %v2918, %v2909
        %v2920 = vand.u32 %v2897, 65535
        %v2921 = vshrl.u32 %v2897, 16
        %v2922 = vand.u32 %v2892, 65535
        %v2923 = vshrl.u32 %v2892, 16
        %v2924 = vmul.u32 %v2920, %v2922
        %v2925 = vmul.u32 %v2920, %v2923
        %v2926 = vmul.u32 %v2921, %v2922
        %v2927 = vmul.u32 %v2921, %v2923
        %v2928 = vshll.u32 %v2925, 16
        %v2929 = vshrl.u32 %v2925, 16
        %v2930 = vshll.u32 %v2926, 16
        %v2931 = vshrl.u32 %v2926, 16
        %vm2932 = vc.u32 %v2924, %v2928
        %v2933 = vsel %vm2932, 1, 0
        %v2934 = vadd.s32 %v2924, %v2928
        %v2935 = vadd.s32 %v2927, %v2933
        %vm2936 = vc.u32 %v2934, %v2930
        %v2937 = vsel %vm2936, 1, 0
        %v2938 = vadd.s32 %v2934, %v2930
        %v2939 = vadd.s32 %v2935, %v2937
        %v2940 = vadd.s32 %v2939, %v2929
        %v2941 = vadd.s32 %v2940, %v2931
        %v2942 = vmul.u32 %v2897, %v2888
        %v2943 = vadd.s32 %v2919, %v2938
        %vm2944 = vc.u32 %v2919, %v2938
        %v2945 = vadd.s32 %v2941, 1
        %v2946 = vsel %vm2944, %v2945, %v2941
        %v2947 = vadd.s32 %v2942, %v2946
        %v2948 = vadd.s32 %v2947, 536870912
        %v2949 = vshrl.u32 %v2948, 30
        %v2950 = vshll.u32 %v2949, 30
        %v2951 = vsub.s32 %v2947, %v2950
        %vm2952 = vcmp.lt.s32.totalorder %v2951, 0
        %v2953 = vsub.s32 0, %v2951
        %v2954 = vsel %vm2952, %v2953, %v2951
        %v2955 = vclz %v2954
        %v2956 = vsub.s32 %v2955, 2
        %vm2957 = vcmp.gt.s32.totalorder 0, %v2956
        %v2958 = vsel %vm2957, 0, %v2956
        %v2959 = vsub.s32 32, %v2958
        %v2960 = vshll.u32 %v2951, %v2958
        %v2961 = vshrl.u32 %v2943, %v2959
        %v2962 = vor.u32 %v2960, %v2961
        %v2963 = vsub.s32 4294967266, %v2958
        %v2964 = vadd.s32 %v2963, 127
        %v2965 = vshll.u32 %v2964, 23
        %v2966 = vor.u32 4788187, %v2965
        %v2967 = vand.u32 2147483647, %v2966
        %v2969 = vcvt.s32.f32 %v2962
        %v2970 = vmul.f32 %v2969, %v2967
        %v2971 = vxor.u32 %v2970, 2147483648
        %v2972 = vsel %vm2851, %v2971, %v2970
        %v2973 = vsub.s32 4, %v2949
        %v2974 = vsel %vm2851, %v2973, %v2949
        %v2975 = vsel %vm2850, %v381, %v2972
        %v2976 = vsel %vm2850, 0, %v2974
        %v2977 = vmul.f32 %v2975, %v2975
        %v2978 = vmul.f32 %v2977, -0.001358992
        %v2979 = vadd.f32 %v2978, 0.041655596
        %v2980 = vmul.f32 %v2977, %v2979
        %v2981 = vadd.f32 %v2980, -0.4999988
        %v2982 = vmul.f32 %v2977, %v2981
        %v2983 = vadd.f32 1.0, %v2982
        %v2984 = vmul.f32 %v2975, %v2975
        %v2985 = vmul.f32 %v2984, -0.00019511016
        %v2986 = vadd.f32 %v2985, 0.008332121
        %v2987 = vmul.f32 %v2984, %v2986
        %v2988 = vadd.f32 %v2987, -0.16666654
        %v2989 = vmul.f32 %v2984, %v2988
        %v2990 = vadd.f32 %v2989, 1.0
        %v2991 = vmul.f32 %v2990, %v2975
        %vm2992 = vweird.f32 %v381
        %v2993 = vand.u32 %v2976, 3
        %vm2994 = vcmp.lt.s32.totalorder %v2993, 2
        %vm2995 = vcmp.eq.s32.totalorder %v2993, 0
        %v2996 = vxor.u32 %v2991, 2147483648
        %v2997 = vsel %vm2995, %v2983, %v2996
        %vm2998 = vcmp.eq.s32.totalorder %v2993, 2
        %v2999 = vxor.u32 %v2983, 2147483648
        %v3000 = vsel %vm2998, %v2999, %v2991
        %v3001 = vsel %vm2994, %v2997, %v3000
        %v3002 = vsel %vm2992, nan, %v3001
        %v3003 = vand.u32 2147483647, %v382
        %vm3004 = vcmp.le.f32.partialorder %v3003, 0.7853982
        %vm3005 = vcmp.lt.s32.totalorder %v382, 0
        %v3006 = vand.u32 %v382, 2139095040
        %v3007 = vshrl.u32 %v3006, 23
        %v3008 = vsub.s32 %v3007, 127
        %v3009 = vand.u32 2147483647, %v382
        %v3010 = vand.u32 %v3009, 8388607
        %v3011 = vor.u32 %v3010, 8388608
        %v3012 = vsub.s32 0, %v3011
        %v3013 = vadd.s32 %v3008, 1
        %vm3014 = vcmp.gt.s32.totalorder %v3013, 0
        %v3015 = vsel %vm3014, %v3013, 0
        %v3016 = vshrl.u32 %v3015, 5
        %v3017 = vand.u32 %v3015, 31
        %v3018 = vsub.s32 32, %v3017
        %v3019 = vshrl.u32 683565275, %v3018
        %v3020 = vshll.u32 683565275, %v3017
        %v3021 = vshrl.u32 2475754826, %v3018
        %v3022 = vor.u32 %v3020, %v3021
        %v3023 = vshll.u32 2475754826, %v3017
        %v3024 = vshrl.u32 2131351028, %v3018
        %v3025 = vor.u32 %v3023, %v3024
        %v3026 = vshll.u32 2131351028, %v3017
        %v3027 = vshrl.u32 2102212464, %v3018
        %v3028 = vor.u32 %v3026, %v3027
        %v3029 = vshll.u32 2102212464, %v3017
        %v3030 = vshrl.u32 920167782, %v3018
        %v3031 = vor.u32 %v3029, %v3030
        %v3032 = vshll.u32 920167782, %v3017
        %v3033 = vshrl.u32 1326507024, %v3018
        %v3034 = vor.u32 %v3032, %v3033
        %vm3035 = vcmp.lt.s32.totalorder %v3016, 1
        %vm3036 = vcmp.lt.s32.totalorder %v3016, 2
        %vm3037 = vcmp.lt.s32.totalorder %v3016, 3
        %vm3038 = vcmp.lt.s32.totalorder %v3016, 4
        %v3039 = vsel %vm3035, %v3019, %v3022
        %v3040 = vsel %vm3038, %v3028, 2102212464
        %v3041 = vsel %vm3037, %v3025, %v3040
        %v3042 = vsel %vm3036, %v3039, %v3041
        %v3043 = vsel %vm3035, %v3022, %v3025
        %v3044 = vsel %vm3038, %v3031, 920167782
        %v3045 = vsel %vm3037, %v3028, %v3044
        %v3046 = vsel %vm3036, %v3043, %v3045
        %v3047 = vsel %vm3035, %v3025, %v3028
        %v3048 = vsel %vm3038, %v3034, 1326507024
        %v3049 = vsel %vm3037, %v3031, %v3048
        %v3050 = vsel %vm3036, %v3047, %v3049
        %v3051 = vshll.u32 %v3011, 8
        %v3052 = vand.u32 %v3051, 65535
        %v3053 = vshrl.u32 %v3051, 16
        %v3054 = vand.u32 %v3050, 65535
        %v3055 = vshrl.u32 %v3050, 16
        %v3056 = vmul.u32 %v3052, %v3054
        %v3057 = vmul.u32 %v3052, %v3055
        %v3058 = vmul.u32 %v3053, %v3054
        %v3059 = vmul.u32 %v3053, %v3055
        %v3060 = vshll.u32 %v3057, 16
        %v3061 = vshrl.u32 %v3057, 16
        %v3062 = vshll.u32 %v3058, 16
        %v3063 = vshrl.u32 %v3058, 16
        %vm3064 = vc.u32 %v3056, %v3060
        %v3065 = vsel %vm3064, 1, 0
        %v3066 = vadd.s32 %v3056, %v3060
        %v3067 = vadd.s32 %v3059, %v3065
        %vm3068 = vc.u32 %v3066, %v3062
        %v3069 = vsel %vm3068, 1, 0
        %v3070 = vadd.s32 %v3066, %v3062
        %v3071 = vadd.s32 %v3067, %v3069
        %v3072 = vadd.s32 %v3071, %v3061
        %v3073 = vadd.s32 %v3072, %v3063
        %v3074 = vand.u32 %v3051, 65535
        %v3075 = vshrl.u32 %v3051, 16
        %v3076 = vand.u32 %v3046, 65535
        %v3077 = vshrl.u32 %v3046, 16
        %v3078 = vmul.u32 %v3074, %v3076
        %v3079 = vmul.u32 %v3074, %v3077
        %v3080 = vmul.u32 %v3075, %v3076
        %v3081 = vmul.u32 %v3075, %v3077
        %v3082 = vshll.u32 %v3079, 16
        %v3083 = vshrl.u32 %v3079, 16
        %v3084 = vshll.u32 %v3080, 16
        %v3085 = vshrl.u32 %v3080, 16
        %vm3086 = vc.u32 %v3078, %v3082
        %v3087 = vsel %vm3086, 1, 0
        %v3088 = vadd.s32 %v3078, %v3082
        %v3089 = vadd.s32 %v3081, %v3087
        %vm3090 = vc.u32 %v3088, %v3084
        %v3091 = vsel %vm3090, 1, 0
        %v3092 = vadd.s32 %v3088, %v3084
        %v3093 = vadd.s32 %v3089, %v3091
        %v3094 = vadd.s32 %v3093, %v3083
        %v3095 = vadd.s32 %v3094, %v3085
        %v3096 = vmul.u32 %v3051, %v3042
        %v3097 = vadd.s32 %v3073, %v3092
        %vm3098 = vc.u32 %v3073, %v3092
        %v3099 = vadd.s32 %v3095, 1
        %v3100 = vsel %vm3098, %v3099, %v3095
        %v3101 = vadd.s32 %v3096, %v3100
        %v3102 = vadd.s32 %v3101, 536870912
        %v3103 = vshrl.u32 %v3102, 30
        %v3104 = vshll.u32 %v3103, 30
        %v3105 = vsub.s32 %v3101, %v3104
        %vm3106 = vcmp.lt.s32.totalorder %v3105, 0
        %v3107 = vsub.s32 0, %v3105
        %v3108 = vsel %vm3106, %v3107, %v3105
        %v3109 = vclz %v3108
        %v3110 = vsub.s32 %v3109, 2
        %vm3111 = vcmp.gt.s32.totalorder 0, %v3110
        %v3112 = vsel %vm3111, 0, %v3110
        %v3113 = vsub.s32 32, %v3112
        %v3114 = vshll.u32 %v3105, %v3112
        %v3115 = vshrl.u32 %v3097, %v3113
        %v3116 = vor.u32 %v3114, %v3115
        %v3117 = vsub.s32 4294967266, %v3112
        %v3118 = vadd.s32 %v3117, 127
        %v3119 = vshll.u32 %v3118, 23
        %v3120 = vor.u32 4788187, %v3119
        %v3121 = vand.u32 2147483647, %v3120
        %v3123 = vcvt.s32.f32 %v3116
        %v3124 = vmul.f32 %v3123, %v3121
        %v3125 = vxor.u32 %v3124, 2147483648
        %v3126 = vsel %vm3005, %v3125, %v3124
        %v3127 = vsub.s32 4, %v3103
        %v3128 = vsel %vm3005, %v3127, %v3103
        %v3129 = vsel %vm3004, %v382, %v3126
        %v3130 = vsel %vm3004, 0, %v3128
        %v3131 = vmul.f32 %v3129, %v3129
        %v3132 = vmul.f32 %v3131, -0.001358992
        %v3133 = vadd.f32 %v3132, 0.041655596
        %v3134 = vmul.f32 %v3131, %v3133
        %v3135 = vadd.f32 %v3134, -0.4999988
        %v3136 = vmul.f32 %v3131, %v3135
        %v3137 = vadd.f32 1.0, %v3136
        %v3138 = vmul.f32 %v3129, %v3129
        %v3139 = vmul.f32 %v3138, -0.00019511016
        %v3140 = vadd.f32 %v3139, 0.008332121
        %v3141 = vmul.f32 %v3138, %v3140
        %v3142 = vadd.f32 %v3141, -0.16666654
        %v3143 = vmul.f32 %v3138, %v3142
        %v3144 = vadd.f32 %v3143, 1.0
        %v3145 = vmul.f32 %v3144, %v3129
        %vm3146 = vweird.f32 %v382
        %v3147 = vand.u32 %v3130, 3
        %vm3148 = vcmp.lt.s32.totalorder %v3147, 2
        %vm3149 = vcmp.eq.s32.totalorder %v3147, 0
        %v3150 = vxor.u32 %v3145, 2147483648
        %v3151 = vsel %vm3149, %v3137, %v3150
        %vm3152 = vcmp.eq.s32.totalorder %v3147, 2
        %v3153 = vxor.u32 %v3137, 2147483648
        %v3154 = vsel %vm3152, %v3153, %v3145
        %v3155 = vsel %vm3148, %v3151, %v3154
        %v3156 = vsel %vm3146, nan, %v3155
        %v3157 = vand.u32 2147483647, %v383
        %vm3158 = vcmp.le.f32.partialorder %v3157, 0.7853982
        %vm3159 = vcmp.lt.s32.totalorder %v383, 0
        %v3160 = vand.u32 %v383, 2139095040
        %v3161 = vshrl.u32 %v3160, 23
        %v3162 = vsub.s32 %v3161, 127
        %v3163 = vand.u32 2147483647, %v383
        %v3164 = vand.u32 %v3163, 8388607
        %v3165 = vor.u32 %v3164, 8388608
        %v3166 = vsub.s32 0, %v3165
        %v3167 = vadd.s32 %v3162, 1
        %vm3168 = vcmp.gt.s32.totalorder %v3167, 0
        %v3169 = vsel %vm3168, %v3167, 0
        %v3170 = vshrl.u32 %v3169, 5
        %v3171 = vand.u32 %v3169, 31
        %v3172 = vsub.s32 32, %v3171
        %v3173 = vshrl.u32 683565275, %v3172
        %v3174 = vshll.u32 683565275, %v3171
        %v3175 = vshrl.u32 2475754826, %v3172
        %v3176 = vor.u32 %v3174, %v3175
        %v3177 = vshll.u32 2475754826, %v3171
        %v3178 = vshrl.u32 2131351028, %v3172
        %v3179 = vor.u32 %v3177, %v3178
        %v3180 = vshll.u32 2131351028, %v3171
        %v3181 = vshrl.u32 2102212464, %v3172
        %v3182 = vor.u32 %v3180, %v3181
        %v3183 = vshll.u32 2102212464, %v3171
        %v3184 = vshrl.u32 920167782, %v3172
        %v3185 = vor.u32 %v3183, %v3184
        %v3186 = vshll.u32 920167782, %v3171
        %v3187 = vshrl.u32 1326507024, %v3172
        %v3188 = vor.u32 %v3186, %v3187
        %vm3189 = vcmp.lt.s32.totalorder %v3170, 1
        %vm3190 = vcmp.lt.s32.totalorder %v3170, 2
        %vm3191 = vcmp.lt.s32.totalorder %v3170, 3
        %vm3192 = vcmp.lt.s32.totalorder %v3170, 4
        %v3193 = vsel %vm3189, %v3173, %v3176
        %v3194 = vsel %vm3192, %v3182, 2102212464
        %v3195 = vsel %vm3191, %v3179, %v3194
        %v3196 = vsel %vm3190, %v3193, %v3195
        %v3197 = vsel %vm3189, %v3176, %v3179
        %v3198 = vsel %vm3192, %v3185, 920167782
        %v3199 = vsel %vm3191, %v3182, %v3198
        %v3200 = vsel %vm3190, %v3197, %v3199
        %v3201 = vsel %vm3189, %v3179, %v3182
        %v3202 = vsel %vm3192, %v3188, 1326507024
        %v3203 = vsel %vm3191, %v3185, %v3202
        %v3204 = vsel %vm3190, %v3201, %v3203
        %v3205 = vshll.u32 %v3165, 8
        %v3206 = vand.u32 %v3205, 65535
        %v3207 = vshrl.u32 %v3205, 16
        %v3208 = vand.u32 %v3204, 65535
        %v3209 = vshrl.u32 %v3204, 16
        %v3210 = vmul.u32 %v3206, %v3208
        %v3211 = vmul.u32 %v3206, %v3209
        %v3212 = vmul.u32 %v3207, %v3208
        %v3213 = vmul.u32 %v3207, %v3209
        %v3214 = vshll.u32 %v3211, 16
        %v3215 = vshrl.u32 %v3211, 16
        %v3216 = vshll.u32 %v3212, 16
        %v3217 = vshrl.u32 %v3212, 16
        %vm3218 = vc.u32 %v3210, %v3214
        %v3219 = vsel %vm3218, 1, 0
        %v3220 = vadd.s32 %v3210, %v3214
        %v3221 = vadd.s32 %v3213, %v3219
        %vm3222 = vc.u32 %v3220, %v3216
        %v3223 = vsel %vm3222, 1, 0
        %v3224 = vadd.s32 %v3220, %v3216
        %v3225 = vadd.s32 %v3221, %v3223
        %v3226 = vadd.s32 %v3225, %v3215
        %v3227 = vadd.s32 %v3226, %v3217
        %v3228 = vand.u32 %v3205, 65535
        %v3229 = vshrl.u32 %v3205, 16
        %v3230 = vand.u32 %v3200, 65535
        %v3231 = vshrl.u32 %v3200, 16
        %v3232 = vmul.u32 %v3228, %v3230
        %v3233 = vmul.u32 %v3228, %v3231
        %v3234 = vmul.u32 %v3229, %v3230
        %v3235 = vmul.u32 %v3229, %v3231
        %v3236 = vshll.u32 %v3233, 16
        %v3237 = vshrl.u32 %v3233, 16
        %v3238 = vshll.u32 %v3234, 16
        %v3239 = vshrl.u32 %v3234, 16
        %vm3240 = vc.u32 %v3232, %v3236
        %v3241 = vsel %vm3240, 1, 0
        %v3242 = vadd.s32 %v3232, %v3236
        %v3243 = vadd.s32 %v3235, %v3241
        %vm3244 = vc.u32 %v3242, %v3238
        %v3245 = vsel %vm3244, 1, 0
        %v3246 = vadd.s32 %v3242, %v3238
        %v3247 = vadd.s32 %v3243, %v3245
        %v3248 = vadd.s32 %v3247, %v3237
        %v3249 = vadd.s32 %v3248, %v3239
        %v3250 = vmul.u32 %v3205, %v3196
        %v3251 = vadd.s32 %v3227, %v3246
        %vm3252 = vc.u32 %v3227, %v3246
        %v3253 = vadd.s32 %v3249, 1
        %v3254 = vsel %vm3252, %v3253, %v3249
        %v3255 = vadd.s32 %v3250, %v3254
        %v3256 = vadd.s32 %v3255, 536870912
        %v3257 = vshrl.u32 %v3256, 30
        %v3258 = vshll.u32 %v3257, 30
        %v3259 = vsub.s32 %v3255, %v3258
        %vm3260 = vcmp.lt.s32.totalorder %v3259, 0
        %v3261 = vsub.s32 0, %v3259
        %v3262 = vsel %vm3260, %v3261, %v3259
        %v3263 = vclz %v3262
        %v3264 = vsub.s32 %v3263, 2
        %vm3265 = vcmp.gt.s32.totalorder 0, %v3264
        %v3266 = vsel %vm3265, 0, %v3264
        %v3267 = vsub.s32 32, %v3266
        %v3268 = vshll.u32 %v3259, %v3266
        %v3269 = vshrl.u32 %v3251, %v3267
        %v3270 = vor.u32 %v3268, %v3269
        %v3271 = vsub.s32 4294967266, %v3266
        %v3272 = vadd.s32 %v3271, 127
        %v3273 = vshll.u32 %v3272, 23
        %v3274 = vor.u32 4788187, %v3273
        %v3275 = vand.u32 2147483647, %v3274
        %v3277 = vcvt.s32.f32 %v3270
        %v3278 = vmul.f32 %v3277, %v3275
        %v3279 = vxor.u32 %v3278, 2147483648
        %v3280 = vsel %vm3159, %v3279, %v3278
        %v3281 = vsub.s32 4, %v3257
        %v3282 = vsel %vm3159, %v3281, %v3257
        %v3283 = vsel %vm3158, %v383, %v3280
        %v3284 = vsel %vm3158, 0, %v3282
        %v3285 = vmul.f32 %v3283, %v3283
        %v3286 = vmul.f32 %v3285, -0.001358992
        %v3287 = vadd.f32 %v3286, 0.041655596
        %v3288 = vmul.f32 %v3285, %v3287
        %v3289 = vadd.f32 %v3288, -0.4999988
        %v3290 = vmul.f32 %v3285, %v3289
        %v3291 = vadd.f32 1.0, %v3290
        %v3292 = vmul.f32 %v3283, %v3283
        %v3293 = vmul.f32 %v3292, -0.00019511016
        %v3294 = vadd.f32 %v3293, 0.008332121
        %v3295 = vmul.f32 %v3292, %v3294
        %v3296 = vadd.f32 %v3295, -0.16666654
        %v3297 = vmul.f32 %v3292, %v3296
        %v3298 = vadd.f32 %v3297, 1.0
        %v3299 = vmul.f32 %v3298, %v3283
        %vm3300 = vweird.f32 %v383
        %v3301 = vand.u32 %v3284, 3
        %vm3302 = vcmp.lt.s32.totalorder %v3301, 2
        %vm3303 = vcmp.eq.s32.totalorder %v3301, 0
        %v3304 = vxor.u32 %v3299, 2147483648
        %v3305 = vsel %vm3303, %v3291, %v3304
        %vm3306 = vcmp.eq.s32.totalorder %v3301, 2
        %v3307 = vxor.u32 %v3291, 2147483648
        %v3308 = vsel %vm3306, %v3307, %v3299
        %v3309 = vsel %vm3302, %v3305, %v3308
        %v3310 = vsel %vm3300, nan, %v3309
        %v3311 = vand.u32 2147483647, %v384
        %vm3312 = vcmp.le.f32.partialorder %v3311, 0.7853982
        %vm3313 = vcmp.lt.s32.totalorder %v384, 0
        %v3314 = vand.u32 %v384, 2139095040
        %v3315 = vshrl.u32 %v3314, 23
        %v3316 = vsub.s32 %v3315, 127
        %v3317 = vand.u32 2147483647, %v384
        %v3318 = vand.u32 %v3317, 8388607
        %v3319 = vor.u32 %v3318, 8388608
        %v3320 = vsub.s32 0, %v3319
        %v3321 = vadd.s32 %v3316, 1
        %vm3322 = vcmp.gt.s32.totalorder %v3321, 0
        %v3323 = vsel %vm3322, %v3321, 0
        %v3324 = vshrl.u32 %v3323, 5
        %v3325 = vand.u32 %v3323, 31
        %v3326 = vsub.s32 32, %v3325
        %v3327 = vshrl.u32 683565275, %v3326
        %v3328 = vshll.u32 683565275, %v3325
        %v3329 = vshrl.u32 2475754826, %v3326
        %v3330 = vor.u32 %v3328, %v3329
        %v3331 = vshll.u32 2475754826, %v3325
        %v3332 = vshrl.u32 2131351028, %v3326
        %v3333 = vor.u32 %v3331, %v3332
        %v3334 = vshll.u32 2131351028, %v3325
        %v3335 = vshrl.u32 2102212464, %v3326
        %v3336 = vor.u32 %v3334, %v3335
        %v3337 = vshll.u32 2102212464, %v3325
        %v3338 = vshrl.u32 920167782, %v3326
        %v3339 = vor.u32 %v3337, %v3338
        %v3340 = vshll.u32 920167782, %v3325
        %v3341 = vshrl.u32 1326507024, %v3326
        %v3342 = vor.u32 %v3340, %v3341
        %vm3343 = vcmp.lt.s32.totalorder %v3324, 1
        %vm3344 = vcmp.lt.s32.totalorder %v3324, 2
        %vm3345 = vcmp.lt.s32.totalorder %v3324, 3
        %vm3346 = vcmp.lt.s32.totalorder %v3324, 4
        %v3347 = vsel %vm3343, %v3327, %v3330
        %v3348 = vsel %vm3346, %v3336, 2102212464
        %v3349 = vsel %vm3345, %v3333, %v3348
        %v3350 = vsel %vm3344, %v3347, %v3349
        %v3351 = vsel %vm3343, %v3330, %v3333
        %v3352 = vsel %vm3346, %v3339, 920167782
        %v3353 = vsel %vm3345, %v3336, %v3352
        %v3354 = vsel %vm3344, %v3351, %v3353
        %v3355 = vsel %vm3343, %v3333, %v3336
        %v3356 = vsel %vm3346, %v3342, 1326507024
        %v3357 = vsel %vm3345, %v3339, %v3356
        %v3358 = vsel %vm3344, %v3355, %v3357
        %v3359 = vshll.u32 %v3319, 8
        %v3360 = vand.u32 %v3359, 65535
        %v3361 = vshrl.u32 %v3359, 16
        %v3362 = vand.u32 %v3358, 65535
        %v3363 = vshrl.u32 %v3358, 16
        %v3364 = vmul.u32 %v3360, %v3362
        %v3365 = vmul.u32 %v3360, %v3363
        %v3366 = vmul.u32 %v3361, %v3362
        %v3367 = vmul.u32 %v3361, %v3363
        %v3368 = vshll.u32 %v3365, 16
        %v3369 = vshrl.u32 %v3365, 16
        %v3370 = vshll.u32 %v3366, 16
        %v3371 = vshrl.u32 %v3366, 16
        %vm3372 = vc.u32 %v3364, %v3368
        %v3373 = vsel %vm3372, 1, 0
        %v3374 = vadd.s32 %v3364, %v3368
        %v3375 = vadd.s32 %v3367, %v3373
        %vm3376 = vc.u32 %v3374, %v3370
        %v3377 = vsel %vm3376, 1, 0
        %v3378 = vadd.s32 %v3374, %v3370
        %v3379 = vadd.s32 %v3375, %v3377
        %v3380 = vadd.s32 %v3379, %v3369
        %v3381 = vadd.s32 %v3380, %v3371
        %v3382 = vand.u32 %v3359, 65535
        %v3383 = vshrl.u32 %v3359, 16
        %v3384 = vand.u32 %v3354, 65535
        %v3385 = vshrl.u32 %v3354, 16
        %v3386 = vmul.u32 %v3382, %v3384
        %v3387 = vmul.u32 %v3382, %v3385
        %v3388 = vmul.u32 %v3383, %v3384
        %v3389 = vmul.u32 %v3383, %v3385
        %v3390 = vshll.u32 %v3387, 16
        %v3391 = vshrl.u32 %v3387, 16
        %v3392 = vshll.u32 %v3388, 16
        %v3393 = vshrl.u32 %v3388, 16
        %vm3394 = vc.u32 %v3386, %v3390
        %v3395 = vsel %vm3394, 1, 0
        %v3396 = vadd.s32 %v3386, %v3390
        %v3397 = vadd.s32 %v3389, %v3395
        %vm3398 = vc.u32 %v3396, %v3392
        %v3399 = vsel %vm3398, 1, 0
        %v3400 = vadd.s32 %v3396, %v3392
        %v3401 = vadd.s32 %v3397, %v3399
        %v3402 = vadd.s32 %v3401, %v3391
        %v3403 = vadd.s32 %v3402, %v3393
        %v3404 = vmul.u32 %v3359, %v3350
        %v3405 = vadd.s32 %v3381, %v3400
        %vm3406 = vc.u32 %v3381, %v3400
        %v3407 = vadd.s32 %v3403, 1
        %v3408 = vsel %vm3406, %v3407, %v3403
        %v3409 = vadd.s32 %v3404, %v3408
        %v3410 = vadd.s32 %v3409, 536870912
        %v3411 = vshrl.u32 %v3410, 30
        %v3412 = vshll.u32 %v3411, 30
        %v3413 = vsub.s32 %v3409, %v3412
        %vm3414 = vcmp.lt.s32.totalorder %v3413, 0
        %v3415 = vsub.s32 0, %v3413
        %v3416 = vsel %vm3414, %v3415, %v3413
        %v3417 = vclz %v3416
        %v3418 = vsub.s32 %v3417, 2
        %vm3419 = vcmp.gt.s32.totalorder 0, %v3418
        %v3420 = vsel %vm3419, 0, %v3418
        %v3421 = vsub.s32 32, %v3420
        %v3422 = vshll.u32 %v3413, %v3420
        %v3423 = vshrl.u32 %v3405, %v3421
        %v3424 = vor.u32 %v3422, %v3423
        %v3425 = vsub.s32 4294967266, %v3420
        %v3426 = vadd.s32 %v3425, 127
        %v3427 = vshll.u32 %v3426, 23
        %v3428 = vor.u32 4788187, %v3427
        %v3429 = vand.u32 2147483647, %v3428
        %v3431 = vcvt.s32.f32 %v3424
        %v3432 = vmul.f32 %v3431, %v3429
        %v3433 = vxor.u32 %v3432, 2147483648
        %v3434 = vsel %vm3313, %v3433, %v3432
        %v3435 = vsub.s32 4, %v3411
        %v3436 = vsel %vm3313, %v3435, %v3411
        %v3437 = vsel %vm3312, %v384, %v3434
        %v3438 = vsel %vm3312, 0, %v3436
        %v3439 = vmul.f32 %v3437, %v3437
        %v3440 = vmul.f32 %v3439, -0.001358992
        %v3441 = vadd.f32 %v3440, 0.041655596
        %v3442 = vmul.f32 %v3439, %v3441
        %v3443 = vadd.f32 %v3442, -0.4999988
        %v3444 = vmul.f32 %v3439, %v3443
        %v3445 = vadd.f32 1.0, %v3444
        %v3446 = vmul.f32 %v3437, %v3437
        %v3447 = vmul.f32 %v3446, -0.00019511016
        %v3448 = vadd.f32 %v3447, 0.008332121
        %v3449 = vmul.f32 %v3446, %v3448
        %v3450 = vadd.f32 %v3449, -0.16666654
        %v3451 = vmul.f32 %v3446, %v3450
        %v3452 = vadd.f32 %v3451, 1.0
        %v3453 = vmul.f32 %v3452, %v3437
        %vm3454 = vweird.f32 %v384
        %v3455 = vand.u32 %v3438, 3
        %vm3456 = vcmp.lt.s32.totalorder %v3455, 2
        %vm3457 = vcmp.eq.s32.totalorder %v3455, 0
        %v3458 = vxor.u32 %v3453, 2147483648
        %v3459 = vsel %vm3457, %v3445, %v3458
        %vm3460 = vcmp.eq.s32.totalorder %v3455, 2
        %v3461 = vxor.u32 %v3445, 2147483648
        %v3462 = vsel %vm3460, %v3461, %v3453
        %v3463 = vsel %vm3456, %v3459, %v3462
        %v3464 = vsel %vm3454, nan, %v3463
        %v3465 = vld [vmem:[%s218] sm:$0xff]
        %v3466 = vld [vmem:[%s218 + $0x8] sm:$0xff]
        %v3467 = vld [vmem:[%s218 + $0x10] sm:$0xff]
        %v3468 = vld [vmem:[%s218 + $0x18] sm:$0xff]
        %v3469 = vld [vmem:[%s218 + $0x20] sm:$0xff]
        %v3470 = vld [vmem:[%s218 + $0x28] sm:$0xff]
        %v3471 = vld [vmem:[%s218 + $0x30] sm:$0xff]
        %v3472 = vld [vmem:[%s218 + $0x38] sm:$0xff]
        %v3473 = vld [vmem:[%s218 + $0x40] sm:$0xff]
        %v3474 = vld [vmem:[%s218 + $0x48] sm:$0xff]
        %v3475 = vld [vmem:[%s218 + $0x50] sm:$0xff]
        %v3476 = vld [vmem:[%s218 + $0x58] sm:$0xff]
        %v3477 = vld [vmem:[%s218 + $0x60] sm:$0xff]
        %v3478 = vld [vmem:[%s218 + $0x68] sm:$0xff]
        %v3479 = vld [vmem:[%s218 + $0x70] sm:$0xff]
        %v3480 = vld [vmem:[%s218 + $0x78] sm:$0xff]
        %v3481 = vld [vmem:[%s218 + $0x80] sm:$0xff]
        %v3482 = vld [vmem:[%s218 + $0x88] sm:$0xff]
        %v3483 = vld [vmem:[%s218 + $0x90] sm:$0xff]
        %v3484 = vld [vmem:[%s218 + $0x98] sm:$0xff]
        %3505 = vrot.lane.b32.xlu0 %v538, 64
        %v3506 = vpop.permute.xlu0 %3505
        %3507 = vrot.lane.b32.xlu0 %v692, 64
        %v3508 = vpop.permute.xlu0 %3507
        %3509 = vrot.lane.b32.xlu0 %v846, 64
        %v3510 = vpop.permute.xlu0 %3509
        %3511 = vrot.lane.b32.xlu0 %v1000, 64
        %v3512 = vpop.permute.xlu0 %3511
        %3513 = vrot.lane.b32.xlu0 %v1154, 64
        %v3514 = vpop.permute.xlu0 %3513
        %3515 = vrot.lane.b32.xlu0 %v1308, 64
        %v3516 = vpop.permute.xlu0 %3515
        %3517 = vrot.lane.b32.xlu0 %v1462, 64
        %v3518 = vpop.permute.xlu0 %3517
        %3519 = vrot.lane.b32.xlu0 %v1616, 64
        %v3520 = vpop.permute.xlu0 %3519
        %3521 = vrot.lane.b32.xlu0 %v1770, 64
        %v3522 = vpop.permute.xlu0 %3521
        %3523 = vrot.lane.b32.xlu0 %v1924, 64
        %v3524 = vpop.permute.xlu0 %3523
        %3525 = vrot.lane.b32.xlu0 %v2078, 64
        %v3526 = vpop.permute.xlu0 %3525
        %3527 = vrot.lane.b32.xlu0 %v2232, 64
        %v3528 = vpop.permute.xlu0 %3527
        %3529 = vrot.lane.b32.xlu0 %v2386, 64
        %v3530 = vpop.permute.xlu0 %3529
        %3531 = vrot.lane.b32.xlu0 %v2540, 64
        %v3532 = vpop.permute.xlu0 %3531
        %3533 = vrot.lane.b32.xlu0 %v2694, 64
        %v3534 = vpop.permute.xlu0 %3533
        %3535 = vrot.lane.b32.xlu0 %v2848, 64
        %v3536 = vpop.permute.xlu0 %3535
        %3537 = vrot.lane.b32.xlu0 %v3002, 64
        %v3538 = vpop.permute.xlu0 %3537
        %3539 = vrot.lane.b32.xlu0 %v3156, 64
        %v3540 = vpop.permute.xlu0 %3539
        %3541 = vrot.lane.b32.xlu0 %v3310, 64
        %v3542 = vpop.permute.xlu0 %3541
        %3543 = vrot.lane.b32.xlu0 %v3464, 64
        %v3544 = vpop.permute.xlu0 %3543
        %vm3565 = vcmask 523264
        %v3566 = vsel %vm3565, %v3465, %v3506
        %v3567 = vsel %vm3565, %v3466, %v3508
        %v3568 = vsel %vm3565, %v3467, %v3510
        %v3569 = vsel %vm3565, %v3468, %v3512
        %v3570 = vsel %vm3565, %v3469, %v3514
        %v3571 = vsel %vm3565, %v3470, %v3516
        %v3572 = vsel %vm3565, %v3471, %v3518
        %v3573 = vsel %vm3565, %v3472, %v3520
        %v3574 = vsel %vm3565, %v3473, %v3522
        %v3575 = vsel %vm3565, %v3474, %v3524
        %v3576 = vsel %vm3565, %v3475, %v3526
        %v3577 = vsel %vm3565, %v3476, %v3528
        %v3578 = vsel %vm3565, %v3477, %v3530
        %v3579 = vsel %vm3565, %v3478, %v3532
        %v3580 = vsel %vm3565, %v3479, %v3534
        %v3581 = vsel %vm3565, %v3480, %v3536
        %v3582 = vsel %vm3565, %v3481, %v3538
        %v3583 = vsel %vm3565, %v3482, %v3540
        %v3584 = vsel %vm3565, %v3483, %v3542
        %v3585 = vsel %vm3565, %v3484, %v3544
        %v3586 = vpack.c.bf16 %v3567, %v3566
        %v3587 = vpack.c.bf16 %v3569, %v3568
        %v3588 = vpack.c.bf16 %v3571, %v3570
        %v3589 = vpack.c.bf16 %v3573, %v3572
        %v3590 = vpack.c.bf16 %v3575, %v3574
        %v3591 = vpack.c.bf16 %v3577, %v3576
        %v3592 = vpack.c.bf16 %v3579, %v3578
        %v3593 = vpack.c.bf16 %v3581, %v3580
        %v3594 = vpack.c.bf16 %v3583, %v3582
        %v3595 = vpack.c.bf16 %v3585, %v3584
        %v3596 = vld [vmem:[%s2] sm:$0xf]
        %v3597 = vld [vmem:[%s2 + $0x4] sm:$0xf]
        %v3598 = vld [vmem:[%s2 + $0x8] sm:$0xf]
        %v3599 = vld [vmem:[%s2 + $0xc] sm:$0xf]
        %v3600 = vld [vmem:[%s2 + $0x10] sm:$0xf]
        %v3601 = vld [vmem:[%s2 + $0x14] sm:$0xf]
        %v3602 = vld [vmem:[%s2 + $0x18] sm:$0xf]
        %v3603 = vld [vmem:[%s2 + $0x1c] sm:$0xf]
        %v3604 = vld [vmem:[%s2 + $0x20] sm:$0xf]
        %v3605 = vld [vmem:[%s2 + $0x24] sm:$0xf]
        %v3606 = vld [vmem:[%s2 + $0x28] sm:$0xf]
        %v3607 = vld [vmem:[%s2 + $0x2c] sm:$0xf]
        %v3608 = vld [vmem:[%s2 + $0x30] sm:$0xf]
        %v3609 = vld [vmem:[%s2 + $0x34] sm:$0xf]
        %v3610 = vld [vmem:[%s2 + $0x38] sm:$0xf]
        %v3611 = vld [vmem:[%s2 + $0x3c] sm:$0xf]
        %v3612 = vld [vmem:[%s3 + $0x2] sm:$0x1]
        %v3613 = vperm.slane %v3612, 0
        %v3630 = vunpack.c.l.b16 %v3596
        %v3631 = vunpack.c.l.b16 %v3597
        %v3632 = vunpack.c.l.b16 %v3598
        %v3633 = vunpack.c.l.b16 %v3599
        %v3634 = vunpack.c.l.b16 %v3600
        %v3635 = vunpack.c.l.b16 %v3601
        %v3636 = vunpack.c.l.b16 %v3602
        %v3637 = vunpack.c.l.b16 %v3603
        %v3638 = vunpack.c.l.b16 %v3604
        %v3639 = vunpack.c.l.b16 %v3605
        %v3640 = vunpack.c.l.b16 %v3606
        %v3641 = vunpack.c.l.b16 %v3607
        %v3642 = vunpack.c.l.b16 %v3608
        %v3643 = vunpack.c.l.b16 %v3609
        %v3644 = vunpack.c.l.b16 %v3610
        %v3645 = vunpack.c.l.b16 %v3611
        %v3646 = vpack.c.b16 %v3631, %v3630
        %v3647 = vpack.c.b16 %v3633, %v3632
        %v3648 = vpack.c.b16 %v3635, %v3634
        %v3649 = vpack.c.b16 %v3637, %v3636
        %v3650 = vpack.c.b16 %v3639, %v3638
        %v3651 = vpack.c.b16 %v3641, %v3640
        %v3652 = vpack.c.b16 %v3643, %v3642
        %v3653 = vpack.c.b16 %v3645, %v3644
        %3662 = vmatpush.bf16.msra.mxu0 %v3653
        %3663 = vmatpush.bf16.msra.mxu0 %v3652
        %3664 = vmatpush.bf16.msra.mxu0 %v3651
        %3665 = vmatpush.bf16.msra.mxu0 %v3650
        %3666 = vmatpush.bf16.msra.mxu0 %v3649
        %3667 = vmatpush.bf16.msra.mxu0 %v3648
        %3668 = vmatpush.bf16.msra.mxu0 %v3647
        %3669 = vmatpush.bf16.msra.mxu0 %v3646
        %3670 = vmatmul.bf16.gmra.mxu0 %v3586
        %v3671 = vpop.f32.mrf.mxu0
        %v3672 = vadd.f32 %v3613, %v3671
        %v3673 = vpop.f32.mrf.mxu0
        %v3674 = vadd.f32 %v3613, %v3673
        %3675 = vmatmul.bf16.gmra.mxu0 %v3587
        %v3676 = vpop.f32.mrf.mxu0
        %v3677 = vadd.f32 %v3613, %v3676
        %v3678 = vpop.f32.mrf.mxu0
        %v3679 = vadd.f32 %v3613, %v3678
        %3680 = vmatmul.bf16.gmra.mxu0 %v3588
        %v3681 = vpop.f32.mrf.mxu0
        %v3682 = vadd.f32 %v3613, %v3681
        %v3683 = vpop.f32.mrf.mxu0
        %v3684 = vadd.f32 %v3613, %v3683
        %3685 = vmatmul.bf16.gmra.mxu0 %v3589
        %v3686 = vpop.f32.mrf.mxu0
        %v3687 = vadd.f32 %v3613, %v3686
        %v3688 = vpop.f32.mrf.mxu0
        %v3689 = vadd.f32 %v3613, %v3688
        %3690 = vmatmul.bf16.gmra.mxu0 %v3590
        %v3691 = vpop.f32.mrf.mxu0
        %v3692 = vadd.f32 %v3613, %v3691
        %v3693 = vpop.f32.mrf.mxu0
        %v3694 = vadd.f32 %v3613, %v3693
        %3695 = vmatmul.bf16.gmra.mxu0 %v3591
        %v3696 = vpop.f32.mrf.mxu0
        %v3697 = vadd.f32 %v3613, %v3696
        %v3698 = vpop.f32.mrf.mxu0
        %v3699 = vadd.f32 %v3613, %v3698
        %3700 = vmatmul.bf16.gmra.mxu0 %v3592
        %v3701 = vpop.f32.mrf.mxu0
        %v3702 = vadd.f32 %v3613, %v3701
        %v3703 = vpop.f32.mrf.mxu0
        %v3704 = vadd.f32 %v3613, %v3703
        %3705 = vmatmul.bf16.gmra.mxu0 %v3593
        %v3706 = vpop.f32.mrf.mxu0
        %v3707 = vadd.f32 %v3613, %v3706
        %v3708 = vpop.f32.mrf.mxu0
        %v3709 = vadd.f32 %v3613, %v3708
        %3710 = vmatmul.bf16.gmra.mxu0 %v3594
        %v3711 = vpop.f32.mrf.mxu0
        %v3712 = vadd.f32 %v3613, %v3711
        %v3713 = vpop.f32.mrf.mxu0
        %v3714 = vadd.f32 %v3613, %v3713
        %3715 = vmatmul.bf16.gmra.mxu0 %v3595
        %v3716 = vpop.f32.mrf.mxu0
        %v3717 = vadd.f32 %v3613, %v3716
        %v3718 = vpop.f32.mrf.mxu0
        %v3719 = vadd.f32 %v3613, %v3718
        %3720 = vdwg.mxu0
        %v3721 = vxor.u32 %v3672, 2147483648
        %v3722 = vxor.u32 %v3674, 2147483648
        %v3723 = vxor.u32 %v3677, 2147483648
        %v3724 = vxor.u32 %v3679, 2147483648
        %v3725 = vxor.u32 %v3682, 2147483648
        %v3726 = vxor.u32 %v3684, 2147483648
        %v3727 = vxor.u32 %v3687, 2147483648
        %v3728 = vxor.u32 %v3689, 2147483648
        %v3729 = vxor.u32 %v3692, 2147483648
        %v3730 = vxor.u32 %v3694, 2147483648
        %v3731 = vxor.u32 %v3697, 2147483648
        %v3732 = vxor.u32 %v3699, 2147483648
        %v3733 = vxor.u32 %v3702, 2147483648
        %v3734 = vxor.u32 %v3704, 2147483648
        %v3735 = vxor.u32 %v3707, 2147483648
        %v3736 = vxor.u32 %v3709, 2147483648
        %v3737 = vxor.u32 %v3712, 2147483648
        %v3738 = vxor.u32 %v3714, 2147483648
        %v3739 = vxor.u32 %v3717, 2147483648
        %v3740 = vxor.u32 %v3719, 2147483648
        %v3741 = vmul.f32 %v3721, 1.442695
        %v3742 = vpow.pop %v3741
        %v3743 = vmul.f32 %v3722, 1.442695
        %v3744 = vpow.pop %v3743
        %v3745 = vmul.f32 %v3723, 1.442695
        %v3746 = vpow.pop %v3745
        %v3747 = vmul.f32 %v3724, 1.442695
        %v3748 = vpow.pop %v3747
        %v3749 = vmul.f32 %v3725, 1.442695
        %v3750 = vpow.pop %v3749
        %v3751 = vmul.f32 %v3726, 1.442695
        %v3752 = vpow.pop %v3751
        %v3753 = vmul.f32 %v3727, 1.442695
        %v3754 = vpow.pop %v3753
        %v3755 = vmul.f32 %v3728, 1.442695
        %v3756 = vpow.pop %v3755
        %v3757 = vmul.f32 %v3729, 1.442695
        %v3758 = vpow.pop %v3757
        %v3759 = vmul.f32 %v3730, 1.442695
        %v3760 = vpow.pop %v3759
        %v3761 = vmul.f32 %v3731, 1.442695
        %v3762 = vpow.pop %v3761
        %v3763 = vmul.f32 %v3732, 1.442695
        %v3764 = vpow.pop %v3763
        %v3765 = vmul.f32 %v3733, 1.442695
        %v3766 = vpow.pop %v3765
        %v3767 = vmul.f32 %v3734, 1.442695
        %v3768 = vpow.pop %v3767
        %v3769 = vmul.f32 %v3735, 1.442695
        %v3770 = vpow.pop %v3769
        %v3771 = vmul.f32 %v3736, 1.442695
        %v3772 = vpow.pop %v3771
        %v3773 = vmul.f32 %v3737, 1.442695
        %v3774 = vpow.pop %v3773
        %v3775 = vmul.f32 %v3738, 1.442695
        %v3776 = vpow.pop %v3775
        %v3777 = vmul.f32 %v3739, 1.442695
        %v3778 = vpow.pop %v3777
        %v3779 = vmul.f32 %v3740, 1.442695
        %v3780 = vpow.pop %v3779
        %v3781 = vadd.f32 %v3742, 1.0
        %v3782 = vadd.f32 %v3744, 1.0
        %v3783 = vadd.f32 %v3746, 1.0
        %v3784 = vadd.f32 %v3748, 1.0
        %v3785 = vadd.f32 %v3750, 1.0
        %v3786 = vadd.f32 %v3752, 1.0
        %v3787 = vadd.f32 %v3754, 1.0
        %v3788 = vadd.f32 %v3756, 1.0
        %v3789 = vadd.f32 %v3758, 1.0
        %v3790 = vadd.f32 %v3760, 1.0
        %v3791 = vadd.f32 %v3762, 1.0
        %v3792 = vadd.f32 %v3764, 1.0
        %v3793 = vadd.f32 %v3766, 1.0
        %v3794 = vadd.f32 %v3768, 1.0
        %v3795 = vadd.f32 %v3770, 1.0
        %v3796 = vadd.f32 %v3772, 1.0
        %v3797 = vadd.f32 %v3774, 1.0
        %v3798 = vadd.f32 %v3776, 1.0
        %v3799 = vadd.f32 %v3778, 1.0
        %v3800 = vadd.f32 %v3780, 1.0
        %v3801 = vrcp.pop %v3781
        %v3802 = vmul.f32 %v3781, %v3801
        %v3803 = vsub.f32 1.0, %v3802
        %v3804 = vmul.f32 %v3801, %v3803
        %v3805 = vadd.f32 %v3801, %v3804
        %vm3806 = vweird.f32 %v3781
        %vm3807 = vweird.f32 %v3801
        %vm3808 = vmor %vm3806, %vm3807
        %v3809 = vsel %vm3808, %v3801, %v3805
        %v3810 = vand.u32 2147483647, %v3781
        %vm3811 = vcmp.eq.f32.partialorder %v3810, 8.507059e+37
        %v3812 = vand.u32 %v3781, 2147483648
        %v3813 = vor.u32 1.1754944e-38, %v3812
        %v3814 = vsel %vm3811, %v3813, %v3809
        %v3815 = vmul.f32 1.0, %v3814
        %v3816 = vrcp.pop %v3782
        %v3817 = vmul.f32 %v3782, %v3816
        %v3818 = vsub.f32 1.0, %v3817
        %v3819 = vmul.f32 %v3816, %v3818
        %v3820 = vadd.f32 %v3816, %v3819
        %vm3821 = vweird.f32 %v3782
        %vm3822 = vweird.f32 %v3816
        %vm3823 = vmor %vm3821, %vm3822
        %v3824 = vsel %vm3823, %v3816, %v3820
        %v3825 = vand.u32 2147483647, %v3782
        %vm3826 = vcmp.eq.f32.partialorder %v3825, 8.507059e+37
        %v3827 = vand.u32 %v3782, 2147483648
        %v3828 = vor.u32 1.1754944e-38, %v3827
        %v3829 = vsel %vm3826, %v3828, %v3824
        %v3830 = vmul.f32 1.0, %v3829
        %v3831 = vrcp.pop %v3783
        %v3832 = vmul.f32 %v3783, %v3831
        %v3833 = vsub.f32 1.0, %v3832
        %v3834 = vmul.f32 %v3831, %v3833
        %v3835 = vadd.f32 %v3831, %v3834
        %vm3836 = vweird.f32 %v3783
        %vm3837 = vweird.f32 %v3831
        %vm3838 = vmor %vm3836, %vm3837
        %v3839 = vsel %vm3838, %v3831, %v3835
        %v3840 = vand.u32 2147483647, %v3783
        %vm3841 = vcmp.eq.f32.partialorder %v3840, 8.507059e+37
        %v3842 = vand.u32 %v3783, 2147483648
        %v3843 = vor.u32 1.1754944e-38, %v3842
        %v3844 = vsel %vm3841, %v3843, %v3839
        %v3845 = vmul.f32 1.0, %v3844
        %v3846 = vrcp.pop %v3784
        %v3847 = vmul.f32 %v3784, %v3846
        %v3848 = vsub.f32 1.0, %v3847
        %v3849 = vmul.f32 %v3846, %v3848
        %v3850 = vadd.f32 %v3846, %v3849
        %vm3851 = vweird.f32 %v3784
        %vm3852 = vweird.f32 %v3846
        %vm3853 = vmor %vm3851, %vm3852
        %v3854 = vsel %vm3853, %v3846, %v3850
        %v3855 = vand.u32 2147483647, %v3784
        %vm3856 = vcmp.eq.f32.partialorder %v3855, 8.507059e+37
        %v3857 = vand.u32 %v3784, 2147483648
        %v3858 = vor.u32 1.1754944e-38, %v3857
        %v3859 = vsel %vm3856, %v3858, %v3854
        %v3860 = vmul.f32 1.0, %v3859
        %v3861 = vrcp.pop %v3785
        %v3862 = vmul.f32 %v3785, %v3861
        %v3863 = vsub.f32 1.0, %v3862
        %v3864 = vmul.f32 %v3861, %v3863
        %v3865 = vadd.f32 %v3861, %v3864
        %vm3866 = vweird.f32 %v3785
        %vm3867 = vweird.f32 %v3861
        %vm3868 = vmor %vm3866, %vm3867
        %v3869 = vsel %vm3868, %v3861, %v3865
        %v3870 = vand.u32 2147483647, %v3785
        %vm3871 = vcmp.eq.f32.partialorder %v3870, 8.507059e+37
        %v3872 = vand.u32 %v3785, 2147483648
        %v3873 = vor.u32 1.1754944e-38, %v3872
        %v3874 = vsel %vm3871, %v3873, %v3869
        %v3875 = vmul.f32 1.0, %v3874
        %v3876 = vrcp.pop %v3786
        %v3877 = vmul.f32 %v3786, %v3876
        %v3878 = vsub.f32 1.0, %v3877
        %v3879 = vmul.f32 %v3876, %v3878
        %v3880 = vadd.f32 %v3876, %v3879
        %vm3881 = vweird.f32 %v3786
        %vm3882 = vweird.f32 %v3876
        %vm3883 = vmor %vm3881, %vm3882
        %v3884 = vsel %vm3883, %v3876, %v3880
        %v3885 = vand.u32 2147483647, %v3786
        %vm3886 = vcmp.eq.f32.partialorder %v3885, 8.507059e+37
        %v3887 = vand.u32 %v3786, 2147483648
        %v3888 = vor.u32 1.1754944e-38, %v3887
        %v3889 = vsel %vm3886, %v3888, %v3884
        %v3890 = vmul.f32 1.0, %v3889
        %v3891 = vrcp.pop %v3787
        %v3892 = vmul.f32 %v3787, %v3891
        %v3893 = vsub.f32 1.0, %v3892
        %v3894 = vmul.f32 %v3891, %v3893
        %v3895 = vadd.f32 %v3891, %v3894
        %vm3896 = vweird.f32 %v3787
        %vm3897 = vweird.f32 %v3891
        %vm3898 = vmor %vm3896, %vm3897
        %v3899 = vsel %vm3898, %v3891, %v3895
        %v3900 = vand.u32 2147483647, %v3787
        %vm3901 = vcmp.eq.f32.partialorder %v3900, 8.507059e+37
        %v3902 = vand.u32 %v3787, 2147483648
        %v3903 = vor.u32 1.1754944e-38, %v3902
        %v3904 = vsel %vm3901, %v3903, %v3899
        %v3905 = vmul.f32 1.0, %v3904
        %v3906 = vrcp.pop %v3788
        %v3907 = vmul.f32 %v3788, %v3906
        %v3908 = vsub.f32 1.0, %v3907
        %v3909 = vmul.f32 %v3906, %v3908
        %v3910 = vadd.f32 %v3906, %v3909
        %vm3911 = vweird.f32 %v3788
        %vm3912 = vweird.f32 %v3906
        %vm3913 = vmor %vm3911, %vm3912
        %v3914 = vsel %vm3913, %v3906, %v3910
        %v3915 = vand.u32 2147483647, %v3788
        %vm3916 = vcmp.eq.f32.partialorder %v3915, 8.507059e+37
        %v3917 = vand.u32 %v3788, 2147483648
        %v3918 = vor.u32 1.1754944e-38, %v3917
        %v3919 = vsel %vm3916, %v3918, %v3914
        %v3920 = vmul.f32 1.0, %v3919
        %v3921 = vrcp.pop %v3789
        %v3922 = vmul.f32 %v3789, %v3921
        %v3923 = vsub.f32 1.0, %v3922
        %v3924 = vmul.f32 %v3921, %v3923
        %v3925 = vadd.f32 %v3921, %v3924
        %vm3926 = vweird.f32 %v3789
        %vm3927 = vweird.f32 %v3921
        %vm3928 = vmor %vm3926, %vm3927
        %v3929 = vsel %vm3928, %v3921, %v3925
        %v3930 = vand.u32 2147483647, %v3789
        %vm3931 = vcmp.eq.f32.partialorder %v3930, 8.507059e+37
        %v3932 = vand.u32 %v3789, 2147483648
        %v3933 = vor.u32 1.1754944e-38, %v3932
        %v3934 = vsel %vm3931, %v3933, %v3929
        %v3935 = vmul.f32 1.0, %v3934
        %v3936 = vrcp.pop %v3790
        %v3937 = vmul.f32 %v3790, %v3936
        %v3938 = vsub.f32 1.0, %v3937
        %v3939 = vmul.f32 %v3936, %v3938
        %v3940 = vadd.f32 %v3936, %v3939
        %vm3941 = vweird.f32 %v3790
        %vm3942 = vweird.f32 %v3936
        %vm3943 = vmor %vm3941, %vm3942
        %v3944 = vsel %vm3943, %v3936, %v3940
        %v3945 = vand.u32 2147483647, %v3790
        %vm3946 = vcmp.eq.f32.partialorder %v3945, 8.507059e+37
        %v3947 = vand.u32 %v3790, 2147483648
        %v3948 = vor.u32 1.1754944e-38, %v3947
        %v3949 = vsel %vm3946, %v3948, %v3944
        %v3950 = vmul.f32 1.0, %v3949
        %v3951 = vrcp.pop %v3791
        %v3952 = vmul.f32 %v3791, %v3951
        %v3953 = vsub.f32 1.0, %v3952
        %v3954 = vmul.f32 %v3951, %v3953
        %v3955 = vadd.f32 %v3951, %v3954
        %vm3956 = vweird.f32 %v3791
        %vm3957 = vweird.f32 %v3951
        %vm3958 = vmor %vm3956, %vm3957
        %v3959 = vsel %vm3958, %v3951, %v3955
        %v3960 = vand.u32 2147483647, %v3791
        %vm3961 = vcmp.eq.f32.partialorder %v3960, 8.507059e+37
        %v3962 = vand.u32 %v3791, 2147483648
        %v3963 = vor.u32 1.1754944e-38, %v3962
        %v3964 = vsel %vm3961, %v3963, %v3959
        %v3965 = vmul.f32 1.0, %v3964
        %v3966 = vrcp.pop %v3792
        %v3967 = vmul.f32 %v3792, %v3966
        %v3968 = vsub.f32 1.0, %v3967
        %v3969 = vmul.f32 %v3966, %v3968
        %v3970 = vadd.f32 %v3966, %v3969
        %vm3971 = vweird.f32 %v3792
        %vm3972 = vweird.f32 %v3966
        %vm3973 = vmor %vm3971, %vm3972
        %v3974 = vsel %vm3973, %v3966, %v3970
        %v3975 = vand.u32 2147483647, %v3792
        %vm3976 = vcmp.eq.f32.partialorder %v3975, 8.507059e+37
        %v3977 = vand.u32 %v3792, 2147483648
        %v3978 = vor.u32 1.1754944e-38, %v3977
        %v3979 = vsel %vm3976, %v3978, %v3974
        %v3980 = vmul.f32 1.0, %v3979
        %v3981 = vrcp.pop %v3793
        %v3982 = vmul.f32 %v3793, %v3981
        %v3983 = vsub.f32 1.0, %v3982
        %v3984 = vmul.f32 %v3981, %v3983
        %v3985 = vadd.f32 %v3981, %v3984
        %vm3986 = vweird.f32 %v3793
        %vm3987 = vweird.f32 %v3981
        %vm3988 = vmor %vm3986, %vm3987
        %v3989 = vsel %vm3988, %v3981, %v3985
        %v3990 = vand.u32 2147483647, %v3793
        %vm3991 = vcmp.eq.f32.partialorder %v3990, 8.507059e+37
        %v3992 = vand.u32 %v3793, 2147483648
        %v3993 = vor.u32 1.1754944e-38, %v3992
        %v3994 = vsel %vm3991, %v3993, %v3989
        %v3995 = vmul.f32 1.0, %v3994
        %v3996 = vrcp.pop %v3794
        %v3997 = vmul.f32 %v3794, %v3996
        %v3998 = vsub.f32 1.0, %v3997
        %v3999 = vmul.f32 %v3996, %v3998
        %v4000 = vadd.f32 %v3996, %v3999
        %vm4001 = vweird.f32 %v3794
        %vm4002 = vweird.f32 %v3996
        %vm4003 = vmor %vm4001, %vm4002
        %v4004 = vsel %vm4003, %v3996, %v4000
        %v4005 = vand.u32 2147483647, %v3794
        %vm4006 = vcmp.eq.f32.partialorder %v4005, 8.507059e+37
        %v4007 = vand.u32 %v3794, 2147483648
        %v4008 = vor.u32 1.1754944e-38, %v4007
        %v4009 = vsel %vm4006, %v4008, %v4004
        %v4010 = vmul.f32 1.0, %v4009
        %v4011 = vrcp.pop %v3795
        %v4012 = vmul.f32 %v3795, %v4011
        %v4013 = vsub.f32 1.0, %v4012
        %v4014 = vmul.f32 %v4011, %v4013
        %v4015 = vadd.f32 %v4011, %v4014
        %vm4016 = vweird.f32 %v3795
        %vm4017 = vweird.f32 %v4011
        %vm4018 = vmor %vm4016, %vm4017
        %v4019 = vsel %vm4018, %v4011, %v4015
        %v4020 = vand.u32 2147483647, %v3795
        %vm4021 = vcmp.eq.f32.partialorder %v4020, 8.507059e+37
        %v4022 = vand.u32 %v3795, 2147483648
        %v4023 = vor.u32 1.1754944e-38, %v4022
        %v4024 = vsel %vm4021, %v4023, %v4019
        %v4025 = vmul.f32 1.0, %v4024
        %v4026 = vrcp.pop %v3796
        %v4027 = vmul.f32 %v3796, %v4026
        %v4028 = vsub.f32 1.0, %v4027
        %v4029 = vmul.f32 %v4026, %v4028
        %v4030 = vadd.f32 %v4026, %v4029
        %vm4031 = vweird.f32 %v3796
        %vm4032 = vweird.f32 %v4026
        %vm4033 = vmor %vm4031, %vm4032
        %v4034 = vsel %vm4033, %v4026, %v4030
        %v4035 = vand.u32 2147483647, %v3796
        %vm4036 = vcmp.eq.f32.partialorder %v4035, 8.507059e+37
        %v4037 = vand.u32 %v3796, 2147483648
        %v4038 = vor.u32 1.1754944e-38, %v4037
        %v4039 = vsel %vm4036, %v4038, %v4034
        %v4040 = vmul.f32 1.0, %v4039
        %v4041 = vrcp.pop %v3797
        %v4042 = vmul.f32 %v3797, %v4041
        %v4043 = vsub.f32 1.0, %v4042
        %v4044 = vmul.f32 %v4041, %v4043
        %v4045 = vadd.f32 %v4041, %v4044
        %vm4046 = vweird.f32 %v3797
        %vm4047 = vweird.f32 %v4041
        %vm4048 = vmor %vm4046, %vm4047
        %v4049 = vsel %vm4048, %v4041, %v4045
        %v4050 = vand.u32 2147483647, %v3797
        %vm4051 = vcmp.eq.f32.partialorder %v4050, 8.507059e+37
        %v4052 = vand.u32 %v3797, 2147483648
        %v4053 = vor.u32 1.1754944e-38, %v4052
        %v4054 = vsel %vm4051, %v4053, %v4049
        %v4055 = vmul.f32 1.0, %v4054
        %v4056 = vrcp.pop %v3798
        %v4057 = vmul.f32 %v3798, %v4056
        %v4058 = vsub.f32 1.0, %v4057
        %v4059 = vmul.f32 %v4056, %v4058
        %v4060 = vadd.f32 %v4056, %v4059
        %vm4061 = vweird.f32 %v3798
        %vm4062 = vweird.f32 %v4056
        %vm4063 = vmor %vm4061, %vm4062
        %v4064 = vsel %vm4063, %v4056, %v4060
        %v4065 = vand.u32 2147483647, %v3798
        %vm4066 = vcmp.eq.f32.partialorder %v4065, 8.507059e+37
        %v4067 = vand.u32 %v3798, 2147483648
        %v4068 = vor.u32 1.1754944e-38, %v4067
        %v4069 = vsel %vm4066, %v4068, %v4064
        %v4070 = vmul.f32 1.0, %v4069
        %v4071 = vrcp.pop %v3799
        %v4072 = vmul.f32 %v3799, %v4071
        %v4073 = vsub.f32 1.0, %v4072
        %v4074 = vmul.f32 %v4071, %v4073
        %v4075 = vadd.f32 %v4071, %v4074
        %vm4076 = vweird.f32 %v3799
        %vm4077 = vweird.f32 %v4071
        %vm4078 = vmor %vm4076, %vm4077
        %v4079 = vsel %vm4078, %v4071, %v4075
        %v4080 = vand.u32 2147483647, %v3799
        %vm4081 = vcmp.eq.f32.partialorder %v4080, 8.507059e+37
        %v4082 = vand.u32 %v3799, 2147483648
        %v4083 = vor.u32 1.1754944e-38, %v4082
        %v4084 = vsel %vm4081, %v4083, %v4079
        %v4085 = vmul.f32 1.0, %v4084
        %v4086 = vrcp.pop %v3800
        %v4087 = vmul.f32 %v3800, %v4086
        %v4088 = vsub.f32 1.0, %v4087
        %v4089 = vmul.f32 %v4086, %v4088
        %v4090 = vadd.f32 %v4086, %v4089
        %vm4091 = vweird.f32 %v3800
        %vm4092 = vweird.f32 %v4086
        %vm4093 = vmor %vm4091, %vm4092
        %v4094 = vsel %vm4093, %v4086, %v4090
        %v4095 = vand.u32 2147483647, %v3800
        %vm4096 = vcmp.eq.f32.partialorder %v4095, 8.507059e+37
        %v4097 = vand.u32 %v3800, 2147483648
        %v4098 = vor.u32 1.1754944e-38, %v4097
        %v4099 = vsel %vm4096, %v4098, %v4094
        %v4100 = vmul.f32 1.0, %v4099
        %v4101 = vmul.f32 %v3672, %v3815
        %v4102 = vmul.f32 %v3674, %v3830
        %v4103 = vmul.f32 %v3677, %v3845
        %v4104 = vmul.f32 %v3679, %v3860
        %v4105 = vmul.f32 %v3682, %v3875
        %v4106 = vmul.f32 %v3684, %v3890
        %v4107 = vmul.f32 %v3687, %v3905
        %v4108 = vmul.f32 %v3689, %v3920
        %v4109 = vmul.f32 %v3692, %v3935
        %v4110 = vmul.f32 %v3694, %v3950
        %v4111 = vmul.f32 %v3697, %v3965
        %v4112 = vmul.f32 %v3699, %v3980
        %v4113 = vmul.f32 %v3702, %v3995
        %v4114 = vmul.f32 %v3704, %v4010
        %v4115 = vmul.f32 %v3707, %v4025
        %v4116 = vmul.f32 %v3709, %v4040
        %v4117 = vmul.f32 %v3712, %v4055
        %v4118 = vmul.f32 %v3714, %v4070
        %v4119 = vmul.f32 %v3717, %v4085
        %v4120 = vmul.f32 %v3719, %v4100
        %v4121 = vlaneseq
        %v4122 = vand.u32 %v4121, 127
        %v4123 = vcvt.s32.f32 %v4122
        %4124 = vset.pattern.permute.xlu0 1
        %4125 = vperm.xlu0 %4124, %v221
        %v4126 = vpop.permute.xlu0 %4125
        %4128 = vset.pattern.permute.xlu0 1
        %4129 = vperm.xlu0 %4128, %v222
        %v4130 = vpop.permute.xlu0 %4129
        %4132 = vset.pattern.permute.xlu0 1
        %4133 = vperm.xlu0 %4132, %v223
        %v4134 = vpop.permute.xlu0 %4133
        %4136 = vset.pattern.permute.xlu0 1
        %4137 = vperm.xlu0 %4136, %v224
        %v4138 = vpop.permute.xlu0 %4137
        %4140 = vset.pattern.permute.xlu0 1
        %4141 = vperm.xlu0 %4140, %v225
        %v4142 = vpop.permute.xlu0 %4141
        %4144 = vset.pattern.permute.xlu0 1
        %4145 = vperm.xlu0 %4144, %v226
        %v4146 = vpop.permute.xlu0 %4145
        %4148 = vset.pattern.permute.xlu0 1
        %4149 = vperm.xlu0 %4148, %v227
        %v4150 = vpop.permute.xlu0 %4149
        %4152 = vset.pattern.permute.xlu0 1
        %4153 = vperm.xlu0 %4152, %v228
        %v4154 = vpop.permute.xlu0 %4153
        %4156 = vset.pattern.permute.xlu0 1
        %4157 = vperm.xlu0 %4156, %v229
        %v4158 = vpop.permute.xlu0 %4157
        %4160 = vset.pattern.permute.xlu0 1
        %4161 = vperm.xlu0 %4160, %v230
        %v4162 = vpop.permute.xlu0 %4161
        %4164 = vset.pattern.permute.xlu0 1
        %4165 = vperm.xlu0 %4164, %v231
        %v4166 = vpop.permute.xlu0 %4165
        %4168 = vset.pattern.permute.xlu0 1
        %4169 = vperm.xlu0 %4168, %v232
        %v4170 = vpop.permute.xlu0 %4169
        %4172 = vset.pattern.permute.xlu0 1
        %4173 = vperm.xlu0 %4172, %v233
        %v4174 = vpop.permute.xlu0 %4173
        %4176 = vset.pattern.permute.xlu0 1
        %4177 = vperm.xlu0 %4176, %v234
        %v4178 = vpop.permute.xlu0 %4177
        %4180 = vset.pattern.permute.xlu0 1
        %4181 = vperm.xlu0 %4180, %v235
        %v4182 = vpop.permute.xlu0 %4181
        %4184 = vset.pattern.permute.xlu0 1
        %4185 = vperm.xlu0 %4184, %v236
        %v4186 = vpop.permute.xlu0 %4185
        %4188 = vset.pattern.permute.xlu0 1
        %4189 = vperm.xlu0 %4188, %v237
        %v4190 = vpop.permute.xlu0 %4189
        %4192 = vset.pattern.permute.xlu0 1
        %4193 = vperm.xlu0 %4192, %v238
        %v4194 = vpop.permute.xlu0 %4193
        %4196 = vset.pattern.permute.xlu0 1
        %4197 = vperm.xlu0 %4196, %v239
        %v4198 = vpop.permute.xlu0 %4197
        %4200 = vset.pattern.permute.xlu0 1
        %4201 = vperm.xlu0 %4200, %v240
        %v4202 = vpop.permute.xlu0 %4201
        %vm4204 = vcmp.eq.f32.partialorder %v4126, %v4123
        %vm4205 = vcmp.eq.f32.partialorder %v4130, %v4123
        %vm4206 = vcmp.eq.f32.partialorder %v4134, %v4123
        %vm4207 = vcmp.eq.f32.partialorder %v4138, %v4123
        %vm4208 = vcmp.eq.f32.partialorder %v4142, %v4123
        %vm4209 = vcmp.eq.f32.partialorder %v4146, %v4123
        %vm4210 = vcmp.eq.f32.partialorder %v4150, %v4123
        %vm4211 = vcmp.eq.f32.partialorder %v4154, %v4123
        %vm4212 = vcmp.eq.f32.partialorder %v4158, %v4123
        %vm4213 = vcmp.eq.f32.partialorder %v4162, %v4123
        %vm4214 = vcmp.eq.f32.partialorder %v4166, %v4123
        %vm4215 = vcmp.eq.f32.partialorder %v4170, %v4123
        %vm4216 = vcmp.eq.f32.partialorder %v4174, %v4123
        %vm4217 = vcmp.eq.f32.partialorder %v4178, %v4123
        %vm4218 = vcmp.eq.f32.partialorder %v4182, %v4123
        %vm4219 = vcmp.eq.f32.partialorder %v4186, %v4123
        %vm4220 = vcmp.eq.f32.partialorder %v4190, %v4123
        %vm4221 = vcmp.eq.f32.partialorder %v4194, %v4123
        %vm4222 = vcmp.eq.f32.partialorder %v4198, %v4123
        %vm4223 = vcmp.eq.f32.partialorder %v4202, %v4123
        %v4224 = vsel %vm4204, 1, 0
        %v4225 = vsel %vm4205, 1, 0
        %v4226 = vsel %vm4206, 1, 0
        %v4227 = vsel %vm4207, 1, 0
        %v4228 = vsel %vm4208, 1, 0
        %v4229 = vsel %vm4209, 1, 0
        %v4230 = vsel %vm4210, 1, 0
        %v4231 = vsel %vm4211, 1, 0
        %v4232 = vsel %vm4212, 1, 0
        %v4233 = vsel %vm4213, 1, 0
        %v4234 = vsel %vm4214, 1, 0
        %v4235 = vsel %vm4215, 1, 0
        %v4236 = vsel %vm4216, 1, 0
        %v4237 = vsel %vm4217, 1, 0
        %v4238 = vsel %vm4218, 1, 0
        %v4239 = vsel %vm4219, 1, 0
        %v4240 = vsel %vm4220, 1, 0
        %v4241 = vsel %vm4221, 1, 0
        %v4242 = vsel %vm4222, 1, 0
        %v4243 = vsel %vm4223, 1, 0
        %v4244 = vcvt.s32.f32 %v4224
        %v4245 = vcvt.s32.f32 %v4225
        %v4246 = vcvt.s32.f32 %v4226
        %v4247 = vcvt.s32.f32 %v4227
        %v4248 = vcvt.s32.f32 %v4228
        %v4249 = vcvt.s32.f32 %v4229
        %v4250 = vcvt.s32.f32 %v4230
        %v4251 = vcvt.s32.f32 %v4231
        %v4252 = vcvt.s32.f32 %v4232
        %v4253 = vcvt.s32.f32 %v4233
        %v4254 = vcvt.s32.f32 %v4234
        %v4255 = vcvt.s32.f32 %v4235
        %v4256 = vcvt.s32.f32 %v4236
        %v4257 = vcvt.s32.f32 %v4237
        %v4258 = vcvt.s32.f32 %v4238
        %v4259 = vcvt.s32.f32 %v4239
        %v4260 = vcvt.s32.f32 %v4240
        %v4261 = vcvt.s32.f32 %v4241
        %v4262 = vcvt.s32.f32 %v4242
        %v4263 = vcvt.s32.f32 %v4243
        %v4264 = vpack.c.bf16 %v4244, %v4244
        %v4265 = vpack.c.bf16 %v4245, %v4245
        %v4266 = vpack.c.bf16 %v4246, %v4246
        %v4267 = vpack.c.bf16 %v4247, %v4247
        %v4268 = vpack.c.bf16 %v4248, %v4248
        %v4269 = vpack.c.bf16 %v4249, %v4249
        %v4270 = vpack.c.bf16 %v4250, %v4250
        %v4271 = vpack.c.bf16 %v4251, %v4251
        %v4272 = vpack.c.bf16 %v4252, %v4252
        %v4273 = vpack.c.bf16 %v4253, %v4253
        %v4274 = vpack.c.bf16 %v4254, %v4254
        %v4275 = vpack.c.bf16 %v4255, %v4255
        %v4276 = vpack.c.bf16 %v4256, %v4256
        %v4277 = vpack.c.bf16 %v4257, %v4257
        %v4278 = vpack.c.bf16 %v4258, %v4258
        %v4279 = vpack.c.bf16 %v4259, %v4259
        %v4280 = vpack.c.bf16 %v4260, %v4260
        %v4281 = vpack.c.bf16 %v4261, %v4261
        %v4282 = vpack.c.bf16 %v4262, %v4262
        %v4283 = vpack.c.bf16 %v4263, %v4263
        %v4284 = vpack.c.bf16 %v4101, %v4101
        %v4285 = vpack.c.bf16 %v4102, %v4102
        %v4286 = vpack.c.bf16 %v4103, %v4103
        %v4287 = vpack.c.bf16 %v4104, %v4104
        %v4288 = vpack.c.bf16 %v4105, %v4105
        %v4289 = vpack.c.bf16 %v4106, %v4106
        %v4290 = vpack.c.bf16 %v4107, %v4107
        %v4291 = vpack.c.bf16 %v4108, %v4108
        %v4292 = vpack.c.bf16 %v4109, %v4109
        %v4293 = vpack.c.bf16 %v4110, %v4110
        %v4294 = vpack.c.bf16 %v4111, %v4111
        %v4295 = vpack.c.bf16 %v4112, %v4112
        %v4296 = vpack.c.bf16 %v4113, %v4113
        %v4297 = vpack.c.bf16 %v4114, %v4114
        %v4298 = vpack.c.bf16 %v4115, %v4115
        %v4299 = vpack.c.bf16 %v4116, %v4116
        %v4300 = vpack.c.bf16 %v4117, %v4117
        %v4301 = vpack.c.bf16 %v4118, %v4118
        %v4302 = vpack.c.bf16 %v4119, %v4119
        %v4303 = vpack.c.bf16 %v4120, %v4120
        %v4324 = vunpack.c.l.b16 %v4284
        %v4325 = vunpack.c.l.b16 %v4285
        %v4326 = vunpack.c.l.b16 %v4286
        %v4327 = vunpack.c.l.b16 %v4287
        %v4328 = vunpack.c.l.b16 %v4288
        %v4329 = vunpack.c.l.b16 %v4289
        %v4330 = vunpack.c.l.b16 %v4290
        %v4331 = vunpack.c.l.b16 %v4291
        %v4332 = vunpack.c.l.b16 %v4292
        %v4333 = vunpack.c.l.b16 %v4293
        %v4334 = vunpack.c.l.b16 %v4294
        %v4335 = vunpack.c.l.b16 %v4295
        %v4336 = vunpack.c.l.b16 %v4296
        %v4337 = vunpack.c.l.b16 %v4297
        %v4338 = vunpack.c.l.b16 %v4298
        %v4339 = vunpack.c.l.b16 %v4299
        %v4340 = vunpack.c.l.b16 %v4300
        %v4341 = vunpack.c.l.b16 %v4301
        %v4342 = vunpack.c.l.b16 %v4302
        %v4343 = vunpack.c.l.b16 %v4303
        %v4344 = vpack.c.b16 %v4325, %v4324
        %v4345 = vpack.c.b16 %v4327, %v4326
        %v4346 = vpack.c.b16 %v4329, %v4328
        %v4347 = vpack.c.b16 %v4331, %v4330
        %v4348 = vpack.c.b16 %v4333, %v4332
        %v4349 = vpack.c.b16 %v4335, %v4334
        %v4350 = vpack.c.b16 %v4337, %v4336
        %v4351 = vpack.c.b16 %v4339, %v4338
        %v4352 = vpack.c.b16 %v4341, %v4340
        %v4353 = vpack.c.b16 %v4343, %v4342
        %v4384 = vunpack.c.l.b16 %v4264
        %v4385 = vunpack.c.l.b16 %v4265
        %v4386 = vunpack.c.l.b16 %v4266
        %v4387 = vunpack.c.l.b16 %v4267
        %v4388 = vunpack.c.l.b16 %v4268
        %v4389 = vunpack.c.l.b16 %v4269
        %v4390 = vunpack.c.l.b16 %v4270
        %v4391 = vunpack.c.l.b16 %v4271
        %v4392 = vunpack.c.l.b16 %v4272
        %v4393 = vunpack.c.l.b16 %v4273
        %v4394 = vunpack.c.l.b16 %v4274
        %v4395 = vunpack.c.l.b16 %v4275
        %v4396 = vunpack.c.l.b16 %v4276
        %v4397 = vunpack.c.l.b16 %v4277
        %v4398 = vunpack.c.l.b16 %v4278
        %v4399 = vunpack.c.l.b16 %v4279
        %v4400 = vunpack.c.l.b16 %v4280
        %v4401 = vunpack.c.l.b16 %v4281
        %v4402 = vunpack.c.l.b16 %v4282
        %v4403 = vunpack.c.l.b16 %v4283
        %v4404 = vpack.c.b16 %v4385, %v4384
        %v4405 = vpack.c.b16 %v4387, %v4386
        %v4406 = vpack.c.b16 %v4389, %v4388
        %v4407 = vpack.c.b16 %v4391, %v4390
        %v4408 = vpack.c.b16 %v4393, %v4392
        %v4409 = vpack.c.b16 %v4395, %v4394
        %v4410 = vpack.c.b16 %v4397, %v4396
        %v4411 = vpack.c.b16 %v4399, %v4398
        %v4412 = vpack.c.b16 %v4401, %v4400
        %v4413 = vpack.c.b16 %v4403, %v4402
        %v4424 = vld [vmem:[%s2 + $0x40] sm:$0xf]
        %v4425 = vld [vmem:[%s2 + $0x44] sm:$0xf]
        %v4426 = vld [vmem:[%s2 + $0x48] sm:$0xf]
        %v4427 = vld [vmem:[%s2 + $0x4c] sm:$0xf]
        %v4428 = vld [vmem:[%s2 + $0x50] sm:$0xf]
        %v4429 = vld [vmem:[%s2 + $0x54] sm:$0xf]
        %v4430 = vld [vmem:[%s2 + $0x58] sm:$0xf]
        %v4431 = vld [vmem:[%s2 + $0x5c] sm:$0xf]
        %v4432 = vld [vmem:[%s2 + $0x60] sm:$0xf]
        %v4433 = vld [vmem:[%s2 + $0x64] sm:$0xf]
        %v4434 = vld [vmem:[%s2 + $0x68] sm:$0xf]
        %v4435 = vld [vmem:[%s2 + $0x6c] sm:$0xf]
        %v4436 = vld [vmem:[%s2 + $0x70] sm:$0xf]
        %v4437 = vld [vmem:[%s2 + $0x74] sm:$0xf]
        %v4438 = vld [vmem:[%s2 + $0x78] sm:$0xf]
        %v4439 = vld [vmem:[%s2 + $0x7c] sm:$0xf]
        %v4440 = vld [vmem:[%s2 + $0x80] sm:$0xf]
        %v4441 = vld [vmem:[%s2 + $0x84] sm:$0xf]
        %v4442 = vld [vmem:[%s2 + $0x88] sm:$0xf]
        %v4443 = vld [vmem:[%s2 + $0x8c] sm:$0xf]
        %v4444 = vld [vmem:[%s2 + $0x90] sm:$0xf]
        %v4445 = vld [vmem:[%s2 + $0x94] sm:$0xf]
        %v4446 = vld [vmem:[%s2 + $0x98] sm:$0xf]
        %v4447 = vld [vmem:[%s2 + $0x9c] sm:$0xf]
        %v4448 = vld [vmem:[%s2 + $0xa0] sm:$0xf]
        %v4449 = vld [vmem:[%s2 + $0xa4] sm:$0xf]
        %v4450 = vld [vmem:[%s2 + $0xa8] sm:$0xf]
        %v4451 = vld [vmem:[%s2 + $0xac] sm:$0xf]
        %v4452 = vld [vmem:[%s2 + $0xb0] sm:$0xf]
        %v4453 = vld [vmem:[%s2 + $0xb4] sm:$0xf]
        %v4454 = vld [vmem:[%s2 + $0xb8] sm:$0xf]
        %v4455 = vld [vmem:[%s2 + $0xbc] sm:$0xf]
        %v4456 = vld [vmem:[%s3 + $0x3] sm:$0x1]
        %v4457 = vperm.slane %v4456, 0
        %v4490 = vunpack.c.l.b16 %v4424
        %v4491 = vunpack.c.l.b16 %v4425
        %v4492 = vunpack.c.l.b16 %v4426
        %v4493 = vunpack.c.l.b16 %v4427
        %v4494 = vunpack.c.l.b16 %v4428
        %v4495 = vunpack.c.l.b16 %v4429
        %v4496 = vunpack.c.l.b16 %v4430
        %v4497 = vunpack.c.l.b16 %v4431
        %v4498 = vunpack.c.l.b16 %v4432
        %v4499 = vunpack.c.l.b16 %v4433
        %v4500 = vunpack.c.l.b16 %v4434
        %v4501 = vunpack.c.l.b16 %v4435
        %v4502 = vunpack.c.l.b16 %v4436
        %v4503 = vunpack.c.l.b16 %v4437
        %v4504 = vunpack.c.l.b16 %v4438
        %v4505 = vunpack.c.l.b16 %v4439
        %v4506 = vunpack.c.l.b16 %v4440
        %v4507 = vunpack.c.l.b16 %v4441
        %v4508 = vunpack.c.l.b16 %v4442
        %v4509 = vunpack.c.l.b16 %v4443
        %v4510 = vunpack.c.l.b16 %v4444
        %v4511 = vunpack.c.l.b16 %v4445
        %v4512 = vunpack.c.l.b16 %v4446
        %v4513 = vunpack.c.l.b16 %v4447
        %v4514 = vunpack.c.l.b16 %v4448
        %v4515 = vunpack.c.l.b16 %v4449
        %v4516 = vunpack.c.l.b16 %v4450
        %v4517 = vunpack.c.l.b16 %v4451
        %v4518 = vunpack.c.l.b16 %v4452
        %v4519 = vunpack.c.l.b16 %v4453
        %v4520 = vunpack.c.l.b16 %v4454
        %v4521 = vunpack.c.l.b16 %v4455
        %v4522 = vpack.c.b16 %v4491, %v4490
        %v4523 = vpack.c.b16 %v4493, %v4492
        %v4524 = vpack.c.b16 %v4495, %v4494
        %v4525 = vpack.c.b16 %v4497, %v4496
        %v4526 = vpack.c.b16 %v4499, %v4498
        %v4527 = vpack.c.b16 %v4501, %v4500
        %v4528 = vpack.c.b16 %v4503, %v4502
        %v4529 = vpack.c.b16 %v4505, %v4504
        %v4530 = vpack.c.b16 %v4507, %v4506
        %v4531 = vpack.c.b16 %v4509, %v4508
        %v4532 = vpack.c.b16 %v4511, %v4510
        %v4533 = vpack.c.b16 %v4513, %v4512
        %v4534 = vpack.c.b16 %v4515, %v4514
        %v4535 = vpack.c.b16 %v4517, %v4516
        %v4536 = vpack.c.b16 %v4519, %v4518
        %v4537 = vpack.c.b16 %v4521, %v4520
        %4554 = vmatpush.bf16.msra.mxu0 %v4529
        %4555 = vmatpush.bf16.msra.mxu0 %v4528
        %4556 = vmatpush.bf16.msra.mxu0 %v4527
        %4557 = vmatpush.bf16.msra.mxu0 %v4526
        %4558 = vmatpush.bf16.msra.mxu0 %v4525
        %4559 = vmatpush.bf16.msra.mxu0 %v4524
        %4560 = vmatpush.bf16.msra.mxu0 %v4523
        %4561 = vmatpush.bf16.msra.mxu0 %v4522
        %4562 = vmatmul.bf16.gmra.mxu0 %v4344
        %v4563 = vpop.f32.mrf.mxu0
        %v4564 = vadd.f32 %v4457, %v4563
        %v4565 = vpop.f32.mrf.mxu0
        %v4566 = vadd.f32 %v4457, %v4565
        %4567 = vmatmul.bf16.gmra.mxu0 %v4345
        %v4568 = vpop.f32.mrf.mxu0
        %v4569 = vadd.f32 %v4457, %v4568
        %v4570 = vpop.f32.mrf.mxu0
        %v4571 = vadd.f32 %v4457, %v4570
        %4572 = vmatmul.bf16.gmra.mxu0 %v4346
        %v4573 = vpop.f32.mrf.mxu0
        %v4574 = vadd.f32 %v4457, %v4573
        %v4575 = vpop.f32.mrf.mxu0
        %v4576 = vadd.f32 %v4457, %v4575
        %4577 = vmatmul.bf16.gmra.mxu0 %v4347
        %v4578 = vpop.f32.mrf.mxu0
        %v4579 = vadd.f32 %v4457, %v4578
        %v4580 = vpop.f32.mrf.mxu0
        %v4581 = vadd.f32 %v4457, %v4580
        %4582 = vmatmul.bf16.gmra.mxu0 %v4348
        %v4583 = vpop.f32.mrf.mxu0
        %v4584 = vadd.f32 %v4457, %v4583
        %v4585 = vpop.f32.mrf.mxu0
        %v4586 = vadd.f32 %v4457, %v4585
        %4587 = vmatmul.bf16.gmra.mxu0 %v4349
        %v4588 = vpop.f32.mrf.mxu0
        %v4589 = vadd.f32 %v4457, %v4588
        %v4590 = vpop.f32.mrf.mxu0
        %v4591 = vadd.f32 %v4457, %v4590
        %4592 = vmatmul.bf16.gmra.mxu0 %v4350
        %v4593 = vpop.f32.mrf.mxu0
        %v4594 = vadd.f32 %v4457, %v4593
        %v4595 = vpop.f32.mrf.mxu0
        %v4596 = vadd.f32 %v4457, %v4595
        %4597 = vmatmul.bf16.gmra.mxu0 %v4351
        %v4598 = vpop.f32.mrf.mxu0
        %v4599 = vadd.f32 %v4457, %v4598
        %v4600 = vpop.f32.mrf.mxu0
        %v4601 = vadd.f32 %v4457, %v4600
        %4602 = vmatmul.bf16.gmra.mxu0 %v4352
        %v4603 = vpop.f32.mrf.mxu0
        %v4604 = vadd.f32 %v4457, %v4603
        %v4605 = vpop.f32.mrf.mxu0
        %v4606 = vadd.f32 %v4457, %v4605
        %4607 = vmatmul.bf16.gmra.mxu0 %v4353
        %v4608 = vpop.f32.mrf.mxu0
        %v4609 = vadd.f32 %v4457, %v4608
        %v4610 = vpop.f32.mrf.mxu0
        %v4611 = vadd.f32 %v4457, %v4610
        %4612 = vdwg.mxu0
        %4613 = vmatpush.bf16.msra.mxu0 %v4537
        %4614 = vmatpush.bf16.msra.mxu0 %v4536
        %4615 = vmatpush.bf16.msra.mxu0 %v4535
        %4616 = vmatpush.bf16.msra.mxu0 %v4534
        %4617 = vmatpush.bf16.msra.mxu0 %v4533
        %4618 = vmatpush.bf16.msra.mxu0 %v4532
        %4619 = vmatpush.bf16.msra.mxu0 %v4531
        %4620 = vmatpush.bf16.msra.mxu0 %v4530
        %4621 = vmatmul.bf16.gmra.mxu0 %v4404
        %v4622 = vpop.f32.mrf.mxu0
        %v4623 = vadd.f32 %v4564, %v4622
        %v4624 = vpop.f32.mrf.mxu0
        %v4625 = vadd.f32 %v4566, %v4624
        %4626 = vmatmul.bf16.gmra.mxu0 %v4405
        %v4627 = vpop.f32.mrf.mxu0
        %v4628 = vadd.f32 %v4569, %v4627
        %v4629 = vpop.f32.mrf.mxu0
        %v4630 = vadd.f32 %v4571, %v4629
        %4631 = vmatmul.bf16.gmra.mxu0 %v4406
        %v4632 = vpop.f32.mrf.mxu0
        %v4633 = vadd.f32 %v4574, %v4632
        %v4634 = vpop.f32.mrf.mxu0
        %v4635 = vadd.f32 %v4576, %v4634
        %4636 = vmatmul.bf16.gmra.mxu0 %v4407
        %v4637 = vpop.f32.mrf.mxu0
        %v4638 = vadd.f32 %v4579, %v4637
        %v4639 = vpop.f32.mrf.mxu0
        %v4640 = vadd.f32 %v4581, %v4639
        %4641 = vmatmul.bf16.gmra.mxu0 %v4408
        %v4642 = vpop.f32.mrf.mxu0
        %v4643 = vadd.f32 %v4584, %v4642
        %v4644 = vpop.f32.mrf.mxu0
        %v4645 = vadd.f32 %v4586, %v4644
        %4646 = vmatmul.bf16.gmra.mxu0 %v4409
        %v4647 = vpop.f32.mrf.mxu0
        %v4648 = vadd.f32 %v4589, %v4647
        %v4649 = vpop.f32.mrf.mxu0
        %v4650 = vadd.f32 %v4591, %v4649
        %4651 = vmatmul.bf16.gmra.mxu0 %v4410
        %v4652 = vpop.f32.mrf.mxu0
        %v4653 = vadd.f32 %v4594, %v4652
        %v4654 = vpop.f32.mrf.mxu0
        %v4655 = vadd.f32 %v4596, %v4654
        %4656 = vmatmul.bf16.gmra.mxu0 %v4411
        %v4657 = vpop.f32.mrf.mxu0
        %v4658 = vadd.f32 %v4599, %v4657
        %v4659 = vpop.f32.mrf.mxu0
        %v4660 = vadd.f32 %v4601, %v4659
        %4661 = vmatmul.bf16.gmra.mxu0 %v4412
        %v4662 = vpop.f32.mrf.mxu0
        %v4663 = vadd.f32 %v4604, %v4662
        %v4664 = vpop.f32.mrf.mxu0
        %v4665 = vadd.f32 %v4606, %v4664
        %4666 = vmatmul.bf16.gmra.mxu0 %v4413
        %v4667 = vpop.f32.mrf.mxu0
        %v4668 = vadd.f32 %v4609, %v4667
        %v4669 = vpop.f32.mrf.mxu0
        %v4670 = vadd.f32 %v4611, %v4669
        %4671 = vdwg.mxu0
        %v4672 = vpack.c.bf16 %v4625, %v4623
        %v4673 = vpack.c.bf16 %v4630, %v4628
        %v4674 = vpack.c.bf16 %v4635, %v4633
        %v4675 = vpack.c.bf16 %v4640, %v4638
        %v4676 = vpack.c.bf16 %v4645, %v4643
        %v4677 = vpack.c.bf16 %v4650, %v4648
        %v4678 = vpack.c.bf16 %v4655, %v4653
        %v4679 = vpack.c.bf16 %v4660, %v4658
        %v4680 = vpack.c.bf16 %v4665, %v4663
        %v4681 = vpack.c.bf16 %v4670, %v4668
        %v4682 = vld [vmem:[%s2 + $0xc0] sm:$0xf]
        %v4683 = vld [vmem:[%s2 + $0xc4] sm:$0xf]
        %v4684 = vld [vmem:[%s2 + $0xc8] sm:$0xf]
        %v4685 = vld [vmem:[%s2 + $0xcc] sm:$0xf]
        %v4686 = vld [vmem:[%s2 + $0xd0] sm:$0xf]
        %v4687 = vld [vmem:[%s2 + $0xd4] sm:$0xf]
        %v4688 = vld [vmem:[%s2 + $0xd8] sm:$0xf]
        %v4689 = vld [vmem:[%s2 + $0xdc] sm:$0xf]
        %v4690 = vld [vmem:[%s2 + $0xe0] sm:$0xf]
        %v4691 = vld [vmem:[%s2 + $0xe4] sm:$0xf]
        %v4692 = vld [vmem:[%s2 + $0xe8] sm:$0xf]
        %v4693 = vld [vmem:[%s2 + $0xec] sm:$0xf]
        %v4694 = vld [vmem:[%s2 + $0xf0] sm:$0xf]
        %v4695 = vld [vmem:[%s2 + $0xf4] sm:$0xf]
        %v4696 = vld [vmem:[%s2 + $0xf8] sm:$0xf]
        %v4697 = vld [vmem:[%s2 + $0xfc] sm:$0xf]
        %v4698 = vld [vmem:[%s3 + $0x4] sm:$0x1]
        %v4699 = vperm.slane %v4698, 0
        %v4716 = vunpack.c.l.b16 %v4682
        %v4717 = vunpack.c.l.b16 %v4683
        %v4718 = vunpack.c.l.b16 %v4684
        %v4719 = vunpack.c.l.b16 %v4685
        %v4720 = vunpack.c.l.b16 %v4686
        %v4721 = vunpack.c.l.b16 %v4687
        %v4722 = vunpack.c.l.b16 %v4688
        %v4723 = vunpack.c.l.b16 %v4689
        %v4724 = vunpack.c.l.b16 %v4690
        %v4725 = vunpack.c.l.b16 %v4691
        %v4726 = vunpack.c.l.b16 %v4692
        %v4727 = vunpack.c.l.b16 %v4693
        %v4728 = vunpack.c.l.b16 %v4694
        %v4729 = vunpack.c.l.b16 %v4695
        %v4730 = vunpack.c.l.b16 %v4696
        %v4731 = vunpack.c.l.b16 %v4697
        %v4732 = vpack.c.b16 %v4717, %v4716
        %v4733 = vpack.c.b16 %v4719, %v4718
        %v4734 = vpack.c.b16 %v4721, %v4720
        %v4735 = vpack.c.b16 %v4723, %v4722
        %v4736 = vpack.c.b16 %v4725, %v4724
        %v4737 = vpack.c.b16 %v4727, %v4726
        %v4738 = vpack.c.b16 %v4729, %v4728
        %v4739 = vpack.c.b16 %v4731, %v4730
        %4748 = vmatpush.bf16.msra.mxu0 %v4739
        %4749 = vmatpush.bf16.msra.mxu0 %v4738
        %4750 = vmatpush.bf16.msra.mxu0 %v4737
        %4751 = vmatpush.bf16.msra.mxu0 %v4736
        %4752 = vmatpush.bf16.msra.mxu0 %v4735
        %4753 = vmatpush.bf16.msra.mxu0 %v4734
        %4754 = vmatpush.bf16.msra.mxu0 %v4733
        %4755 = vmatpush.bf16.msra.mxu0 %v4732
        %4756 = vmatmul.bf16.gmra.mxu0 %v4672
        %v4757 = vpop.f32.mrf.mxu0
        %v4758 = vadd.f32 %v4699, %v4757
        %v4759 = vpop.f32.mrf.mxu0
        %v4760 = vadd.f32 %v4699, %v4759
        %4761 = vmatmul.bf16.gmra.mxu0 %v4673
        %v4762 = vpop.f32.mrf.mxu0
        %v4763 = vadd.f32 %v4699, %v4762
        %v4764 = vpop.f32.mrf.mxu0
        %v4765 = vadd.f32 %v4699, %v4764
        %4766 = vmatmul.bf16.gmra.mxu0 %v4674
        %v4767 = vpop.f32.mrf.mxu0
        %v4768 = vadd.f32 %v4699, %v4767
        %v4769 = vpop.f32.mrf.mxu0
        %v4770 = vadd.f32 %v4699, %v4769
        %4771 = vmatmul.bf16.gmra.mxu0 %v4675
        %v4772 = vpop.f32.mrf.mxu0
        %v4773 = vadd.f32 %v4699, %v4772
        %v4774 = vpop.f32.mrf.mxu0
        %v4775 = vadd.f32 %v4699, %v4774
        %4776 = vmatmul.bf16.gmra.mxu0 %v4676
        %v4777 = vpop.f32.mrf.mxu0
        %v4778 = vadd.f32 %v4699, %v4777
        %v4779 = vpop.f32.mrf.mxu0
        %v4780 = vadd.f32 %v4699, %v4779
        %4781 = vmatmul.bf16.gmra.mxu0 %v4677
        %v4782 = vpop.f32.mrf.mxu0
        %v4783 = vadd.f32 %v4699, %v4782
        %v4784 = vpop.f32.mrf.mxu0
        %v4785 = vadd.f32 %v4699, %v4784
        %4786 = vmatmul.bf16.gmra.mxu0 %v4678
        %v4787 = vpop.f32.mrf.mxu0
        %v4788 = vadd.f32 %v4699, %v4787
        %v4789 = vpop.f32.mrf.mxu0
        %v4790 = vadd.f32 %v4699, %v4789
        %4791 = vmatmul.bf16.gmra.mxu0 %v4679
        %v4792 = vpop.f32.mrf.mxu0
        %v4793 = vadd.f32 %v4699, %v4792
        %v4794 = vpop.f32.mrf.mxu0
        %v4795 = vadd.f32 %v4699, %v4794
        %4796 = vmatmul.bf16.gmra.mxu0 %v4680
        %v4797 = vpop.f32.mrf.mxu0
        %v4798 = vadd.f32 %v4699, %v4797
        %v4799 = vpop.f32.mrf.mxu0
        %v4800 = vadd.f32 %v4699, %v4799
        %4801 = vmatmul.bf16.gmra.mxu0 %v4681
        %v4802 = vpop.f32.mrf.mxu0
        %v4803 = vadd.f32 %v4699, %v4802
        %v4804 = vpop.f32.mrf.mxu0
        %v4805 = vadd.f32 %v4699, %v4804
        %4806 = vdwg.mxu0
        %vm4807 = vcmp.gt.f32.partialorder %v4758, 0.0
        %vm4808 = vcmp.gt.f32.partialorder %v4760, 0.0
        %vm4809 = vcmp.gt.f32.partialorder %v4763, 0.0
        %vm4810 = vcmp.gt.f32.partialorder %v4765, 0.0
        %vm4811 = vcmp.gt.f32.partialorder %v4768, 0.0
        %vm4812 = vcmp.gt.f32.partialorder %v4770, 0.0
        %vm4813 = vcmp.gt.f32.partialorder %v4773, 0.0
        %vm4814 = vcmp.gt.f32.partialorder %v4775, 0.0
        %vm4815 = vcmp.gt.f32.partialorder %v4778, 0.0
        %vm4816 = vcmp.gt.f32.partialorder %v4780, 0.0
        %vm4817 = vcmp.gt.f32.partialorder %v4783, 0.0
        %vm4818 = vcmp.gt.f32.partialorder %v4785, 0.0
        %vm4819 = vcmp.gt.f32.partialorder %v4788, 0.0
        %vm4820 = vcmp.gt.f32.partialorder %v4790, 0.0
        %vm4821 = vcmp.gt.f32.partialorder %v4793, 0.0
        %vm4822 = vcmp.gt.f32.partialorder %v4795, 0.0
        %vm4823 = vcmp.gt.f32.partialorder %v4798, 0.0
        %vm4824 = vcmp.gt.f32.partialorder %v4800, 0.0
        %vm4825 = vcmp.gt.f32.partialorder %v4803, 0.0
        %vm4826 = vcmp.gt.f32.partialorder %v4805, 0.0
        %v4827 = vmul.f32 %v4758, 0.4
        %v4828 = vmul.f32 %v4760, 0.4
        %v4829 = vmul.f32 %v4763, 0.4
        %v4830 = vmul.f32 %v4765, 0.4
        %v4831 = vmul.f32 %v4768, 0.4
        %v4832 = vmul.f32 %v4770, 0.4
        %v4833 = vmul.f32 %v4773, 0.4
        %v4834 = vmul.f32 %v4775, 0.4
        %v4835 = vmul.f32 %v4778, 0.4
        %v4836 = vmul.f32 %v4780, 0.4
        %v4837 = vmul.f32 %v4783, 0.4
        %v4838 = vmul.f32 %v4785, 0.4
        %v4839 = vmul.f32 %v4788, 0.4
        %v4840 = vmul.f32 %v4790, 0.4
        %v4841 = vmul.f32 %v4793, 0.4
        %v4842 = vmul.f32 %v4795, 0.4
        %v4843 = vmul.f32 %v4798, 0.4
        %v4844 = vmul.f32 %v4800, 0.4
        %v4845 = vmul.f32 %v4803, 0.4
        %v4846 = vmul.f32 %v4805, 0.4
        %v4847 = vsel %vm4807, %v4758, %v4827
        %v4848 = vsel %vm4808, %v4760, %v4828
        %v4849 = vsel %vm4809, %v4763, %v4829
        %v4850 = vsel %vm4810, %v4765, %v4830
        %v4851 = vsel %vm4811, %v4768, %v4831
        %v4852 = vsel %vm4812, %v4770, %v4832
        %v4853 = vsel %vm4813, %v4773, %v4833
        %v4854 = vsel %vm4814, %v4775, %v4834
        %v4855 = vsel %vm4815, %v4778, %v4835
        %v4856 = vsel %vm4816, %v4780, %v4836
        %v4857 = vsel %vm4817, %v4783, %v4837
        %v4858 = vsel %vm4818, %v4785, %v4838
        %v4859 = vsel %vm4819, %v4788, %v4839
        %v4860 = vsel %vm4820, %v4790, %v4840
        %v4861 = vsel %vm4821, %v4793, %v4841
        %v4862 = vsel %vm4822, %v4795, %v4842
        %v4863 = vsel %vm4823, %v4798, %v4843
        %v4864 = vsel %vm4824, %v4800, %v4844
        %v4865 = vsel %vm4825, %v4803, %v4845
        %v4866 = vsel %vm4826, %v4805, %v4846
        %v4867 = vpack.c.bf16 %v4848, %v4847
        %v4868 = vpack.c.bf16 %v4850, %v4849
        %v4869 = vpack.c.bf16 %v4852, %v4851
        %v4870 = vpack.c.bf16 %v4854, %v4853
        %v4871 = vpack.c.bf16 %v4856, %v4855
        %v4872 = vpack.c.bf16 %v4858, %v4857
        %v4873 = vpack.c.bf16 %v4860, %v4859
        %v4874 = vpack.c.bf16 %v4862, %v4861
        %v4875 = vpack.c.bf16 %v4864, %v4863
        %v4876 = vpack.c.bf16 %v4866, %v4865
        %v4877 = vld [vmem:[%s2 + $0x100] sm:$0xf]
        %v4878 = vld [vmem:[%s2 + $0x104] sm:$0xf]
        %v4879 = vld [vmem:[%s2 + $0x108] sm:$0xf]
        %v4880 = vld [vmem:[%s2 + $0x10c] sm:$0xf]
        %v4881 = vld [vmem:[%s2 + $0x110] sm:$0xf]
        %v4882 = vld [vmem:[%s2 + $0x114] sm:$0xf]
        %v4883 = vld [vmem:[%s2 + $0x118] sm:$0xf]
        %v4884 = vld [vmem:[%s2 + $0x11c] sm:$0xf]
        %v4885 = vld [vmem:[%s2 + $0x120] sm:$0xf]
        %v4886 = vld [vmem:[%s2 + $0x124] sm:$0xf]
        %v4887 = vld [vmem:[%s2 + $0x128] sm:$0xf]
        %v4888 = vld [vmem:[%s2 + $0x12c] sm:$0xf]
        %v4889 = vld [vmem:[%s2 + $0x130] sm:$0xf]
        %v4890 = vld [vmem:[%s2 + $0x134] sm:$0xf]
        %v4891 = vld [vmem:[%s2 + $0x138] sm:$0xf]
        %v4892 = vld [vmem:[%s2 + $0x13c] sm:$0xf]
        %v4893 = vld [vmem:[%s3 + $0x5] sm:$0x1]
        %v4894 = vperm.slane %v4893, 0
        %v4911 = vunpack.c.l.b16 %v4877
        %v4912 = vunpack.c.l.b16 %v4878
        %v4913 = vunpack.c.l.b16 %v4879
        %v4914 = vunpack.c.l.b16 %v4880
        %v4915 = vunpack.c.l.b16 %v4881
        %v4916 = vunpack.c.l.b16 %v4882
        %v4917 = vunpack.c.l.b16 %v4883
        %v4918 = vunpack.c.l.b16 %v4884
        %v4919 = vunpack.c.l.b16 %v4885
        %v4920 = vunpack.c.l.b16 %v4886
        %v4921 = vunpack.c.l.b16 %v4887
        %v4922 = vunpack.c.l.b16 %v4888
        %v4923 = vunpack.c.l.b16 %v4889
        %v4924 = vunpack.c.l.b16 %v4890
        %v4925 = vunpack.c.l.b16 %v4891
        %v4926 = vunpack.c.l.b16 %v4892
        %v4927 = vpack.c.b16 %v4912, %v4911
        %v4928 = vpack.c.b16 %v4914, %v4913
        %v4929 = vpack.c.b16 %v4916, %v4915
        %v4930 = vpack.c.b16 %v4918, %v4917
        %v4931 = vpack.c.b16 %v4920, %v4919
        %v4932 = vpack.c.b16 %v4922, %v4921
        %v4933 = vpack.c.b16 %v4924, %v4923
        %v4934 = vpack.c.b16 %v4926, %v4925
        %4943 = vmatpush.bf16.msra.mxu0 %v4934
        %4944 = vmatpush.bf16.msra.mxu0 %v4933
        %4945 = vmatpush.bf16.msra.mxu0 %v4932
        %4946 = vmatpush.bf16.msra.mxu0 %v4931
        %4947 = vmatpush.bf16.msra.mxu0 %v4930
        %4948 = vmatpush.bf16.msra.mxu0 %v4929
        %4949 = vmatpush.bf16.msra.mxu0 %v4928
        %4950 = vmatpush.bf16.msra.mxu0 %v4927
        %4951 = vmatmul.bf16.gmra.mxu0 %v4867
        %v4952 = vpop.f32.mrf.mxu0
        %v4953 = vadd.f32 %v4894, %v4952
        %v4954 = vpop.f32.mrf.mxu0
        %v4955 = vadd.f32 %v4894, %v4954
        %4956 = vmatmul.bf16.gmra.mxu0 %v4868
        %v4957 = vpop.f32.mrf.mxu0
        %v4958 = vadd.f32 %v4894, %v4957
        %v4959 = vpop.f32.mrf.mxu0
        %v4960 = vadd.f32 %v4894, %v4959
        %4961 = vmatmul.bf16.gmra.mxu0 %v4869
        %v4962 = vpop.f32.mrf.mxu0
        %v4963 = vadd.f32 %v4894, %v4962
        %v4964 = vpop.f32.mrf.mxu0
        %v4965 = vadd.f32 %v4894, %v4964
        %4966 = vmatmul.bf16.gmra.mxu0 %v4870
        %v4967 = vpop.f32.mrf.mxu0
        %v4968 = vadd.f32 %v4894, %v4967
        %v4969 = vpop.f32.mrf.mxu0
        %v4970 = vadd.f32 %v4894, %v4969
        %4971 = vmatmul.bf16.gmra.mxu0 %v4871
        %v4972 = vpop.f32.mrf.mxu0
        %v4973 = vadd.f32 %v4894, %v4972
        %v4974 = vpop.f32.mrf.mxu0
        %v4975 = vadd.f32 %v4894, %v4974
        %4976 = vmatmul.bf16.gmra.mxu0 %v4872
        %v4977 = vpop.f32.mrf.mxu0
        %v4978 = vadd.f32 %v4894, %v4977
        %v4979 = vpop.f32.mrf.mxu0
        %v4980 = vadd.f32 %v4894, %v4979
        %4981 = vmatmul.bf16.gmra.mxu0 %v4873
        %v4982 = vpop.f32.mrf.mxu0
        %v4983 = vadd.f32 %v4894, %v4982
        %v4984 = vpop.f32.mrf.mxu0
        %v4985 = vadd.f32 %v4894, %v4984
        %4986 = vmatmul.bf16.gmra.mxu0 %v4874
        %v4987 = vpop.f32.mrf.mxu0
        %v4988 = vadd.f32 %v4894, %v4987
        %v4989 = vpop.f32.mrf.mxu0
        %v4990 = vadd.f32 %v4894, %v4989
        %4991 = vmatmul.bf16.gmra.mxu0 %v4875
        %v4992 = vpop.f32.mrf.mxu0
        %v4993 = vadd.f32 %v4894, %v4992
        %v4994 = vpop.f32.mrf.mxu0
        %v4995 = vadd.f32 %v4894, %v4994
        %4996 = vmatmul.bf16.gmra.mxu0 %v4876
        %v4997 = vpop.f32.mrf.mxu0
        %v4998 = vadd.f32 %v4894, %v4997
        %v4999 = vpop.f32.mrf.mxu0
        %v5000 = vadd.f32 %v4894, %v4999
        %5001 = vdwg.mxu0
        %vm5002 = vcmp.gt.f32.partialorder %v4953, 0.0
        %vm5003 = vcmp.gt.f32.partialorder %v4955, 0.0
        %vm5004 = vcmp.gt.f32.partialorder %v4958, 0.0
        %vm5005 = vcmp.gt.f32.partialorder %v4960, 0.0
        %vm5006 = vcmp.gt.f32.partialorder %v4963, 0.0
        %vm5007 = vcmp.gt.f32.partialorder %v4965, 0.0
        %vm5008 = vcmp.gt.f32.partialorder %v4968, 0.0
        %vm5009 = vcmp.gt.f32.partialorder %v4970, 0.0
        %vm5010 = vcmp.gt.f32.partialorder %v4973, 0.0
        %vm5011 = vcmp.gt.f32.partialorder %v4975, 0.0
        %vm5012 = vcmp.gt.f32.partialorder %v4978, 0.0
        %vm5013 = vcmp.gt.f32.partialorder %v4980, 0.0
        %vm5014 = vcmp.gt.f32.partialorder %v4983, 0.0
        %vm5015 = vcmp.gt.f32.partialorder %v4985, 0.0
        %vm5016 = vcmp.gt.f32.partialorder %v4988, 0.0
        %vm5017 = vcmp.gt.f32.partialorder %v4990, 0.0
        %vm5018 = vcmp.gt.f32.partialorder %v4993, 0.0
        %vm5019 = vcmp.gt.f32.partialorder %v4995, 0.0
        %vm5020 = vcmp.gt.f32.partialorder %v4998, 0.0
        %vm5021 = vcmp.gt.f32.partialorder %v5000, 0.0
        %v5022 = vmul.f32 %v4953, 0.4
        %v5023 = vmul.f32 %v4955, 0.4
        %v5024 = vmul.f32 %v4958, 0.4
        %v5025 = vmul.f32 %v4960, 0.4
        %v5026 = vmul.f32 %v4963, 0.4
        %v5027 = vmul.f32 %v4965, 0.4
        %v5028 = vmul.f32 %v4968, 0.4
        %v5029 = vmul.f32 %v4970, 0.4
        %v5030 = vmul.f32 %v4973, 0.4
        %v5031 = vmul.f32 %v4975, 0.4
        %v5032 = vmul.f32 %v4978, 0.4
        %v5033 = vmul.f32 %v4980, 0.4
        %v5034 = vmul.f32 %v4983, 0.4
        %v5035 = vmul.f32 %v4985, 0.4
        %v5036 = vmul.f32 %v4988, 0.4
        %v5037 = vmul.f32 %v4990, 0.4
        %v5038 = vmul.f32 %v4993, 0.4
        %v5039 = vmul.f32 %v4995, 0.4
        %v5040 = vmul.f32 %v4998, 0.4
        %v5041 = vmul.f32 %v5000, 0.4
        %v5042 = vsel %vm5002, %v4953, %v5022
        %v5043 = vsel %vm5003, %v4955, %v5023
        %v5044 = vsel %vm5004, %v4958, %v5024
        %v5045 = vsel %vm5005, %v4960, %v5025
        %v5046 = vsel %vm5006, %v4963, %v5026
        %v5047 = vsel %vm5007, %v4965, %v5027
        %v5048 = vsel %vm5008, %v4968, %v5028
        %v5049 = vsel %vm5009, %v4970, %v5029
        %v5050 = vsel %vm5010, %v4973, %v5030
        %v5051 = vsel %vm5011, %v4975, %v5031
        %v5052 = vsel %vm5012, %v4978, %v5032
        %v5053 = vsel %vm5013, %v4980, %v5033
        %v5054 = vsel %vm5014, %v4983, %v5034
        %v5055 = vsel %vm5015, %v4985, %v5035
        %v5056 = vsel %vm5016, %v4988, %v5036
        %v5057 = vsel %vm5017, %v4990, %v5037
        %v5058 = vsel %vm5018, %v4993, %v5038
        %v5059 = vsel %vm5019, %v4995, %v5039
        %v5060 = vsel %vm5020, %v4998, %v5040
        %v5061 = vsel %vm5021, %v5000, %v5041
        %v5062 = vpack.c.bf16 %v5043, %v5042
        %v5063 = vpack.c.bf16 %v5045, %v5044
        %v5064 = vpack.c.bf16 %v5047, %v5046
        %v5065 = vpack.c.bf16 %v5049, %v5048
        %v5066 = vpack.c.bf16 %v5051, %v5050
        %v5067 = vpack.c.bf16 %v5053, %v5052
        %v5068 = vpack.c.bf16 %v5055, %v5054
        %v5069 = vpack.c.bf16 %v5057, %v5056
        %v5070 = vpack.c.bf16 %v5059, %v5058
        %v5071 = vpack.c.bf16 %v5061, %v5060
        %v5072 = vld [vmem:[%s2 + $0x140] sm:$0xf]
        %v5073 = vld [vmem:[%s2 + $0x144] sm:$0xf]
        %v5074 = vld [vmem:[%s2 + $0x148] sm:$0xf]
        %v5075 = vld [vmem:[%s2 + $0x14c] sm:$0xf]
        %v5076 = vld [vmem:[%s2 + $0x150] sm:$0xf]
        %v5077 = vld [vmem:[%s2 + $0x154] sm:$0xf]
        %v5078 = vld [vmem:[%s2 + $0x158] sm:$0xf]
        %v5079 = vld [vmem:[%s2 + $0x15c] sm:$0xf]
        %v5080 = vld [vmem:[%s2 + $0x160] sm:$0xf]
        %v5081 = vld [vmem:[%s2 + $0x164] sm:$0xf]
        %v5082 = vld [vmem:[%s2 + $0x168] sm:$0xf]
        %v5083 = vld [vmem:[%s2 + $0x16c] sm:$0xf]
        %v5084 = vld [vmem:[%s2 + $0x170] sm:$0xf]
        %v5085 = vld [vmem:[%s2 + $0x174] sm:$0xf]
        %v5086 = vld [vmem:[%s2 + $0x178] sm:$0xf]
        %v5087 = vld [vmem:[%s2 + $0x17c] sm:$0xf]
        %v5088 = vld [vmem:[%s3 + $0x6] sm:$0x1]
        %v5089 = vperm.slane %v5088, 0
        %v5106 = vunpack.c.l.b16 %v5072
        %v5107 = vunpack.c.l.b16 %v5073
        %v5108 = vunpack.c.l.b16 %v5074
        %v5109 = vunpack.c.l.b16 %v5075
        %v5110 = vunpack.c.l.b16 %v5076
        %v5111 = vunpack.c.l.b16 %v5077
        %v5112 = vunpack.c.l.b16 %v5078
        %v5113 = vunpack.c.l.b16 %v5079
        %v5114 = vunpack.c.l.b16 %v5080
        %v5115 = vunpack.c.l.b16 %v5081
        %v5116 = vunpack.c.l.b16 %v5082
        %v5117 = vunpack.c.l.b16 %v5083
        %v5118 = vunpack.c.l.b16 %v5084
        %v5119 = vunpack.c.l.b16 %v5085
        %v5120 = vunpack.c.l.b16 %v5086
        %v5121 = vunpack.c.l.b16 %v5087
        %v5122 = vpack.c.b16 %v5107, %v5106
        %v5123 = vpack.c.b16 %v5109, %v5108
        %v5124 = vpack.c.b16 %v5111, %v5110
        %v5125 = vpack.c.b16 %v5113, %v5112
        %v5126 = vpack.c.b16 %v5115, %v5114
        %v5127 = vpack.c.b16 %v5117, %v5116
        %v5128 = vpack.c.b16 %v5119, %v5118
        %v5129 = vpack.c.b16 %v5121, %v5120
        %5138 = vmatpush.bf16.msra.mxu0 %v5129
        %5139 = vmatpush.bf16.msra.mxu0 %v5128
        %5140 = vmatpush.bf16.msra.mxu0 %v5127
        %5141 = vmatpush.bf16.msra.mxu0 %v5126
        %5142 = vmatpush.bf16.msra.mxu0 %v5125
        %5143 = vmatpush.bf16.msra.mxu0 %v5124
        %5144 = vmatpush.bf16.msra.mxu0 %v5123
        %5145 = vmatpush.bf16.msra.mxu0 %v5122
        %5146 = vmatmul.bf16.gmra.mxu0 %v5062
        %v5147 = vpop.f32.mrf.mxu0
        %v5148 = vadd.f32 %v5089, %v5147
        %v5149 = vpop.f32.mrf.mxu0
        %v5150 = vadd.f32 %v5089, %v5149
        %5151 = vmatmul.bf16.gmra.mxu0 %v5063
        %v5152 = vpop.f32.mrf.mxu0
        %v5153 = vadd.f32 %v5089, %v5152
        %v5154 = vpop.f32.mrf.mxu0
        %v5155 = vadd.f32 %v5089, %v5154
        %5156 = vmatmul.bf16.gmra.mxu0 %v5064
        %v5157 = vpop.f32.mrf.mxu0
        %v5158 = vadd.f32 %v5089, %v5157
        %v5159 = vpop.f32.mrf.mxu0
        %v5160 = vadd.f32 %v5089, %v5159
        %5161 = vmatmul.bf16.gmra.mxu0 %v5065
        %v5162 = vpop.f32.mrf.mxu0
        %v5163 = vadd.f32 %v5089, %v5162
        %v5164 = vpop.f32.mrf.mxu0
        %v5165 = vadd.f32 %v5089, %v5164
        %5166 = vmatmul.bf16.gmra.mxu0 %v5066
        %v5167 = vpop.f32.mrf.mxu0
        %v5168 = vadd.f32 %v5089, %v5167
        %v5169 = vpop.f32.mrf.mxu0
        %v5170 = vadd.f32 %v5089, %v5169
        %5171 = vmatmul.bf16.gmra.mxu0 %v5067
        %v5172 = vpop.f32.mrf.mxu0
        %v5173 = vadd.f32 %v5089, %v5172
        %v5174 = vpop.f32.mrf.mxu0
        %v5175 = vadd.f32 %v5089, %v5174
        %5176 = vmatmul.bf16.gmra.mxu0 %v5068
        %v5177 = vpop.f32.mrf.mxu0
        %v5178 = vadd.f32 %v5089, %v5177
        %v5179 = vpop.f32.mrf.mxu0
        %v5180 = vadd.f32 %v5089, %v5179
        %5181 = vmatmul.bf16.gmra.mxu0 %v5069
        %v5182 = vpop.f32.mrf.mxu0
        %v5183 = vadd.f32 %v5089, %v5182
        %v5184 = vpop.f32.mrf.mxu0
        %v5185 = vadd.f32 %v5089, %v5184
        %5186 = vmatmul.bf16.gmra.mxu0 %v5070
        %v5187 = vpop.f32.mrf.mxu0
        %v5188 = vadd.f32 %v5089, %v5187
        %v5189 = vpop.f32.mrf.mxu0
        %v5190 = vadd.f32 %v5089, %v5189
        %5191 = vmatmul.bf16.gmra.mxu0 %v5071
        %v5192 = vpop.f32.mrf.mxu0
        %v5193 = vadd.f32 %v5089, %v5192
        %v5194 = vpop.f32.mrf.mxu0
        %v5195 = vadd.f32 %v5089, %v5194
        %5196 = vdwg.mxu0
        %v5197 = vpack.c.bf16 %v5148, %v5148
        %v5198 = vpack.c.bf16 %v5150, %v5150
        %v5199 = vpack.c.bf16 %v5153, %v5153
        %v5200 = vpack.c.bf16 %v5155, %v5155
        %v5201 = vpack.c.bf16 %v5158, %v5158
        %v5202 = vpack.c.bf16 %v5160, %v5160
        %v5203 = vpack.c.bf16 %v5163, %v5163
        %v5204 = vpack.c.bf16 %v5165, %v5165
        %v5205 = vpack.c.bf16 %v5168, %v5168
        %v5206 = vpack.c.bf16 %v5170, %v5170
        %v5207 = vpack.c.bf16 %v5173, %v5173
        %v5208 = vpack.c.bf16 %v5175, %v5175
        %v5209 = vpack.c.bf16 %v5178, %v5178
        %v5210 = vpack.c.bf16 %v5180, %v5180
        %v5211 = vpack.c.bf16 %v5183, %v5183
        %v5212 = vpack.c.bf16 %v5185, %v5185
        %v5213 = vpack.c.bf16 %v5188, %v5188
        %v5214 = vpack.c.bf16 %v5190, %v5190
        %v5215 = vpack.c.bf16 %v5193, %v5193
        %v5216 = vpack.c.bf16 %v5195, %v5195
        %5217 = vst [vmem:[%s207] sm:$0xf] %v5197
        %5218 = vst [vmem:[%s207 + $0x4] sm:$0xf] %v5198
        %5219 = vst [vmem:[%s207 + $0x8] sm:$0xf] %v5199
        %5220 = vst [vmem:[%s207 + $0xc] sm:$0xf] %v5200
        %5221 = vst [vmem:[%s207 + $0x10] sm:$0xf] %v5201
        %5222 = vst [vmem:[%s207 + $0x14] sm:$0xf] %v5202
        %5223 = vst [vmem:[%s207 + $0x18] sm:$0xf] %v5203
        %5224 = vst [vmem:[%s207 + $0x1c] sm:$0xf] %v5204
        %5225 = vst [vmem:[%s207 + $0x20] sm:$0xf] %v5205
        %5226 = vst [vmem:[%s207 + $0x24] sm:$0xf] %v5206
        %5227 = vst [vmem:[%s207 + $0x28] sm:$0xf] %v5207
        %5228 = vst [vmem:[%s207 + $0x2c] sm:$0xf] %v5208
        %5229 = vst [vmem:[%s207 + $0x30] sm:$0xf] %v5209
        %5230 = vst [vmem:[%s207 + $0x34] sm:$0xf] %v5210
        %5231 = vst [vmem:[%s207 + $0x38] sm:$0xf] %v5211
        %5232 = vst [vmem:[%s207 + $0x3c] sm:$0xf] %v5212
        %5233 = vst [vmem:[%s207 + $0x40] sm:$0xf] %v5213
        %5234 = vst [vmem:[%s207 + $0x44] sm:$0xf] %v5214
        %5235 = vst [vmem:[%s207 + $0x48] sm:$0xf] %v5215
        %5236 = vst [vmem:[%s207 + $0x4c] sm:$0xf] %v5216
        %s5237 = sand.u32 %s120, 1
        %s5238 = scalar_lea.sflag [#allocation3], %s5237
        %s5239 = sand.u32 %s120, 1
        %s5240 = smul.addr %s5239, 80
        %s5241 = scalar_lea.vmem [#allocation2], %s5240
        // Predicated region
        $region37: #{tpu_custom_call.1} parent=35 // pred_check
          %p5242 = pneg %p130
        $region38: #{tpu_custom_call.1} parent=35 // pred_check_branch
          %5244 = sbr.rel (%p5242) target = $region40
        $region39: #{tpu_custom_call.1} parent=35 // pred_region
          %s5245 = smul.u32 20, %s18
          %5247 = vsyncadd %s5238, 0
          %s5248 = smul.addr %s5245, 4
          %s5249 = scalar_lea.hbm %s4, %s5248
          %s5250 = sshll.u32 %s5241, 4
          %s5251 = int_to_ptr.vmem [resolvable:$true] %s5250
          %s5252 = sshll.u32 %s5249, 4
          %s5253 = int_to_ptr.hbm [resolvable:$true] %s5252
          %5258 = dma.vmem_to_hbm [thread:$0]  %s5251, 1280, %s5253, %s5238, 64, 64, 4
        $region40: #{tpu_custom_call.1} parent=35 // pred_fallthru
          _
      $region36: #{tpu_custom_call.1} parent=5 // pred_fallthru
        _
      %p5259 = scmp.le.s32.totalorder 2, %s13
      // Predicated region
      $region41: #{tpu_custom_call.1} parent=5 // pred_check
        %p5260 = pneg %p5259
      $region42: #{tpu_custom_call.1} parent=5 // pred_check_branch
        %5262 = sbr.rel (%p5260) target = $region44
      $region43: #{tpu_custom_call.1} parent=5 // pred_region
        %s5263 = ssub.s32 %s13, 2
        // Predicated region
        $region45: #{tpu_custom_call.1} parent=43 // pred_check
          %p5264 = pneg %p136
        $region46: #{tpu_custom_call.1} parent=43 // pred_check_branch
          %5266 = sbr.rel (%p5264) target = $region48
        $region47: #{tpu_custom_call.1} parent=43 // pred_region
          %s5267 = sand.u32 %s121, 1
          %s5268 = scalar_lea.sflag [#allocation3], %s5267
          %s5269 = sand.u32 %s121, 1
          %s5270 = smul.addr %s5269, 80
          %s5271 = scalar_lea.vmem [#allocation2], %s5270
          %5273 = dma.done %s5268, 1280
        $region48: #{tpu_custom_call.1} parent=43 // pred_fallthru
          _
      $region44: #{tpu_custom_call.1} parent=5 // pred_fallthru
        _
    $region6: #{tpu_custom_call.1} parent=1 // loop_footer
      %s17 = sadd.s32 1, %s13
    $region7: #{tpu_custom_call.1} parent=1 // loop_footer_branch
      %12 = sbr.rel target = $region3
    $region8: #{tpu_custom_call.1} parent=1 // loop_exit
      _
    %5274 = vsyncpa [#allocation3], 1
    %s5275 = scalar_lea.sflag [#allocation3], 1
    %5276 = vsyncpa %s5275, 1

</llo_original>
